<compile_context>
chip_gen: v7x
topology: tpu7x:2x2x1
jax: 0.10.0
libtpu: 0.0.40
codegen_flags: <defaults>
</compile_context>

<pallas_src>
import jax
import jax.numpy as jnp
from jax.experimental import pallas as pl
from jax.experimental.pallas import tpu as pltpu


# Per-grid-step VMEM working-set budget used to size the row band (lane padding included).
_VMEM_BAND_BUDGET = 12 * 2**20
_VMEM_LIMIT_CAP = 56 * 2**20        # stays under v7x's 64 MiB physical VMEM


def _pad_to(n, m):
    return ((n + m - 1) // m) * m


def _largest_divisor(n, cap):
    for d in range(min(n, cap), 0, -1):
        if n % d == 0:
            return d
    return 1


# ----------------------------------------------------------------------------
# Fused (kh x kw) conv (stride 1) + bias + ReLU + 2x2/2 max pool over one row band.
# conv1 arrives pre-im2col'd (kh=kw=1, Cin=27); conv2 is the real 3x3 (Cin=32).
# ----------------------------------------------------------------------------
def _make_conv_pool_kernel(kh, kw):
    def kernel(x_ref, w_ref, b_ref, o_ref, pool_ref):
        # x_ref:    (1, 1, 2*band + kh-1, Wc + kw-1, Cin)  bf16
        # w_ref:    (kh, kw, Cin, Cout)                    bf16
        # b_ref:    (1, Cout)                              f32
        # o_ref:    (1, band, Wo, Cout)                    bf16
        # pool_ref: (band, 2*Wo, Cout) f32 scratch (staging for the stride-2 W pool)
        band, wo, cout = o_ref.shape[1], o_ref.shape[2], o_ref.shape[3]
        hc, wc = 2 * band, 2 * wo
        cin = x_ref.shape[-1]

        x = x_ref[0, 0]                                    # (hc+kh-1, wc+kw-1, cin)

        # Taps accumulate in f32 on the MXU.  The dw (sublane-offset) slice is hoisted out of
        # the dh loop; the (rows, W, Cin) -> (rows*W, Cin) collapse is layout-preserving
        # (W is a multiple of 8).
        acc = jnp.zeros((hc * wc, cout), jnp.float32)
        for dw in range(kw):
            xw = x[:, dw:dw + wc, :] if kw > 1 else x
            for dh in range(kh):
                patch = (xw[dh:dh + hc] if kh > 1 else xw).reshape(hc * wc, cin)
                acc = acc + jnp.dot(patch, w_ref[dh, dw],
                                    preferred_element_type=jnp.float32)

        # Fused epilogue: bias + ReLU, then 2x2 max pool without any size-2 sublane dims.
        y = jnp.maximum(acc + b_ref[...], 0.0)             # (hc*wc, cout) f32
        y = y.reshape(band, 2, wc, cout)                   # splits major dims only
        pool_ref[...] = jnp.maximum(y[:, 0], y[:, 1])      # H-pool -> (band, wc, cout)
        # W-pool: stride-2 sublane reads of the staged rows (documented ref-strided load).
        o_ref[0] = jnp.maximum(pool_ref[:, pl.ds(0, wo, 2), :],
                               pool_ref[:, pl.ds(1, wo, 2), :]).astype(o_ref.dtype)

    return kernel


def fused_conv_pool(x_nhwc, w, b):
    """x_nhwc: (N, H, W, Cin) bf16; w: (kh, kw, Cin, Cout) bf16; b: (1, Cout) f32."""
    N, H, W, Cin = x_nhwc.shape
    kh, kw, _, Cout = w.shape
    Ho, Wo = H // 2, W // 2

    def est(band):  # rough per-step VMEM footprint (double-buffered blocks + acc + scratch)
        rows_in = 2 * band + kh - 1
        wp = W + kw - 1
        in_b = rows_in * wp * _pad_to(Cin, 128) * 2
        out_b = band * Wo * _pad_to(Cout, 128) * 2
        acc_b = 2 * band * W * _pad_to(Cout, 128) * 4
        scr_b = band * W * _pad_to(Cout, 128) * 4
        w_b = kh * kw * _pad_to(Cin, 8) * _pad_to(Cout, 128) * 2
        return 2 * in_b + 2 * out_b + acc_b + scr_b + w_b + (2 << 20)

    # Band = largest divisor of Ho that fits the budget; cap at Ho//2 so there are always
    # >= 2 bands (gives v7x's second core real work even at batch 1-2).
    band = _largest_divisor(Ho, max(1, Ho // 2))
    while band > 1 and est(band) > _VMEM_BAND_BUDGET:
        band = _largest_divisor(Ho, band - 1)
    nb = Ho // band
    rows_in = 2 * band + kh - 1
    wp = W + kw - 1

    if kh == 1:
        # conv1 patches need no halo: banding is a free reshape.
        x_banded = x_nhwc.reshape(N, nb, rows_in, wp, Cin)
    else:
        # conv2: pad once, then stack overlapping row bands (2-row halo duplicated per band).
        x_pad = jnp.pad(x_nhwc, ((0, 0), (1, 1), (1, 1), (0, 0)))
        x_banded = jnp.stack(
            [x_pad[:, 2 * band * j: 2 * band * j + rows_in] for j in range(nb)], axis=1)

    vmem_limit = int(min(_VMEM_LIMIT_CAP, max(2 * est(band), 20 * 2**20)))

    return pl.pallas_call(
        _make_conv_pool_kernel(kh, kw),
        out_shape=jax.ShapeDtypeStruct((N, Ho, Wo, Cout), x_nhwc.dtype),
        grid=(N, nb),
        in_specs=[
            pl.BlockSpec((1, 1, rows_in, wp, Cin), lambda n, j: (n, j, 0, 0, 0)),
            pl.BlockSpec((kh, kw, Cin, Cout), lambda n, j: (0, 0, 0, 0)),
            pl.BlockSpec((1, Cout), lambda n, j: (0, 0)),
        ],
        out_specs=pl.BlockSpec((1, band, Wo, Cout), lambda n, j: (n, j, 0, 0)),
        scratch_shapes=[pltpu.VMEM((band, 2 * Wo, Cout), jnp.float32)],
        compiler_params=pltpu.CompilerParams(
            dimension_semantics=("parallel", "parallel"),
            vmem_limit_bytes=vmem_limit),
    )(x_banded, w, b)


# ----------------------------------------------------------------------------
# Fully-connected layer  y = x @ W^T + b  with W stored (1, fc_in) bf16.
# Large K tiles (409600 -> 25 grid steps), resident f32 accumulator, scalar bias from SMEM.
# ----------------------------------------------------------------------------
def _pick_block_k(K):
    for cand in (32768, 16384, 8192, 4096, 2048, 1024, 512, 256, 128):
        if K % cand == 0:
            return cand
    return K


def fc_kernel(x_ref, w_ref, b_ref, o_ref):
    # x_ref: (N, bk) bf16   w_ref: (1, bk) bf16   b_ref: (1, 1) f32 in SMEM   o_ref: (N, 1) f32
    @pl.when(pl.program_id(0) == 0)
    def _init():
        o_ref[...] = jnp.full(o_ref.shape, b_ref[0, 0], o_ref.dtype)

    part = jnp.sum(x_ref[...].astype(jnp.float32) * w_ref[...].astype(jnp.float32),
                   axis=-1, keepdims=True)                 # (N, 1)
    o_ref[...] = o_ref[...] + part


def linear(x, w, b):
    N, K = x.shape
    bk = _pick_block_k(K)
    return pl.pallas_call(
        fc_kernel,
        out_shape=jax.ShapeDtypeStruct((N, 1), jnp.float32),
        grid=(K // bk,),
        in_specs=[
            pl.BlockSpec((N, bk), lambda k: (0, k)),
            pl.BlockSpec((1, bk), lambda k: (0, k)),
            pl.BlockSpec(memory_space=pltpu.MemorySpace.SMEM),
        ],
        out_specs=pl.BlockSpec((N, 1), lambda k: (0, 0)),
        compiler_params=pltpu.CompilerParams(dimension_semantics=("arbitrary",)),
    )(x, w, b)


# ----------------------------------------------------------------------------
# Full forward pass (PyTorch-style NCHW input).
# ----------------------------------------------------------------------------
@jax.jit
def simple_cnn_forward(x_nchw, params):
    x = jnp.transpose(x_nchw, (0, 2, 3, 1)).astype(jnp.bfloat16)   # NCHW -> NHWC, bf16
    N, H, W, _ = x.shape

    # conv1: 3x3 taps folded into K=27 via wrapper-side im2col (also removes the Cin=3 lane dim).
    xp = jnp.pad(x, ((0, 0), (1, 1), (1, 1), (0, 0)))
    patches = jnp.concatenate(
        [xp[:, dh:dh + H, dw:dw + W, :] for dh in range(3) for dw in range(3)], axis=-1)
    w1_folded = params["w1"].reshape(1, 1, 27, 32)                  # (dh, dw, cin) order matches
    x = fused_conv_pool(patches, w1_folded, params["b1"])           # (N, H/2, W/2, 32)

    # conv2: in-kernel 3x3 (9 accumulating K=32 matmuls), row-banded with a 2-row halo.
    x = fused_conv_pool(x, params["w2"], params["b2"])              # (N, H/4, W/4, 64)

    x = x.reshape(x.shape[0], -1)                                   # Flatten (H*W*C order)
    return linear(x, params["wfc"], params["bfc"])                  # (N, 1) f32


def init_params(key, h, w):
    # Deterministic synthetic init.  Conv weights HWIO bf16 (MXU native), biases f32,
    # FC weight (1, fc_in) bf16 (lane-dense, bandwidth-bound layer).
    k1, k2, k3, k4, k5, k6 = jax.random.split(key, 6)
    fc_in = 64 * (h // 4) * (w // 4)
    return {
        "w1": (jax.random.normal(k1, (3, 3, 3, 32), jnp.float32)
               / jnp.sqrt(3.0 * 9.0)).astype(jnp.bfloat16),
        "b1": 0.01 * jax.random.normal(k2, (1, 32), jnp.float32),
        "w2": (jax.random.normal(k3, (3, 3, 32, 64), jnp.float32)
               / jnp.sqrt(32.0 * 9.0)).astype(jnp.bfloat16),
        "b2": 0.01 * jax.random.normal(k4, (1, 64), jnp.float32),
        "wfc": (jax.random.normal(k5, (1, fc_in), jnp.float32)
                / jnp.sqrt(float(fc_in))).astype(jnp.bfloat16),
        "bfc": 0.01 * jax.random.normal(k6, (1, 1), jnp.float32),
    }


# Plain-JAX f32 reference for a sanity check (not part of the kernel path).
def reference_forward(x_nchw, params):
    x = jnp.transpose(x_nchw, (0, 2, 3, 1))
    w1 = params["w1"].astype(jnp.float32)
    w2 = params["w2"].astype(jnp.float32)
    dn = jax.lax.conv_dimension_numbers(x.shape, w1.shape, ("NHWC", "HWIO", "NHWC"))

    def conv(x, w, b):
        y = jax.lax.conv_general_dilated(x, w, (1, 1), "SAME", dimension_numbers=dn)
        return jnp.maximum(y + b.reshape(1, 1, 1, -1), 0.0)

    def pool(x):
        return jax.lax.reduce_window(x, -jnp.inf, jax.lax.max,
                                     (1, 2, 2, 1), (1, 2, 2, 1), "VALID")

    x = pool(conv(x, w1, params["b1"]))
    x = pool(conv(x, w2, params["b2"]))
    x = x.reshape(x.shape[0], -1)
    return x @ params["wfc"].astype(jnp.float32).T + params["bfc"]


if __name__ == "__main__":
    N, C, H, W = 2, 3, 32, 32          # small stand-in for the module's 3x320x320 input
    key = jax.random.PRNGKey(0)
    kx, kp = jax.random.split(key)
    x = jax.random.normal(kx, (N, C, H, W), jnp.float32)   # NCHW, like PyTorch
    params = init_params(kp, H, W)

    out = jax.block_until_ready(simple_cnn_forward(x, params))
    assert out.shape == (N, 1), out.shape

    ref = reference_forward(x, params)
    # bf16 activations/weights vs f32 reference -> loose-ish but deterministic tolerance.
    assert jnp.allclose(out, ref, rtol=2e-2, atol=2e-2), (out, ref)

    print("KERNEL_OK")
</pallas_src>

<mosaic_0001>
module attributes {stable_mosaic.version = 11 : i64} {
  func.func @kernel(%arg0: i32, %arg1: i32, %arg2: memref<1x1x16x32x27xbf16, #tpu.memory_space<vmem>>, %arg3: memref<1x1x27x32xbf16, #tpu.memory_space<vmem>>, %arg4: memref<1x32xf32, #tpu.memory_space<vmem>>, %arg5: memref<1x8x16x32xbf16, #tpu.memory_space<vmem>>, %arg6: memref<8x32x32xf32, #tpu.memory_space<vmem>>) attributes {dimension_semantics = [#tpu.dimension_semantics<parallel>, #tpu.dimension_semantics<parallel>], iteration_bounds = array<i64: 2, 2>, scalar_prefetch = 0 : i64, scratch_operands = 1 : i64, tpu.core_type = #tpu.core_type<tc>, window_params = [{transform_indices = @transform_0, window_bounds = array<i64: 1, 1, 16, 32, 27>}, {pipeline_mode = #tpu.pipeline_mode<synchronous>, transform_indices = @transform_1, window_bounds = array<i64: 1, 1, 27, 32>}, {pipeline_mode = #tpu.pipeline_mode<synchronous>, transform_indices = @transform_2, window_bounds = array<i64: 1, 32>}, {transform_indices = @transform_3, window_bounds = array<i64: 1, 8, 16, 32>}]} {
    %c0 = arith.constant 0 : index
    %c0_0 = arith.constant 0 : index
    %c0_1 = arith.constant 0 : index
    %c0_2 = arith.constant 0 : index
    %c0_3 = arith.constant 0 : index
    %0 = vector.load %arg2[%c0, %c0_0, %c0_1, %c0_2, %c0_3] : memref<1x1x16x32x27xbf16, #tpu.memory_space<vmem>>, vector<1x1x16x32x27xbf16>
    %1 = vector.shape_cast %0 : vector<1x1x16x32x27xbf16> to vector<16x32x27xbf16>
    %cst = arith.constant 0.000000e+00 : f32
    %2 = vector.broadcast %cst : f32 to vector<512x32xf32>
    %3 = vector.shape_cast %1 : vector<16x32x27xbf16> to vector<512x27xbf16>
    %c0_4 = arith.constant 0 : index
    %c0_5 = arith.constant 0 : index
    %c0_6 = arith.constant 0 : index
    %c0_7 = arith.constant 0 : index
    %4 = vector.load %arg3[%c0_4, %c0_5, %c0_6, %c0_7] : memref<1x1x27x32xbf16, #tpu.memory_space<vmem>>, vector<1x1x27x32xbf16>
    %5 = vector.shape_cast %4 : vector<1x1x27x32xbf16> to vector<27x32xbf16>
    %cst_8 = arith.constant dense<0.000000e+00> : vector<512x32xf32>
    %6 = tpu.matmul %3, %5, %cst_8 {dimension_numbers = #tpu.dot_dimension_numbers<[1], [0], [0], [1], [0, 0, 1, 1], [], []>} : vector<512x27xbf16>, vector<27x32xbf16>, vector<512x32xf32> -> vector<512x32xf32>
    %7 = arith.addf %2, %6 : vector<512x32xf32>
    %c0_9 = arith.constant 0 : index
    %c0_10 = arith.constant 0 : index
    %8 = vector.load %arg4[%c0_9, %c0_10] : memref<1x32xf32, #tpu.memory_space<vmem>>, vector<1x32xf32>
    %9 = vector.broadcast %8 : vector<1x32xf32> to vector<512x32xf32>
    %10 = arith.addf %7, %9 : vector<512x32xf32>
    %cst_11 = arith.constant 0.000000e+00 : f32
    %11 = vector.broadcast %cst_11 : f32 to vector<512x32xf32>
    %12 = arith.maximumf %10, %11 : vector<512x32xf32>
    %13 = vector.shape_cast %12 : vector<512x32xf32> to vector<8x2x32x32xf32>
    %14 = vector.extract_strided_slice %13 {offsets = [0, 0, 0, 0], sizes = [8, 1, 32, 32], strides = [1, 1, 1, 1]} : vector<8x2x32x32xf32> to vector<8x1x32x32xf32>
    %15 = vector.shape_cast %14 : vector<8x1x32x32xf32> to vector<8x32x32xf32>
    %16 = vector.extract_strided_slice %13 {offsets = [0, 1, 0, 0], sizes = [8, 1, 32, 32], strides = [1, 1, 1, 1]} : vector<8x2x32x32xf32> to vector<8x1x32x32xf32>
    %17 = vector.shape_cast %16 : vector<8x1x32x32xf32> to vector<8x32x32xf32>
    %18 = arith.maximumf %15, %17 : vector<8x32x32xf32>
    %c0_12 = arith.constant 0 : index
    %c0_13 = arith.constant 0 : index
    %c0_14 = arith.constant 0 : index
    %19 = vector.load %arg6[%c0_12, %c0_13, %c0_14] : memref<8x32x32xf32, #tpu.memory_space<vmem>>, vector<8x32x32xf32>
    tpu.vector_store %arg6[%c0_12, %c0_13, %c0_14], %18 {strides = array<i32>} : memref<8x32x32xf32, #tpu.memory_space<vmem>>, vector<8x32x32xf32>,
    %c0_15 = arith.constant 0 : index
    %c0_16 = arith.constant 0 : index
    %c0_17 = arith.constant 0 : index
    %20 = tpu.strided_load %arg6[%c0_15, %c0_16, %c0_17] {strides = array<i32: 1, 2, 1>} : memref<8x32x32xf32, #tpu.memory_space<vmem>>, vector<8x16x32xf32>
    %c0_18 = arith.constant 0 : index
    %c1 = arith.constant 1 : index
    %c0_19 = arith.constant 0 : index
    %21 = tpu.strided_load %arg6[%c0_18, %c1, %c0_19] {strides = array<i32: 1, 2, 1>} : memref<8x32x32xf32, #tpu.memory_space<vmem>>, vector<8x16x32xf32>
    %22 = arith.maximumf %20, %21 : vector<8x16x32xf32>
    %23 = arith.truncf %22 : vector<8x16x32xf32> to vector<8x16x32xbf16>
    %c0_20 = arith.constant 0 : index
    %c0_21 = arith.constant 0 : index
    %c0_22 = arith.constant 0 : index
    %c0_23 = arith.constant 0 : index
    %24 = vector.load %arg5[%c0_20, %c0_21, %c0_22, %c0_23] : memref<1x8x16x32xbf16, #tpu.memory_space<vmem>>, vector<1x8x16x32xbf16>
    %25 = vector.shape_cast %24 : vector<1x8x16x32xbf16> to vector<8x16x32xbf16>
    %26 = vector.shape_cast %23 : vector<8x16x32xbf16> to vector<1x8x16x32xbf16>
    tpu.vector_store %arg5[%c0_20, %c0_21, %c0_22, %c0_23], %26 {strides = array<i32>} : memref<1x8x16x32xbf16, #tpu.memory_space<vmem>>, vector<1x8x16x32xbf16>,
    return
  }
  func.func @transform_0(%arg0: i32, %arg1: i32) -> (i32, i32, i32, i32, i32) {
    %c0_i32 = arith.constant 0 : i32
    %c0_i32_0 = arith.constant 0 : i32
    %c0_i32_1 = arith.constant 0 : i32
    %c0_i32_2 = arith.constant 0 : i32
    return %arg0, %arg1, %c0_i32, %c0_i32_0, %c0_i32_1 : i32, i32, i32, i32, i32
  }
  func.func @transform_1(%arg0: i32, %arg1: i32) -> (i32, i32, i32, i32) {
    %c0_i32 = arith.constant 0 : i32
    %c0_i32_0 = arith.constant 0 : i32
    %c0_i32_1 = arith.constant 0 : i32
    %c0_i32_2 = arith.constant 0 : i32
    %c0_i32_3 = arith.constant 0 : i32
    return %c0_i32, %c0_i32_0, %c0_i32_1, %c0_i32_2 : i32, i32, i32, i32
  }
  func.func @transform_2(%arg0: i32, %arg1: i32) -> (i32, i32) {
    %c0_i32 = arith.constant 0 : i32
    %c0_i32_0 = arith.constant 0 : i32
    %c0_i32_1 = arith.constant 0 : i32
    return %c0_i32, %c0_i32_0 : i32, i32
  }
  func.func @transform_3(%arg0: i32, %arg1: i32) -> (i32, i32, i32, i32) {
    %c0_i32 = arith.constant 0 : i32
    %c0_i32_0 = arith.constant 0 : i32
    %c0_i32_1 = arith.constant 0 : i32
    return %arg0, %arg1, %c0_i32, %c0_i32_0 : i32, i32, i32, i32
  }
}

module attributes {stable_mosaic.version = 11 : i64} {
  func.func @kernel(%arg0: i32, %arg1: i32, %arg2: memref<1x1x10x18x32xbf16, #tpu.memory_space<vmem>>, %arg3: memref<3x3x32x64xbf16, #tpu.memory_space<vmem>>, %arg4: memref<1x64xf32, #tpu.memory_space<vmem>>, %arg5: memref<1x4x8x64xbf16, #tpu.memory_space<vmem>>, %arg6: memref<4x16x64xf32, #tpu.memory_space<vmem>>) attributes {dimension_semantics = [#tpu.dimension_semantics<parallel>, #tpu.dimension_semantics<parallel>], iteration_bounds = array<i64: 2, 2>, scalar_prefetch = 0 : i64, scratch_operands = 1 : i64, tpu.core_type = #tpu.core_type<tc>, window_params = [{transform_indices = @transform_0, window_bounds = array<i64: 1, 1, 10, 18, 32>}, {pipeline_mode = #tpu.pipeline_mode<synchronous>, transform_indices = @transform_1, window_bounds = array<i64: 3, 3, 32, 64>}, {pipeline_mode = #tpu.pipeline_mode<synchronous>, transform_indices = @transform_2, window_bounds = array<i64: 1, 64>}, {transform_indices = @transform_3, window_bounds = array<i64: 1, 4, 8, 64>}]} {
    %c0 = arith.constant 0 : index
    %c0_0 = arith.constant 0 : index
    %c0_1 = arith.constant 0 : index
    %c0_2 = arith.constant 0 : index
    %c0_3 = arith.constant 0 : index
    %0 = vector.load %arg2[%c0, %c0_0, %c0_1, %c0_2, %c0_3] : memref<1x1x10x18x32xbf16, #tpu.memory_space<vmem>>, vector<1x1x10x18x32xbf16>
    %1 = vector.shape_cast %0 : vector<1x1x10x18x32xbf16> to vector<10x18x32xbf16>
    %cst = arith.constant 0.000000e+00 : f32
    %2 = vector.broadcast %cst : f32 to vector<128x64xf32>
    %3 = vector.extract_strided_slice %1 {offsets = [0, 0, 0], sizes = [10, 16, 32], strides = [1, 1, 1]} : vector<10x18x32xbf16> to vector<10x16x32xbf16>
    %4 = vector.extract_strided_slice %3 {offsets = [0, 0, 0], sizes = [8, 16, 32], strides = [1, 1, 1]} : vector<10x16x32xbf16> to vector<8x16x32xbf16>
    %5 = vector.shape_cast %4 : vector<8x16x32xbf16> to vector<128x32xbf16>
    %c0_4 = arith.constant 0 : index
    %c0_5 = arith.constant 0 : index
    %c0_6 = arith.constant 0 : index
    %c0_7 = arith.constant 0 : index
    %6 = vector.load %arg3[%c0_4, %c0_5, %c0_6, %c0_7] : memref<3x3x32x64xbf16, #tpu.memory_space<vmem>>, vector<1x1x32x64xbf16>
    %7 = vector.shape_cast %6 : vector<1x1x32x64xbf16> to vector<32x64xbf16>
    %cst_8 = arith.constant dense<0.000000e+00> : vector<128x64xf32>
    %8 = tpu.matmul %5, %7, %cst_8 {dimension_numbers = #tpu.dot_dimension_numbers<[1], [0], [0], [1], [0, 0, 1, 1], [], []>} : vector<128x32xbf16>, vector<32x64xbf16>, vector<128x64xf32> -> vector<128x64xf32>
    %9 = arith.addf %2, %8 : vector<128x64xf32>
    %10 = vector.extract_strided_slice %3 {offsets = [1, 0, 0], sizes = [8, 16, 32], strides = [1, 1, 1]} : vector<10x16x32xbf16> to vector<8x16x32xbf16>
    %11 = vector.shape_cast %10 : vector<8x16x32xbf16> to vector<128x32xbf16>
    %c1 = arith.constant 1 : index
    %c0_9 = arith.constant 0 : index
    %c0_10 = arith.constant 0 : index
    %c0_11 = arith.constant 0 : index
    %12 = vector.load %arg3[%c1, %c0_9, %c0_10, %c0_11] : memref<3x3x32x64xbf16, #tpu.memory_space<vmem>>, vector<1x1x32x64xbf16>
    %13 = vector.shape_cast %12 : vector<1x1x32x64xbf16> to vector<32x64xbf16>
    %cst_12 = arith.constant dense<0.000000e+00> : vector<128x64xf32>
    %14 = tpu.matmul %11, %13, %cst_12 {dimension_numbers = #tpu.dot_dimension_numbers<[1], [0], [0], [1], [0, 0, 1, 1], [], []>} : vector<128x32xbf16>, vector<32x64xbf16>, vector<128x64xf32> -> vector<128x64xf32>
    %15 = arith.addf %9, %14 : vector<128x64xf32>
    %16 = vector.extract_strided_slice %3 {offsets = [2, 0, 0], sizes = [8, 16, 32], strides = [1, 1, 1]} : vector<10x16x32xbf16> to vector<8x16x32xbf16>
    %17 = vector.shape_cast %16 : vector<8x16x32xbf16> to vector<128x32xbf16>
    %c2 = arith.constant 2 : index
    %c0_13 = arith.constant 0 : index
    %c0_14 = arith.constant 0 : index
    %c0_15 = arith.constant 0 : index
    %18 = vector.load %arg3[%c2, %c0_13, %c0_14, %c0_15] : memref<3x3x32x64xbf16, #tpu.memory_space<vmem>>, vector<1x1x32x64xbf16>
    %19 = vector.shape_cast %18 : vector<1x1x32x64xbf16> to vector<32x64xbf16>
    %cst_16 = arith.constant dense<0.000000e+00> : vector<128x64xf32>
    %20 = tpu.matmul %17, %19, %cst_16 {dimension_numbers = #tpu.dot_dimension_numbers<[1], [0], [0], [1], [0, 0, 1, 1], [], []>} : vector<128x32xbf16>, vector<32x64xbf16>, vector<128x64xf32> -> vector<128x64xf32>
    %21 = arith.addf %15, %20 : vector<128x64xf32>
    %22 = vector.extract_strided_slice %1 {offsets = [0, 1, 0], sizes = [10, 16, 32], strides = [1, 1, 1]} : vector<10x18x32xbf16> to vector<10x16x32xbf16>
    %23 = vector.extract_strided_slice %22 {offsets = [0, 0, 0], sizes = [8, 16, 32], strides = [1, 1, 1]} : vector<10x16x32xbf16> to vector<8x16x32xbf16>
    %24 = vector.shape_cast %23 : vector<8x16x32xbf16> to vector<128x32xbf16>
    %c0_17 = arith.constant 0 : index
    %c1_18 = arith.constant 1 : index
    %c0_19 = arith.constant 0 : index
    %c0_20 = arith.constant 0 : index
    %25 = vector.load %arg3[%c0_17, %c1_18, %c0_19, %c0_20] : memref<3x3x32x64xbf16, #tpu.memory_space<vmem>>, vector<1x1x32x64xbf16>
    %26 = vector.shape_cast %25 : vector<1x1x32x64xbf16> to vector<32x64xbf16>
    %cst_21 = arith.constant dense<0.000000e+00> : vector<128x64xf32>
    %27 = tpu.matmul %24, %26, %cst_21 {dimension_numbers = #tpu.dot_dimension_numbers<[1], [0], [0], [1], [0, 0, 1, 1], [], []>} : vector<128x32xbf16>, vector<32x64xbf16>, vector<128x64xf32> -> vector<128x64xf32>
    %28 = arith.addf %21, %27 : vector<128x64xf32>
    %29 = vector.extract_strided_slice %22 {offsets = [1, 0, 0], sizes = [8, 16, 32], strides = [1, 1, 1]} : vector<10x16x32xbf16> to vector<8x16x32xbf16>
    %30 = vector.shape_cast %29 : vector<8x16x32xbf16> to vector<128x32xbf16>
    %c1_22 = arith.constant 1 : index
    %c1_23 = arith.constant 1 : index
    %c0_24 = arith.constant 0 : index
    %c0_25 = arith.constant 0 : index
    %31 = vector.load %arg3[%c1_22, %c1_23, %c0_24, %c0_25] : memref<3x3x32x64xbf16, #tpu.memory_space<vmem>>, vector<1x1x32x64xbf16>
    %32 = vector.shape_cast %31 : vector<1x1x32x64xbf16> to vector<32x64xbf16>
    %cst_26 = arith.constant dense<0.000000e+00> : vector<128x64xf32>
    %33 = tpu.matmul %30, %32, %cst_26 {dimension_numbers = #tpu.dot_dimension_numbers<[1], [0], [0], [1], [0, 0, 1, 1], [], []>} : vector<128x32xbf16>, vector<32x64xbf16>, vector<128x64xf32> -> vector<128x64xf32>
    %34 = arith.addf %28, %33 : vector<128x64xf32>
    %35 = vector.extract_strided_slice %22 {offsets = [2, 0, 0], sizes = [8, 16, 32], strides = [1, 1, 1]} : vector<10x16x32xbf16> to vector<8x16x32xbf16>
    %36 = vector.shape_cast %35 : vector<8x16x32xbf16> to vector<128x32xbf16>
    %c2_27 = arith.constant 2 : index
    %c1_28 = arith.constant 1 : index
    %c0_29 = arith.constant 0 : index
    %c0_30 = arith.constant 0 : index
    %37 = vector.load %arg3[%c2_27, %c1_28, %c0_29, %c0_30] : memref<3x3x32x64xbf16, #tpu.memory_space<vmem>>, vector<1x1x32x64xbf16>
    %38 = vector.shape_cast %37 : vector<1x1x32x64xbf16> to vector<32x64xbf16>
    %cst_31 = arith.constant dense<0.000000e+00> : vector<128x64xf32>
    %39 = tpu.matmul %36, %38, %cst_31 {dimension_numbers = #tpu.dot_dimension_numbers<[1], [0], [0], [1], [0, 0, 1, 1], [], []>} : vector<128x32xbf16>, vector<32x64xbf16>, vector<128x64xf32> -> vector<128x64xf32>
    %40 = arith.addf %34, %39 : vector<128x64xf32>
    %41 = vector.extract_strided_slice %1 {offsets = [0, 2, 0], sizes = [10, 16, 32], strides = [1, 1, 1]} : vector<10x18x32xbf16> to vector<10x16x32xbf16>
    %42 = vector.extract_strided_slice %41 {offsets = [0, 0, 0], sizes = [8, 16, 32], strides = [1, 1, 1]} : vector<10x16x32xbf16> to vector<8x16x32xbf16>
    %43 = vector.shape_cast %42 : vector<8x16x32xbf16> to vector<128x32xbf16>
    %c0_32 = arith.constant 0 : index
    %c2_33 = arith.constant 2 : index
    %c0_34 = arith.constant 0 : index
    %c0_35 = arith.constant 0 : index
    %44 = vector.load %arg3[%c0_32, %c2_33, %c0_34, %c0_35] : memref<3x3x32x64xbf16, #tpu.memory_space<vmem>>, vector<1x1x32x64xbf16>
    %45 = vector.shape_cast %44 : vector<1x1x32x64xbf16> to vector<32x64xbf16>
    %cst_36 = arith.constant dense<0.000000e+00> : vector<128x64xf32>
    %46 = tpu.matmul %43, %45, %cst_36 {dimension_numbers = #tpu.dot_dimension_numbers<[1], [0], [0], [1], [0, 0, 1, 1], [], []>} : vector<128x32xbf16>, vector<32x64xbf16>, vector<128x64xf32> -> vector<128x64xf32>
    %47 = arith.addf %40, %46 : vector<128x64xf32>
    %48 = vector.extract_strided_slice %41 {offsets = [1, 0, 0], sizes = [8, 16, 32], strides = [1, 1, 1]} : vector<10x16x32xbf16> to vector<8x16x32xbf16>
    %49 = vector.shape_cast %48 : vector<8x16x32xbf16> to vector<128x32xbf16>
    %c1_37 = arith.constant 1 : index
    %c2_38 = arith.constant 2 : index
    %c0_39 = arith.constant 0 : index
    %c0_40 = arith.constant 0 : index
    %50 = vector.load %arg3[%c1_37, %c2_38, %c0_39, %c0_40] : memref<3x3x32x64xbf16, #tpu.memory_space<vmem>>, vector<1x1x32x64xbf16>
    %51 = vector.shape_cast %50 : vector<1x1x32x64xbf16> to vector<32x64xbf16>
    %cst_41 = arith.constant dense<0.000000e+00> : vector<128x64xf32>
    %52 = tpu.matmul %49, %51, %cst_41 {dimension_numbers = #tpu.dot_dimension_numbers<[1], [0], [0], [1], [0, 0, 1, 1], [], []>} : vector<128x32xbf16>, vector<32x64xbf16>, vector<128x64xf32> -> vector<128x64xf32>
    %53 = arith.addf %47, %52 : vector<128x64xf32>
    %54 = vector.extract_strided_slice %41 {offsets = [2, 0, 0], sizes = [8, 16, 32], strides = [1, 1, 1]} : vector<10x16x32xbf16> to vector<8x16x32xbf16>
    %55 = vector.shape_cast %54 : vector<8x16x32xbf16> to vector<128x32xbf16>
    %c2_42 = arith.constant 2 : index
    %c2_43 = arith.constant 2 : index
    %c0_44 = arith.constant 0 : index
    %c0_45 = arith.constant 0 : index
    %56 = vector.load %arg3[%c2_42, %c2_43, %c0_44, %c0_45] : memref<3x3x32x64xbf16, #tpu.memory_space<vmem>>, vector<1x1x32x64xbf16>
    %57 = vector.shape_cast %56 : vector<1x1x32x64xbf16> to vector<32x64xbf16>
    %cst_46 = arith.constant dense<0.000000e+00> : vector<128x64xf32>
    %58 = tpu.matmul %55, %57, %cst_46 {dimension_numbers = #tpu.dot_dimension_numbers<[1], [0], [0], [1], [0, 0, 1, 1], [], []>} : vector<128x32xbf16>, vector<32x64xbf16>, vector<128x64xf32> -> vector<128x64xf32>
    %59 = arith.addf %53, %58 : vector<128x64xf32>
    %c0_47 = arith.constant 0 : index
    %c0_48 = arith.constant 0 : index
    %60 = vector.load %arg4[%c0_47, %c0_48] : memref<1x64xf32, #tpu.memory_space<vmem>>, vector<1x64xf32>
    %61 = vector.broadcast %60 : vector<1x64xf32> to vector<128x64xf32>
    %62 = arith.addf %59, %61 : vector<128x64xf32>
    %cst_49 = arith.constant 0.000000e+00 : f32
    %63 = vector.broadcast %cst_49 : f32 to vector<128x64xf32>
    %64 = arith.maximumf %62, %63 : vector<128x64xf32>
    %65 = vector.shape_cast %64 : vector<128x64xf32> to vector<4x2x16x64xf32>
    %66 = vector.extract_strided_slice %65 {offsets = [0, 0, 0, 0], sizes = [4, 1, 16, 64], strides = [1, 1, 1, 1]} : vector<4x2x16x64xf32> to vector<4x1x16x64xf32>
    %67 = vector.shape_cast %66 : vector<4x1x16x64xf32> to vector<4x16x64xf32>
    %68 = vector.extract_strided_slice %65 {offsets = [0, 1, 0, 0], sizes = [4, 1, 16, 64], strides = [1, 1, 1, 1]} : vector<4x2x16x64xf32> to vector<4x1x16x64xf32>
    %69 = vector.shape_cast %68 : vector<4x1x16x64xf32> to vector<4x16x64xf32>
    %70 = arith.maximumf %67, %69 : vector<4x16x64xf32>
    %c0_50 = arith.constant 0 : index
    %c0_51 = arith.constant 0 : index
    %c0_52 = arith.constant 0 : index
    %71 = vector.load %arg6[%c0_50, %c0_51, %c0_52] : memref<4x16x64xf32, #tpu.memory_space<vmem>>, vector<4x16x64xf32>
    tpu.vector_store %arg6[%c0_50, %c0_51, %c0_52], %70 {strides = array<i32>} : memref<4x16x64xf32, #tpu.memory_space<vmem>>, vector<4x16x64xf32>,
    %c0_53 = arith.constant 0 : index
    %c0_54 = arith.constant 0 : index
    %c0_55 = arith.constant 0 : index
    %72 = tpu.strided_load %arg6[%c0_53, %c0_54, %c0_55] {strides = array<i32: 1, 2, 1>} : memref<4x16x64xf32, #tpu.memory_space<vmem>>, vector<4x8x64xf32>
    %c0_56 = arith.constant 0 : index
    %c1_57 = arith.constant 1 : index
    %c0_58 = arith.constant 0 : index
    %73 = tpu.strided_load %arg6[%c0_56, %c1_57, %c0_58] {strides = array<i32: 1, 2, 1>} : memref<4x16x64xf32, #tpu.memory_space<vmem>>, vector<4x8x64xf32>
    %74 = arith.maximumf %72, %73 : vector<4x8x64xf32>
    %75 = arith.truncf %74 : vector<4x8x64xf32> to vector<4x8x64xbf16>
    %c0_59 = arith.constant 0 : index
    %c0_60 = arith.constant 0 : index
    %c0_61 = arith.constant 0 : index
    %c0_62 = arith.constant 0 : index
    %76 = vector.load %arg5[%c0_59, %c0_60, %c0_61, %c0_62] : memref<1x4x8x64xbf16, #tpu.memory_space<vmem>>, vector<1x4x8x64xbf16>
    %77 = vector.shape_cast %76 : vector<1x4x8x64xbf16> to vector<4x8x64xbf16>
    %78 = vector.shape_cast %75 : vector<4x8x64xbf16> to vector<1x4x8x64xbf16>
    tpu.vector_store %arg5[%c0_59, %c0_60, %c0_61, %c0_62], %78 {strides = array<i32>} : memref<1x4x8x64xbf16, #tpu.memory_space<vmem>>, vector<1x4x8x64xbf16>,
    return
  }
  func.func @transform_0(%arg0: i32, %arg1: i32) -> (i32, i32, i32, i32, i32) {
    %c0_i32 = arith.constant 0 : i32
    %c0_i32_0 = arith.constant 0 : i32
    %c0_i32_1 = arith.constant 0 : i32
    %c0_i32_2 = arith.constant 0 : i32
    return %arg0, %arg1, %c0_i32, %c0_i32_0, %c0_i32_1 : i32, i32, i32, i32, i32
  }
  func.func @transform_1(%arg0: i32, %arg1: i32) -> (i32, i32, i32, i32) {
    %c0_i32 = arith.constant 0 : i32
    %c0_i32_0 = arith.constant 0 : i32
    %c0_i32_1 = arith.constant 0 : i32
    %c0_i32_2 = arith.constant 0 : i32
    %c0_i32_3 = arith.constant 0 : i32
    return %c0_i32, %c0_i32_0, %c0_i32_1, %c0_i32_2 : i32, i32, i32, i32
  }
  func.func @transform_2(%arg0: i32, %arg1: i32) -> (i32, i32) {
    %c0_i32 = arith.constant 0 : i32
    %c0_i32_0 = arith.constant 0 : i32
    %c0_i32_1 = arith.constant 0 : i32
    return %c0_i32, %c0_i32_0 : i32, i32
  }
  func.func @transform_3(%arg0: i32, %arg1: i32) -> (i32, i32, i32, i32) {
    %c0_i32 = arith.constant 0 : i32
    %c0_i32_0 = arith.constant 0 : i32
    %c0_i32_1 = arith.constant 0 : i32
    return %arg0, %arg1, %c0_i32, %c0_i32_0 : i32, i32, i32, i32
  }
}

module attributes {stable_mosaic.version = 11 : i64} {
  func.func @fc_kernel(%arg0: i32, %arg1: memref<2x4096xbf16, #tpu.memory_space<vmem>>, %arg2: memref<1x4096xbf16, #tpu.memory_space<vmem>>, %arg3: memref<1x1xf32, #tpu.memory_space<smem>>, %arg4: memref<2x1xf32, #tpu.memory_space<vmem>>) attributes {dimension_semantics = [#tpu.dimension_semantics<arbitrary>], iteration_bounds = array<i64: 1>, scalar_prefetch = 0 : i64, scratch_operands = 0 : i64, tpu.core_type = #tpu.core_type<tc>, window_params = [{transform_indices = @transform_0, window_bounds = array<i64: 2, 4096>}, {transform_indices = @transform_1, window_bounds = array<i64: 1, 4096>}, {transform_indices = @transform_2, window_bounds = array<i64: 1, 1>}, {pipeline_mode = #tpu.pipeline_mode<synchronous>, transform_indices = @transform_3, window_bounds = array<i64: 2, 1>}]} {
    %c0_i32 = arith.constant 0 : i32
    %0 = arith.cmpi eq, %arg0, %c0_i32 : i32
    %1 = arith.extui %0 : i1 to i32
    %c0_i32_0 = arith.constant 0 : i32
    %2 = arith.cmpi ne, %1, %c0_i32_0 : i32
    scf.if %2 {
      %c0_8 = arith.constant 0 : index
      %c0_9 = arith.constant 0 : index
      %14 = memref.load %arg3[%c0_8, %c0_9] : memref<1x1xf32, #tpu.memory_space<smem>>
      %15 = vector.broadcast %14 : f32 to vector<2x1xf32>
      %c0_10 = arith.constant 0 : index
      %c0_11 = arith.constant 0 : index
      %16 = vector.load %arg4[%c0_10, %c0_11] : memref<2x1xf32, #tpu.memory_space<vmem>>, vector<2x1xf32>
      tpu.vector_store %arg4[%c0_10, %c0_11], %15 {strides = array<i32>} : memref<2x1xf32, #tpu.memory_space<vmem>>, vector<2x1xf32>,
    } else {
    }
    %c0 = arith.constant 0 : index
    %c0_1 = arith.constant 0 : index
    %3 = vector.load %arg1[%c0, %c0_1] : memref<2x4096xbf16, #tpu.memory_space<vmem>>, vector<2x4096xbf16>
    %4 = arith.extf %3 : vector<2x4096xbf16> to vector<2x4096xf32>
    %c0_2 = arith.constant 0 : index
    %c0_3 = arith.constant 0 : index
    %5 = vector.load %arg2[%c0_2, %c0_3] : memref<1x4096xbf16, #tpu.memory_space<vmem>>, vector<1x4096xbf16>
    %6 = arith.extf %5 : vector<1x4096xbf16> to vector<1x4096xf32>
    %7 = vector.broadcast %6 : vector<1x4096xf32> to vector<2x4096xf32>
    %8 = arith.mulf %4, %7 : vector<2x4096xf32>
    %cst = arith.constant dense<0.000000e+00> : vector<2xf32>
    %9 = vector.multi_reduction <add>, %8, %cst [1] : vector<2x4096xf32> to vector<2xf32>
    %10 = vector.shape_cast %9 : vector<2xf32> to vector<2x1xf32>
    %c0_4 = arith.constant 0 : index
    %c0_5 = arith.constant 0 : index
    %11 = vector.load %arg4[%c0_4, %c0_5] : memref<2x1xf32, #tpu.memory_space<vmem>>, vector<2x1xf32>
    %12 = arith.addf %11, %10 : vector<2x1xf32>
    %c0_6 = arith.constant 0 : index
    %c0_7 = arith.constant 0 : index
    %13 = vector.load %arg4[%c0_6, %c0_7] : memref<2x1xf32, #tpu.memory_space<vmem>>, vector<2x1xf32>
    tpu.vector_store %arg4[%c0_6, %c0_7], %12 {strides = array<i32>} : memref<2x1xf32, #tpu.memory_space<vmem>>, vector<2x1xf32>,
    return
  }
  func.func @transform_0(%arg0: i32) -> (i32, i32) {
    %c0_i32 = arith.constant 0 : i32
    %c0_i32_0 = arith.constant 0 : i32
    return %c0_i32, %arg0 : i32, i32
  }
  func.func @transform_1(%arg0: i32) -> (i32, i32) {
    %c0_i32 = arith.constant 0 : i32
    %c0_i32_0 = arith.constant 0 : i32
    return %c0_i32, %arg0 : i32, i32
  }
  func.func @transform_2(%arg0: i32) -> (i32, i32) {
    %c0_i32 = arith.constant 0 : i32
    %c0_i32_0 = arith.constant 0 : i32
    %c0_i32_1 = arith.constant 0 : i32
    return %c0_i32, %c0_i32_0 : i32, i32
  }
  func.func @transform_3(%arg0: i32) -> (i32, i32) {
    %c0_i32 = arith.constant 0 : i32
    %c0_i32_0 = arith.constant 0 : i32
    %c0_i32_1 = arith.constant 0 : i32
    return %c0_i32, %c0_i32_0 : i32, i32
  }
}

</mosaic_0001>

<llo_original>
// kernel: simple_cnn_forward.5
$region0: #{simple_cnn_forward.5}
  #allocation0 [shape = 'u32[]', space=smem, size = 0x4, offset = 0x4, fixed_abs, tag = 'smem constant byte address 0x4 - core index']
  #allocation1 [shape = 'u32[144,128]{1,0:T(1,128)}', space=vmem, size = 0x12000, scoped, tag = 'internal scratch']
  #allocation2 [shape = 'f32[1,1]{1,0:T(1,128)S(6)}', space=smem, size = 0x200, scoped, tag = 'scoped memory for simple_cnn_forward.5']
  %s0 = inlined_call_operand.vmem [shape: bf16[2,4096], index: 0, kind: input, shape index: {}]
  %s1 = inlined_call_operand.vmem [shape: bf16[1,4096], index: 1, kind: input, shape index: {}]
  %s2 = inlined_call_operand.<no memory space> [shape: f32[1,1], index: 2, kind: input, shape index: {}]
  %s3 = inlined_call_operand.vmem [shape: f32[2,1], index: 3, kind: output, shape index: {}]
  %s4 = sld [smem:[#allocation0]]
  $region26: #{simple_cnn_forward.5} parent=0
    _
  %s6 = ssub.s32 1, %s4
  %s7 = scalar_select 0, %s6, %s4
  %8 = sst [smem:[#allocation2]] %s2
  // Predicated region
  $region2: #{simple_cnn_forward.5} parent=0 // pred_check
    _
  $region3: #{simple_cnn_forward.5} parent=0 // pred_check_branch
    %10 = sbr.rel (0) target = $region5
  $region4: #{simple_cnn_forward.5} parent=0 // pred_region
    _
  $region5: #{simple_cnn_forward.5} parent=0 // pred_fallthru
    _
  // Predicated region
  $region6: #{simple_cnn_forward.5} parent=0 // pred_check
    _
  $region7: #{simple_cnn_forward.5} parent=0 // pred_check_branch
    %12 = sbr.rel (0) target = $region9
  $region8: #{simple_cnn_forward.5} parent=0 // pred_region
    _
  $region9: #{simple_cnn_forward.5} parent=0 // pred_fallthru
    _
  // Predicated region
  $region10: #{simple_cnn_forward.5} parent=0 // pred_check
    _
  $region11: #{simple_cnn_forward.5} parent=0 // pred_check_branch
    %14 = sbr.rel (0) target = $region13
  $region12: #{simple_cnn_forward.5} parent=0 // pred_region
    _
  $region13: #{simple_cnn_forward.5} parent=0 // pred_fallthru
    _
  %p15 = scmp.eq.s32.totalorder 0, 0
  // Predicated region
  $region14: #{simple_cnn_forward.5} parent=0 // pred_check
    %p16 = pneg %p15
  $region15: #{simple_cnn_forward.5} parent=0 // pred_check_branch
    %18 = sbr.rel (%p16) target = $region17
  $region16: #{simple_cnn_forward.5} parent=0 // pred_region
    %s19 = sld [smem:[#allocation2]]
    %v20 = vstv %s19
    %vm21 = vcmask 1024
    %22 = vst.msk [vmem:[%s3] sm:$0x3] %vm21, %v20
  $region17: #{simple_cnn_forward.5} parent=0 // pred_fallthru
    _
  %v23 = vld [vmem:[%s0] sm:$0xff]
  %v24 = vld [vmem:[%s0 + $0x8] sm:$0xff]
  %v25 = vld [vmem:[%s0 + $0x10] sm:$0xff]
  %v26 = vld [vmem:[%s0 + $0x18] sm:$0xff]
  %v27 = vunpack.c.l.bf16 %v23
  %v28 = vunpack.c.h.bf16 %v23
  %v29 = vunpack.c.l.bf16 %v24
  %v30 = vunpack.c.h.bf16 %v24
  %v31 = vunpack.c.l.bf16 %v25
  %v32 = vunpack.c.h.bf16 %v25
  %v33 = vunpack.c.l.bf16 %v26
  %v34 = vunpack.c.h.bf16 %v26
  %v35 = vld [vmem:[%s1] sm:$0xff]
  %v36 = vld [vmem:[%s1 + $0x8] sm:$0xff]
  %v37 = vld [vmem:[%s1 + $0x10] sm:$0xff]
  %v38 = vld [vmem:[%s1 + $0x18] sm:$0xff]
  %v39 = vunpack.c.l.bf16 %v35
  %v40 = vunpack.c.h.bf16 %v35
  %v41 = vunpack.c.l.bf16 %v36
  %v42 = vunpack.c.h.bf16 %v36
  %v43 = vunpack.c.l.bf16 %v37
  %v44 = vunpack.c.h.bf16 %v37
  %v45 = vunpack.c.l.bf16 %v38
  %v46 = vunpack.c.h.bf16 %v38
  %v55 = vlaneseq
  %v56 = vshrl.u32 %v55, 7
  %v57 = vsub.s32 0, %v56
  %v58 = vrot.slane %v39, %v57
  %v59 = vlaneseq
  %v60 = vshrl.u32 %v59, 7
  %v61 = vsub.s32 2, %v60
  %v62 = vrot.slane %v39, %v61
  %v63 = vlaneseq
  %v64 = vshrl.u32 %v63, 7
  %v65 = vsub.s32 4, %v64
  %v66 = vrot.slane %v39, %v65
  %v67 = vlaneseq
  %v68 = vshrl.u32 %v67, 7
  %v69 = vsub.s32 6, %v68
  %v70 = vrot.slane %v39, %v69
  %v71 = vlaneseq
  %v72 = vshrl.u32 %v71, 7
  %v73 = vsub.s32 0, %v72
  %v74 = vrot.slane %v40, %v73
  %v75 = vlaneseq
  %v76 = vshrl.u32 %v75, 7
  %v77 = vsub.s32 2, %v76
  %v78 = vrot.slane %v40, %v77
  %v79 = vlaneseq
  %v80 = vshrl.u32 %v79, 7
  %v81 = vsub.s32 4, %v80
  %v82 = vrot.slane %v40, %v81
  %v83 = vlaneseq
  %v84 = vshrl.u32 %v83, 7
  %v85 = vsub.s32 6, %v84
  %v86 = vrot.slane %v40, %v85
  %v87 = vlaneseq
  %v88 = vshrl.u32 %v87, 7
  %v89 = vsub.s32 0, %v88
  %v90 = vrot.slane %v41, %v89
  %v91 = vlaneseq
  %v92 = vshrl.u32 %v91, 7
  %v93 = vsub.s32 2, %v92
  %v94 = vrot.slane %v41, %v93
  %v95 = vlaneseq
  %v96 = vshrl.u32 %v95, 7
  %v97 = vsub.s32 4, %v96
  %v98 = vrot.slane %v41, %v97
  %v99 = vlaneseq
  %v100 = vshrl.u32 %v99, 7
  %v101 = vsub.s32 6, %v100
  %v102 = vrot.slane %v41, %v101
  %v103 = vlaneseq
  %v104 = vshrl.u32 %v103, 7
  %v105 = vsub.s32 0, %v104
  %v106 = vrot.slane %v42, %v105
  %v107 = vlaneseq
  %v108 = vshrl.u32 %v107, 7
  %v109 = vsub.s32 2, %v108
  %v110 = vrot.slane %v42, %v109
  %v111 = vlaneseq
  %v112 = vshrl.u32 %v111, 7
  %v113 = vsub.s32 4, %v112
  %v114 = vrot.slane %v42, %v113
  %v115 = vlaneseq
  %v116 = vshrl.u32 %v115, 7
  %v117 = vsub.s32 6, %v116
  %v118 = vrot.slane %v42, %v117
  %v119 = vlaneseq
  %v120 = vshrl.u32 %v119, 7
  %v121 = vsub.s32 0, %v120
  %v122 = vrot.slane %v43, %v121
  %v123 = vlaneseq
  %v124 = vshrl.u32 %v123, 7
  %v125 = vsub.s32 2, %v124
  %v126 = vrot.slane %v43, %v125
  %v127 = vlaneseq
  %v128 = vshrl.u32 %v127, 7
  %v129 = vsub.s32 4, %v128
  %v130 = vrot.slane %v43, %v129
  %v131 = vlaneseq
  %v132 = vshrl.u32 %v131, 7
  %v133 = vsub.s32 6, %v132
  %v134 = vrot.slane %v43, %v133
  %v135 = vlaneseq
  %v136 = vshrl.u32 %v135, 7
  %v137 = vsub.s32 0, %v136
  %v138 = vrot.slane %v44, %v137
  %v139 = vlaneseq
  %v140 = vshrl.u32 %v139, 7
  %v141 = vsub.s32 2, %v140
  %v142 = vrot.slane %v44, %v141
  %v143 = vlaneseq
  %v144 = vshrl.u32 %v143, 7
  %v145 = vsub.s32 4, %v144
  %v146 = vrot.slane %v44, %v145
  %v147 = vlaneseq
  %v148 = vshrl.u32 %v147, 7
  %v149 = vsub.s32 6, %v148
  %v150 = vrot.slane %v44, %v149
  %v151 = vlaneseq
  %v152 = vshrl.u32 %v151, 7
  %v153 = vsub.s32 0, %v152
  %v154 = vrot.slane %v45, %v153
  %v155 = vlaneseq
  %v156 = vshrl.u32 %v155, 7
  %v157 = vsub.s32 2, %v156
  %v158 = vrot.slane %v45, %v157
  %v159 = vlaneseq
  %v160 = vshrl.u32 %v159, 7
  %v161 = vsub.s32 4, %v160
  %v162 = vrot.slane %v45, %v161
  %v163 = vlaneseq
  %v164 = vshrl.u32 %v163, 7
  %v165 = vsub.s32 6, %v164
  %v166 = vrot.slane %v45, %v165
  %v167 = vlaneseq
  %v168 = vshrl.u32 %v167, 7
  %v169 = vsub.s32 0, %v168
  %v170 = vrot.slane %v46, %v169
  %v171 = vlaneseq
  %v172 = vshrl.u32 %v171, 7
  %v173 = vsub.s32 2, %v172
  %v174 = vrot.slane %v46, %v173
  %v175 = vlaneseq
  %v176 = vshrl.u32 %v175, 7
  %v177 = vsub.s32 4, %v176
  %v178 = vrot.slane %v46, %v177
  %v179 = vlaneseq
  %v180 = vshrl.u32 %v179, 7
  %v181 = vsub.s32 6, %v180
  %v182 = vrot.slane %v46, %v181
  %v215 = vlaneseq
  %v216 = vshrl.u32 %v215, 7
  %v217 = vsub.s32 0, %v216
  %v218 = vrot.slane %v58, %v217
  %v219 = vlaneseq
  %v220 = vshrl.u32 %v219, 7
  %v221 = vsub.s32 0, %v220
  %v222 = vrot.slane %v62, %v221
  %v223 = vlaneseq
  %v224 = vshrl.u32 %v223, 7
  %v225 = vsub.s32 0, %v224
  %v226 = vrot.slane %v66, %v225
  %v227 = vlaneseq
  %v228 = vshrl.u32 %v227, 7
  %v229 = vsub.s32 0, %v228
  %v230 = vrot.slane %v70, %v229
  %v231 = vlaneseq
  %v232 = vshrl.u32 %v231, 7
  %v233 = vsub.s32 0, %v232
  %v234 = vrot.slane %v74, %v233
  %v235 = vlaneseq
  %v236 = vshrl.u32 %v235, 7
  %v237 = vsub.s32 0, %v236
  %v238 = vrot.slane %v78, %v237
  %v239 = vlaneseq
  %v240 = vshrl.u32 %v239, 7
  %v241 = vsub.s32 0, %v240
  %v242 = vrot.slane %v82, %v241
  %v243 = vlaneseq
  %v244 = vshrl.u32 %v243, 7
  %v245 = vsub.s32 0, %v244
  %v246 = vrot.slane %v86, %v245
  %v247 = vlaneseq
  %v248 = vshrl.u32 %v247, 7
  %v249 = vsub.s32 0, %v248
  %v250 = vrot.slane %v90, %v249
  %v251 = vlaneseq
  %v252 = vshrl.u32 %v251, 7
  %v253 = vsub.s32 0, %v252
  %v254 = vrot.slane %v94, %v253
  %v255 = vlaneseq
  %v256 = vshrl.u32 %v255, 7
  %v257 = vsub.s32 0, %v256
  %v258 = vrot.slane %v98, %v257
  %v259 = vlaneseq
  %v260 = vshrl.u32 %v259, 7
  %v261 = vsub.s32 0, %v260
  %v262 = vrot.slane %v102, %v261
  %v263 = vlaneseq
  %v264 = vshrl.u32 %v263, 7
  %v265 = vsub.s32 0, %v264
  %v266 = vrot.slane %v106, %v265
  %v267 = vlaneseq
  %v268 = vshrl.u32 %v267, 7
  %v269 = vsub.s32 0, %v268
  %v270 = vrot.slane %v110, %v269
  %v271 = vlaneseq
  %v272 = vshrl.u32 %v271, 7
  %v273 = vsub.s32 0, %v272
  %v274 = vrot.slane %v114, %v273
  %v275 = vlaneseq
  %v276 = vshrl.u32 %v275, 7
  %v277 = vsub.s32 0, %v276
  %v278 = vrot.slane %v118, %v277
  %v279 = vlaneseq
  %v280 = vshrl.u32 %v279, 7
  %v281 = vsub.s32 0, %v280
  %v282 = vrot.slane %v122, %v281
  %v283 = vlaneseq
  %v284 = vshrl.u32 %v283, 7
  %v285 = vsub.s32 0, %v284
  %v286 = vrot.slane %v126, %v285
  %v287 = vlaneseq
  %v288 = vshrl.u32 %v287, 7
  %v289 = vsub.s32 0, %v288
  %v290 = vrot.slane %v130, %v289
  %v291 = vlaneseq
  %v292 = vshrl.u32 %v291, 7
  %v293 = vsub.s32 0, %v292
  %v294 = vrot.slane %v134, %v293
  %v295 = vlaneseq
  %v296 = vshrl.u32 %v295, 7
  %v297 = vsub.s32 0, %v296
  %v298 = vrot.slane %v138, %v297
  %v299 = vlaneseq
  %v300 = vshrl.u32 %v299, 7
  %v301 = vsub.s32 0, %v300
  %v302 = vrot.slane %v142, %v301
  %v303 = vlaneseq
  %v304 = vshrl.u32 %v303, 7
  %v305 = vsub.s32 0, %v304
  %v306 = vrot.slane %v146, %v305
  %v307 = vlaneseq
  %v308 = vshrl.u32 %v307, 7
  %v309 = vsub.s32 0, %v308
  %v310 = vrot.slane %v150, %v309
  %v311 = vlaneseq
  %v312 = vshrl.u32 %v311, 7
  %v313 = vsub.s32 0, %v312
  %v314 = vrot.slane %v154, %v313
  %v315 = vlaneseq
  %v316 = vshrl.u32 %v315, 7
  %v317 = vsub.s32 0, %v316
  %v318 = vrot.slane %v158, %v317
  %v319 = vlaneseq
  %v320 = vshrl.u32 %v319, 7
  %v321 = vsub.s32 0, %v320
  %v322 = vrot.slane %v162, %v321
  %v323 = vlaneseq
  %v324 = vshrl.u32 %v323, 7
  %v325 = vsub.s32 0, %v324
  %v326 = vrot.slane %v166, %v325
  %v327 = vlaneseq
  %v328 = vshrl.u32 %v327, 7
  %v329 = vsub.s32 0, %v328
  %v330 = vrot.slane %v170, %v329
  %v331 = vlaneseq
  %v332 = vshrl.u32 %v331, 7
  %v333 = vsub.s32 0, %v332
  %v334 = vrot.slane %v174, %v333
  %v335 = vlaneseq
  %v336 = vshrl.u32 %v335, 7
  %v337 = vsub.s32 0, %v336
  %v338 = vrot.slane %v178, %v337
  %v339 = vlaneseq
  %v340 = vshrl.u32 %v339, 7
  %v341 = vsub.s32 0, %v340
  %v342 = vrot.slane %v182, %v341
  %v375 = vcombine.low %v218, %v222
  %v376 = vcombine.low %v226, %v230
  %v378 = vunpack.c.l.s4 1983009808
  %v379 = vunpack.c.0.s8 %v378
  %v380 = vlaneseq
  %v381 = vshrl.u32 %v380, 7
  %v382 = vsub.s32 %v379, %v381
  %v383 = vrot.slane %v375, %v382
  %v385 = vunpack.c.l.s4 1983009808
  %v386 = vunpack.c.0.s8 %v385
  %v387 = vlaneseq
  %v388 = vshrl.u32 %v387, 7
  %v389 = vsub.s32 %v386, %v388
  %v390 = vrot.slane %v376, %v389
  %v391 = vcombine.low %v383, %v390
  %v392 = vcombine.low %v234, %v238
  %v393 = vcombine.low %v242, %v246
  %v395 = vunpack.c.l.s4 1983009808
  %v396 = vunpack.c.0.s8 %v395
  %v397 = vlaneseq
  %v398 = vshrl.u32 %v397, 7
  %v399 = vsub.s32 %v396, %v398
  %v400 = vrot.slane %v392, %v399
  %v402 = vunpack.c.l.s4 1983009808
  %v403 = vunpack.c.0.s8 %v402
  %v404 = vlaneseq
  %v405 = vshrl.u32 %v404, 7
  %v406 = vsub.s32 %v403, %v405
  %v407 = vrot.slane %v393, %v406
  %v408 = vcombine.low %v400, %v407
  %v409 = vcombine.low %v250, %v254
  %v410 = vcombine.low %v258, %v262
  %v412 = vunpack.c.l.s4 1983009808
  %v413 = vunpack.c.0.s8 %v412
  %v414 = vlaneseq
  %v415 = vshrl.u32 %v414, 7
  %v416 = vsub.s32 %v413, %v415
  %v417 = vrot.slane %v409, %v416
  %v419 = vunpack.c.l.s4 1983009808
  %v420 = vunpack.c.0.s8 %v419
  %v421 = vlaneseq
  %v422 = vshrl.u32 %v421, 7
  %v423 = vsub.s32 %v420, %v422
  %v424 = vrot.slane %v410, %v423
  %v425 = vcombine.low %v417, %v424
  %v426 = vcombine.low %v266, %v270
  %v427 = vcombine.low %v274, %v278
  %v429 = vunpack.c.l.s4 1983009808
  %v430 = vunpack.c.0.s8 %v429
  %v431 = vlaneseq
  %v432 = vshrl.u32 %v431, 7
  %v433 = vsub.s32 %v430, %v432
  %v434 = vrot.slane %v426, %v433
  %v436 = vunpack.c.l.s4 1983009808
  %v437 = vunpack.c.0.s8 %v436
  %v438 = vlaneseq
  %v439 = vshrl.u32 %v438, 7
  %v440 = vsub.s32 %v437, %v439
  %v441 = vrot.slane %v427, %v440
  %v442 = vcombine.low %v434, %v441
  %v443 = vcombine.low %v282, %v286
  %v444 = vcombine.low %v290, %v294
  %v446 = vunpack.c.l.s4 1983009808
  %v447 = vunpack.c.0.s8 %v446
  %v448 = vlaneseq
  %v449 = vshrl.u32 %v448, 7
  %v450 = vsub.s32 %v447, %v449
  %v451 = vrot.slane %v443, %v450
  %v453 = vunpack.c.l.s4 1983009808
  %v454 = vunpack.c.0.s8 %v453
  %v455 = vlaneseq
  %v456 = vshrl.u32 %v455, 7
  %v457 = vsub.s32 %v454, %v456
  %v458 = vrot.slane %v444, %v457
  %v459 = vcombine.low %v451, %v458
  %v460 = vcombine.low %v298, %v302
  %v461 = vcombine.low %v306, %v310
  %v463 = vunpack.c.l.s4 1983009808
  %v464 = vunpack.c.0.s8 %v463
  %v465 = vlaneseq
  %v466 = vshrl.u32 %v465, 7
  %v467 = vsub.s32 %v464, %v466
  %v468 = vrot.slane %v460, %v467
  %v470 = vunpack.c.l.s4 1983009808
  %v471 = vunpack.c.0.s8 %v470
  %v472 = vlaneseq
  %v473 = vshrl.u32 %v472, 7
  %v474 = vsub.s32 %v471, %v473
  %v475 = vrot.slane %v461, %v474
  %v476 = vcombine.low %v468, %v475
  %v477 = vcombine.low %v314, %v318
  %v478 = vcombine.low %v322, %v326
  %v480 = vunpack.c.l.s4 1983009808
  %v481 = vunpack.c.0.s8 %v480
  %v482 = vlaneseq
  %v483 = vshrl.u32 %v482, 7
  %v484 = vsub.s32 %v481, %v483
  %v485 = vrot.slane %v477, %v484
  %v487 = vunpack.c.l.s4 1983009808
  %v488 = vunpack.c.0.s8 %v487
  %v489 = vlaneseq
  %v490 = vshrl.u32 %v489, 7
  %v491 = vsub.s32 %v488, %v490
  %v492 = vrot.slane %v478, %v491
  %v493 = vcombine.low %v485, %v492
  %v494 = vcombine.low %v330, %v334
  %v495 = vcombine.low %v338, %v342
  %v497 = vunpack.c.l.s4 1983009808
  %v498 = vunpack.c.0.s8 %v497
  %v499 = vlaneseq
  %v500 = vshrl.u32 %v499, 7
  %v501 = vsub.s32 %v498, %v500
  %v502 = vrot.slane %v494, %v501
  %v504 = vunpack.c.l.s4 1983009808
  %v505 = vunpack.c.0.s8 %v504
  %v506 = vlaneseq
  %v507 = vshrl.u32 %v506, 7
  %v508 = vsub.s32 %v505, %v507
  %v509 = vrot.slane %v495, %v508
  %v510 = vcombine.low %v502, %v509
  %v519 = vmul.f32 %v27, %v391
  %v520 = vmul.f32 %v28, %v408
  %v521 = vmul.f32 %v29, %v425
  %v522 = vmul.f32 %v30, %v442
  %v523 = vmul.f32 %v31, %v459
  %v524 = vmul.f32 %v32, %v476
  %v525 = vmul.f32 %v33, %v493
  %v526 = vmul.f32 %v34, %v510
  %v535 = vcombine.high %v519, %v519
  %v537 = vunpack.c.l.s4 1983009808
  %v538 = vunpack.c.0.s8 %v537
  %v539 = vlaneseq
  %v540 = vshrl.u32 %v539, 7
  %v541 = vsub.s32 %v538, %v540
  %v542 = vrot.slane %v519, %v541
  %v544 = vunpack.c.l.s4 1983009808
  %v545 = vunpack.c.0.s8 %v544
  %v546 = vlaneseq
  %v547 = vshrl.u32 %v546, 7
  %v548 = vsub.s32 %v545, %v547
  %v549 = vrot.slane %v535, %v548
  %v550 = vcombine.high %v542, %v542
  %v551 = vcombine.high %v549, %v549
  %v552 = vcombine.high %v520, %v520
  %v554 = vunpack.c.l.s4 1983009808
  %v555 = vunpack.c.0.s8 %v554
  %v556 = vlaneseq
  %v557 = vshrl.u32 %v556, 7
  %v558 = vsub.s32 %v555, %v557
  %v559 = vrot.slane %v520, %v558
  %v561 = vunpack.c.l.s4 1983009808
  %v562 = vunpack.c.0.s8 %v561
  %v563 = vlaneseq
  %v564 = vshrl.u32 %v563, 7
  %v565 = vsub.s32 %v562, %v564
  %v566 = vrot.slane %v552, %v565
  %v567 = vcombine.high %v559, %v559
  %v568 = vcombine.high %v566, %v566
  %v569 = vcombine.high %v521, %v521
  %v571 = vunpack.c.l.s4 1983009808
  %v572 = vunpack.c.0.s8 %v571
  %v573 = vlaneseq
  %v574 = vshrl.u32 %v573, 7
  %v575 = vsub.s32 %v572, %v574
  %v576 = vrot.slane %v521, %v575
  %v578 = vunpack.c.l.s4 1983009808
  %v579 = vunpack.c.0.s8 %v578
  %v580 = vlaneseq
  %v581 = vshrl.u32 %v580, 7
  %v582 = vsub.s32 %v579, %v581
  %v583 = vrot.slane %v569, %v582
  %v584 = vcombine.high %v576, %v576
  %v585 = vcombine.high %v583, %v583
  %v586 = vcombine.high %v522, %v522
  %v588 = vunpack.c.l.s4 1983009808
  %v589 = vunpack.c.0.s8 %v588
  %v590 = vlaneseq
  %v591 = vshrl.u32 %v590, 7
  %v592 = vsub.s32 %v589, %v591
  %v593 = vrot.slane %v522, %v592
  %v595 = vunpack.c.l.s4 1983009808
  %v596 = vunpack.c.0.s8 %v595
  %v597 = vlaneseq
  %v598 = vshrl.u32 %v597, 7
  %v599 = vsub.s32 %v596, %v598
  %v600 = vrot.slane %v586, %v599
  %v601 = vcombine.high %v593, %v593
  %v602 = vcombine.high %v600, %v600
  %v603 = vcombine.high %v523, %v523
  %v605 = vunpack.c.l.s4 1983009808
  %v606 = vunpack.c.0.s8 %v605
  %v607 = vlaneseq
  %v608 = vshrl.u32 %v607, 7
  %v609 = vsub.s32 %v606, %v608
  %v610 = vrot.slane %v523, %v609
  %v612 = vunpack.c.l.s4 1983009808
  %v613 = vunpack.c.0.s8 %v612
  %v614 = vlaneseq
  %v615 = vshrl.u32 %v614, 7
  %v616 = vsub.s32 %v613, %v615
  %v617 = vrot.slane %v603, %v616
  %v618 = vcombine.high %v610, %v610
  %v619 = vcombine.high %v617, %v617
  %v620 = vcombine.high %v524, %v524
  %v622 = vunpack.c.l.s4 1983009808
  %v623 = vunpack.c.0.s8 %v622
  %v624 = vlaneseq
  %v625 = vshrl.u32 %v624, 7
  %v626 = vsub.s32 %v623, %v625
  %v627 = vrot.slane %v524, %v626
  %v629 = vunpack.c.l.s4 1983009808
  %v630 = vunpack.c.0.s8 %v629
  %v631 = vlaneseq
  %v632 = vshrl.u32 %v631, 7
  %v633 = vsub.s32 %v630, %v632
  %v634 = vrot.slane %v620, %v633
  %v635 = vcombine.high %v627, %v627
  %v636 = vcombine.high %v634, %v634
  %v637 = vcombine.high %v525, %v525
  %v639 = vunpack.c.l.s4 1983009808
  %v640 = vunpack.c.0.s8 %v639
  %v641 = vlaneseq
  %v642 = vshrl.u32 %v641, 7
  %v643 = vsub.s32 %v640, %v642
  %v644 = vrot.slane %v525, %v643
  %v646 = vunpack.c.l.s4 1983009808
  %v647 = vunpack.c.0.s8 %v646
  %v648 = vlaneseq
  %v649 = vshrl.u32 %v648, 7
  %v650 = vsub.s32 %v647, %v649
  %v651 = vrot.slane %v637, %v650
  %v652 = vcombine.high %v644, %v644
  %v653 = vcombine.high %v651, %v651
  %v654 = vcombine.high %v526, %v526
  %v656 = vunpack.c.l.s4 1983009808
  %v657 = vunpack.c.0.s8 %v656
  %v658 = vlaneseq
  %v659 = vshrl.u32 %v658, 7
  %v660 = vsub.s32 %v657, %v659
  %v661 = vrot.slane %v526, %v660
  %v663 = vunpack.c.l.s4 1983009808
  %v664 = vunpack.c.0.s8 %v663
  %v665 = vlaneseq
  %v666 = vshrl.u32 %v665, 7
  %v667 = vsub.s32 %v664, %v666
  %v668 = vrot.slane %v654, %v667
  %v669 = vcombine.high %v661, %v661
  %v670 = vcombine.high %v668, %v668
  %vm703 = vcmask 1041408
  %v704 = vsel %vm703, %v542, 0.0
  %v705 = vsel %vm703, %v550, 0.0
  %v706 = vadd.f32 %v704, %v705
  %v707 = vsel %vm703, %v549, 0.0
  %v708 = vadd.f32 %v706, %v707
  %v709 = vsel %vm703, %v551, 0.0
  %v710 = vadd.f32 %v708, %v709
  %v711 = vsel %vm703, %v559, 0.0
  %v712 = vadd.f32 %v710, %v711
  %v713 = vsel %vm703, %v567, 0.0
  %v714 = vadd.f32 %v712, %v713
  %v715 = vsel %vm703, %v566, 0.0
  %v716 = vadd.f32 %v714, %v715
  %v717 = vsel %vm703, %v568, 0.0
  %v718 = vadd.f32 %v716, %v717
  %v719 = vsel %vm703, %v576, 0.0
  %v720 = vadd.f32 %v718, %v719
  %v721 = vsel %vm703, %v584, 0.0
  %v722 = vadd.f32 %v720, %v721
  %v723 = vsel %vm703, %v583, 0.0
  %v724 = vadd.f32 %v722, %v723
  %v725 = vsel %vm703, %v585, 0.0
  %v726 = vadd.f32 %v724, %v725
  %v727 = vsel %vm703, %v593, 0.0
  %v728 = vadd.f32 %v726, %v727
  %v729 = vsel %vm703, %v601, 0.0
  %v730 = vadd.f32 %v728, %v729
  %v731 = vsel %vm703, %v600, 0.0
  %v732 = vadd.f32 %v730, %v731
  %v733 = vsel %vm703, %v602, 0.0
  %v734 = vadd.f32 %v732, %v733
  %v735 = vsel %vm703, %v610, 0.0
  %v736 = vadd.f32 %v734, %v735
  %v737 = vsel %vm703, %v618, 0.0
  %v738 = vadd.f32 %v736, %v737
  %v739 = vsel %vm703, %v617, 0.0
  %v740 = vadd.f32 %v738, %v739
  %v741 = vsel %vm703, %v619, 0.0
  %v742 = vadd.f32 %v740, %v741
  %v743 = vsel %vm703, %v627, 0.0
  %v744 = vadd.f32 %v742, %v743
  %v745 = vsel %vm703, %v635, 0.0
  %v746 = vadd.f32 %v744, %v745
  %v747 = vsel %vm703, %v634, 0.0
  %v748 = vadd.f32 %v746, %v747
  %v749 = vsel %vm703, %v636, 0.0
  %v750 = vadd.f32 %v748, %v749
  %v751 = vsel %vm703, %v644, 0.0
  %v752 = vadd.f32 %v750, %v751
  %v753 = vsel %vm703, %v652, 0.0
  %v754 = vadd.f32 %v752, %v753
  %v755 = vsel %vm703, %v651, 0.0
  %v756 = vadd.f32 %v754, %v755
  %v757 = vsel %vm703, %v653, 0.0
  %v758 = vadd.f32 %v756, %v757
  %v759 = vsel %vm703, %v661, 0.0
  %v760 = vadd.f32 %v758, %v759
  %v761 = vsel %vm703, %v669, 0.0
  %v762 = vadd.f32 %v760, %v761
  %v763 = vsel %vm703, %v668, 0.0
  %v764 = vadd.f32 %v762, %v763
  %v765 = vsel %vm703, %v670, 0.0
  %v766 = vadd.f32 %v764, %v765
  %767 = vadd.xlane.f32.xlu0 %v766
  %v768 = vpop.xlane.xlu0 %767
  %v769 = vld [vmem:[%s3] sm:$0x3]
  %v770 = vadd.f32 %v769, %v768
  %vm771 = vcmask 1024
  %772 = vst.msk [vmem:[%s3] sm:$0x3] %vm771, %v770
  // Predicated region
  $region18: #{simple_cnn_forward.5} parent=0 // pred_check
    _
  $region19: #{simple_cnn_forward.5} parent=0 // pred_check_branch
    %774 = sbr.rel (0) target = $region21
  $region20: #{simple_cnn_forward.5} parent=0 // pred_region
    _
  $region21: #{simple_cnn_forward.5} parent=0 // pred_fallthru
    _
  // Predicated region
  $region22: #{simple_cnn_forward.5} parent=0 // pred_check
    _
  $region23: #{simple_cnn_forward.5} parent=0 // pred_check_branch
    %776 = sbr.rel (0) target = $region25
  $region24: #{simple_cnn_forward.5} parent=0 // pred_region
    _
  $region25: #{simple_cnn_forward.5} parent=0 // pred_fallthru
    _

// kernel: simple_cnn_forward.3
$region0: #{simple_cnn_forward.3}
  #allocation0 [shape = 'u32[]', space=smem, size = 0x4, offset = 0x4, fixed_abs, tag = 'smem constant byte address 0x4 - core index']
  #allocation1 [shape = 'u32[144,128]{1,0:T(1,128)}', space=vmem, size = 0x12000, scoped, tag = 'internal scratch']
  #allocation2 [shape = 'f32[8,32,32]{2,1,0:T(8,128)}', space=vmem, size = 0x20000, scoped, tag = 'scratch operand']
  %s0 = inlined_call_operand.vmem [shape: bf16[2,2,16,32,27], index: 0, kind: input, shape index: {}]
  %s1 = inlined_call_operand.vmem [shape: bf16[1,1,27,32], index: 1, kind: input, shape index: {}]
  %s2 = inlined_call_operand.vmem [shape: f32[1,32], index: 2, kind: input, shape index: {}]
  %s3 = inlined_call_operand.vmem [shape: bf16[2,16,16,32], index: 3, kind: output, shape index: {}]
  %s4 = sld [smem:[#allocation0]]
  $region45: #{simple_cnn_forward.3} parent=0
    _
  %s6 = ssub.s32 1, %s4
  %s7 = scalar_select 0, %s6, %s4
  loop: start=0, step=1, limit=6
  $region2: #{simple_cnn_forward.3} parent=0 // loop_pre_header
    _
  $region3: #{simple_cnn_forward.3} parent=0 // loop_header
    %s9 = sphi 0, %s13
    %p10 = scmp.ge.s32.totalorder %s9, 6
    %s16 = sphi 0, %s28
    %s17 = sphi 0, %s24
    %s18 = sphi 0, %s16
    %s19 = sphi 0, %s17
    %s20 = sphi 0, %s18
    %s21 = sphi 0, %s19
    %s33 = sphi 0, %s35
    %s36 = sphi 0, %s33
    %s37 = sphi 0, %s36
    %s53 = sphi 0, %s37
    %s57 = sphi 0, %s57
    %s59 = sphi 0, %s57
    %s60 = sphi 0, %s59
    %s74 = sphi 0, %s60
    %s78 = sphi 0, %s78
    %s80 = sphi 0, %s78
    %s81 = sphi 0, %s80
    %s95 = sphi 0, %s81
    %s103 = sphi 0, %s105
    %s106 = sphi 0, %s103
    %s107 = sphi 0, %s106
    %s123 = sphi 0, %s107
  $region4: #{simple_cnn_forward.3} parent=0 // loop_header_branch
    %12 = sbr.rel (%p10) target = $region8
  $region5: #{simple_cnn_forward.3} parent=0 // loop_body
    %s14 = ssub.s32 %s9, 1
    %s15 = ssub.s32 %s9, 2
    %s22 = sadd.s32 1, %s17
    %p23 = scmp.ge.s32.totalorder %s22, 2
    %s24 = scalar_select %p23, 0, %s22
    %s25 = sadd.s32 1, %s16
    %s26 = scalar_select %p23, %s25, %s16
    %p27 = scmp.ge.s32.totalorder %s26, 2
    %s28 = scalar_select %p27, 0, %s26
    %s29 = ssub.s32 %s16, %s28
    %s30 = ssub.s32 %s17, %s24
    %s31 = sor.u32 %s29, %s30
    %p32 = scmp.eq.s32.totalorder %s31, 0
    %s34 = sadd.s32 %s33, 1
    %s35 = scalar_select %p32, %s33, %s34
    %p38 = pneg %p32
    %p39 = scmp.eq.s32.totalorder %s9, 3
    %p40 = por %p38, %p39
    %p41 = scmp.ne.s32.totalorder %s33, %s36
    %p42 = scmp.eq.s32.totalorder %s9, 0
    %p43 = por %p41, %p42
    %p44 = scmp.ne.s32.totalorder %s33, %s36
    %p45 = scmp.eq.s32.totalorder %s14, 3
    %p46 = por %p44, %p45
    %p47 = scmp.ne.s32.totalorder %s36, %s37
    %p48 = scmp.eq.s32.totalorder %s14, 0
    %p49 = por %p47, %p48
    %p50 = scmp.ne.s32.totalorder %s36, %s37
    %p51 = scmp.eq.s32.totalorder %s15, 3
    %p52 = por %p50, %p51
    %p54 = scmp.ne.s32.totalorder %s37, %s53
    %p55 = scmp.eq.s32.totalorder %s15, 0
    %p56 = por %p54, %p55
    %s58 = sadd.s32 %s57, 1
    %p61 = scmp.eq.s32.totalorder %s9, 3
    %p62 = scmp.ne.s32.totalorder %s57, %s59
    %p63 = scmp.eq.s32.totalorder %s9, 0
    %p64 = por %p62, %p63
    %p65 = scmp.ne.s32.totalorder %s57, %s59
    %p66 = scmp.eq.s32.totalorder %s14, 3
    %p67 = por %p65, %p66
    %p68 = scmp.ne.s32.totalorder %s59, %s60
    %p69 = scmp.eq.s32.totalorder %s14, 0
    %p70 = por %p68, %p69
    %p71 = scmp.ne.s32.totalorder %s59, %s60
    %p72 = scmp.eq.s32.totalorder %s15, 3
    %p73 = por %p71, %p72
    %p75 = scmp.ne.s32.totalorder %s60, %s74
    %p76 = scmp.eq.s32.totalorder %s15, 0
    %p77 = por %p75, %p76
    %s79 = sadd.s32 %s78, 1
    %p82 = scmp.eq.s32.totalorder %s9, 3
    %p83 = scmp.ne.s32.totalorder %s78, %s80
    %p84 = scmp.eq.s32.totalorder %s9, 0
    %p85 = por %p83, %p84
    %p86 = scmp.ne.s32.totalorder %s78, %s80
    %p87 = scmp.eq.s32.totalorder %s14, 3
    %p88 = por %p86, %p87
    %p89 = scmp.ne.s32.totalorder %s80, %s81
    %p90 = scmp.eq.s32.totalorder %s14, 0
    %p91 = por %p89, %p90
    %p92 = scmp.ne.s32.totalorder %s80, %s81
    %p93 = scmp.eq.s32.totalorder %s15, 3
    %p94 = por %p92, %p93
    %p96 = scmp.ne.s32.totalorder %s81, %s95
    %p97 = scmp.eq.s32.totalorder %s15, 0
    %p98 = por %p96, %p97
    %s99 = ssub.s32 %s16, %s28
    %s100 = ssub.s32 %s17, %s24
    %s101 = sor.u32 %s99, %s100
    %p102 = scmp.eq.s32.totalorder %s101, 0
    %s104 = sadd.s32 %s103, 1
    %s105 = scalar_select %p102, %s103, %s104
    %p108 = pneg %p102
    %p109 = scmp.eq.s32.totalorder %s9, 3
    %p110 = por %p108, %p109
    %p111 = scmp.ne.s32.totalorder %s103, %s106
    %p112 = scmp.eq.s32.totalorder %s9, 0
    %p113 = por %p111, %p112
    %p114 = scmp.ne.s32.totalorder %s103, %s106
    %p115 = scmp.eq.s32.totalorder %s14, 3
    %p116 = por %p114, %p115
    %p117 = scmp.ne.s32.totalorder %s106, %s107
    %p118 = scmp.eq.s32.totalorder %s14, 0
    %p119 = por %p117, %p118
    %p120 = scmp.ne.s32.totalorder %s106, %s107
    %p121 = scmp.eq.s32.totalorder %s15, 3
    %p122 = por %p120, %p121
    %p124 = scmp.ne.s32.totalorder %s107, %s123
    %p125 = scmp.eq.s32.totalorder %s15, 0
    %p126 = por %p124, %p125
    %p127 = scmp.le.s32.totalorder 1, %s9
    %p128 = scmp.lt.s32.totalorder %s9, 5
    %p129 = pnand %p127, %p128
    %p130 = pneg %p129
    // Predicated region
    $region9: #{simple_cnn_forward.3} parent=5 // pred_check
      _
    $region10: #{simple_cnn_forward.3} parent=5 // pred_check_branch
      %132 = sbr.rel (%p129) target = $region12
    $region11: #{simple_cnn_forward.3} parent=5 // pred_region
      %s133 = ssub.s32 %s9, 1
      // Predicated region
      $region13: #{simple_cnn_forward.3} parent=11 // pred_check
        %p134 = pneg %p70
      $region14: #{simple_cnn_forward.3} parent=11 // pred_check_branch
        %136 = sbr.rel (%p134) target = $region16
      $region15: #{simple_cnn_forward.3} parent=11 // pred_region
        _
      $region16: #{simple_cnn_forward.3} parent=11 // pred_fallthru
        _
      // Predicated region
      $region17: #{simple_cnn_forward.3} parent=11 // pred_check
        %p137 = pneg %p91
      $region18: #{simple_cnn_forward.3} parent=11 // pred_check_branch
        %139 = sbr.rel (%p137) target = $region20
      $region19: #{simple_cnn_forward.3} parent=11 // pred_region
        _
      $region20: #{simple_cnn_forward.3} parent=11 // pred_fallthru
        _
    $region12: #{simple_cnn_forward.3} parent=5 // pred_fallthru
      _
    %p140 = scmp.lt.s32.totalorder %s9, 4
    // Predicated region
    $region21: #{simple_cnn_forward.3} parent=5 // pred_check
      %p141 = pneg %p140
    $region22: #{simple_cnn_forward.3} parent=5 // pred_check_branch
      %143 = sbr.rel (%p141) target = $region24
    $region23: #{simple_cnn_forward.3} parent=5 // pred_region
      // Predicated region
      $region25: #{simple_cnn_forward.3} parent=23 // pred_check
        %p144 = pneg %p43
      $region26: #{simple_cnn_forward.3} parent=23 // pred_check_branch
        %146 = sbr.rel (%p144) target = $region28
      $region27: #{simple_cnn_forward.3} parent=23 // pred_region
        %p147 = scmp.lt.s32.totalorder %s16, 1
        %s148 = scalar_select %p147, %s16, 1
        %p149 = scmp.lt.s32.totalorder %s17, 1
        %s150 = scalar_select %p149, %s17, 1
        %s151 = smul.addr %s150, 64
        %s152 = smul.addr %s148, 128
        %s153 = sadd.s32 %s151, %s152
        %s154 = smul.addr %s153, 4
        %s155 = scalar_lea.vmem %s0, %s154
      $region28: #{simple_cnn_forward.3} parent=23 // pred_fallthru
        _
    $region24: #{simple_cnn_forward.3} parent=5 // pred_fallthru
      _
    %p156 = scmp.le.s32.totalorder 1, %s9
    %p157 = scmp.lt.s32.totalorder %s9, 5
    %p158 = pnand %p156, %p157
    %p159 = pneg %p158
    // Predicated region
    $region29: #{simple_cnn_forward.3} parent=5 // pred_check
      _
    $region30: #{simple_cnn_forward.3} parent=5 // pred_check_branch
      %161 = sbr.rel (%p158) target = $region32
    $region31: #{simple_cnn_forward.3} parent=5 // pred_region
      %s162 = ssub.s32 %s9, 1
      %p163 = scmp.lt.s32.totalorder %s18, 1
      %s164 = scalar_select %p163, %s18, 1
      %p165 = scmp.lt.s32.totalorder %s19, 1
      %s166 = scalar_select %p165, %s19, 1
      %s167 = smul.addr %s166, 64
      %s168 = smul.addr %s164, 128
      %s169 = sadd.s32 %s167, %s168
      %s170 = smul.addr %s169, 4
      %s171 = scalar_lea.vmem %s0, %s170
      %p172 = pneg %p49
      %p173 = pneg %p46
      %p174 = pneg %p70
      %p175 = pneg %p67
      %p176 = pneg %p91
      %p177 = pneg %p88
      %p178 = pneg %p119
      %p179 = pneg %p116
      %s180 = smul.u32 8, %s19
      %p181 = scmp.lt.s32.totalorder %s18, 1
      %s182 = scalar_select %p181, %s18, 1
      %p183 = scmp.lt.s32.totalorder %s180, 15
      %s184 = scalar_select %p183, %s180, 15
      %s185 = smul.addr %s184, 2
      %s186 = smul.addr %s182, 32
      %s187 = sadd.s32 %s185, %s186
      %s188 = smul.addr %s187, 4
      %s189 = scalar_lea.vmem %s3, %s188
      %p190 = scmp.lt.s32.totalorder %s18, 1
      %s191 = scalar_select %p190, %s18, 1
      %p192 = scmp.lt.s32.totalorder %s19, 1
      %s193 = scalar_select %p192, %s19, 1
      %s194 = smul.addr %s193, 64
      %s195 = smul.addr %s191, 128
      %s196 = sadd.s32 %s194, %s195
      %s197 = smul.addr %s196, 4
      %s198 = scalar_lea.vmem %s0, %s197
      %s199 = smul.u32 8, %s19
      %p200 = scmp.lt.s32.totalorder %s18, 1
      %s201 = scalar_select %p200, %s18, 1
      %p202 = scmp.lt.s32.totalorder %s199, 15
      %s203 = scalar_select %p202, %s199, 15
      %s204 = smul.addr %s203, 2
      %s205 = smul.addr %s201, 32
      %s206 = sadd.s32 %s204, %s205
      %s207 = smul.addr %s206, 4
      %s208 = scalar_lea.vmem %s3, %s207
      %s209 = smul.u32 8, %s19
      %v211 = vld [vmem:[%s198] sm:$0xf]
      %v212 = vld [vmem:[%s198 + $0x4] sm:$0xf]
      %v213 = vld [vmem:[%s198 + $0x8] sm:$0xf]
      %v214 = vld [vmem:[%s198 + $0xc] sm:$0xf]
      %v215 = vld [vmem:[%s198 + $0x10] sm:$0xf]
      %v216 = vld [vmem:[%s198 + $0x14] sm:$0xf]
      %v217 = vld [vmem:[%s198 + $0x18] sm:$0xf]
      %v218 = vld [vmem:[%s198 + $0x1c] sm:$0xf]
      %v219 = vld [vmem:[%s198 + $0x20] sm:$0xf]
      %v220 = vld [vmem:[%s198 + $0x24] sm:$0xf]
      %v221 = vld [vmem:[%s198 + $0x28] sm:$0xf]
      %v222 = vld [vmem:[%s198 + $0x2c] sm:$0xf]
      %v223 = vld [vmem:[%s198 + $0x30] sm:$0xf]
      %v224 = vld [vmem:[%s198 + $0x34] sm:$0xf]
      %v225 = vld [vmem:[%s198 + $0x38] sm:$0xf]
      %v226 = vld [vmem:[%s198 + $0x3c] sm:$0xf]
      %v227 = vld [vmem:[%s198 + $0x40] sm:$0xf]
      %v228 = vld [vmem:[%s198 + $0x44] sm:$0xf]
      %v229 = vld [vmem:[%s198 + $0x48] sm:$0xf]
      %v230 = vld [vmem:[%s198 + $0x4c] sm:$0xf]
      %v231 = vld [vmem:[%s198 + $0x50] sm:$0xf]
      %v232 = vld [vmem:[%s198 + $0x54] sm:$0xf]
      %v233 = vld [vmem:[%s198 + $0x58] sm:$0xf]
      %v234 = vld [vmem:[%s198 + $0x5c] sm:$0xf]
      %v235 = vld [vmem:[%s198 + $0x60] sm:$0xf]
      %v236 = vld [vmem:[%s198 + $0x64] sm:$0xf]
      %v237 = vld [vmem:[%s198 + $0x68] sm:$0xf]
      %v238 = vld [vmem:[%s198 + $0x6c] sm:$0xf]
      %v239 = vld [vmem:[%s198 + $0x70] sm:$0xf]
      %v240 = vld [vmem:[%s198 + $0x74] sm:$0xf]
      %v241 = vld [vmem:[%s198 + $0x78] sm:$0xf]
      %v242 = vld [vmem:[%s198 + $0x7c] sm:$0xf]
      %v243 = vld [vmem:[%s198 + $0x80] sm:$0xf]
      %v244 = vld [vmem:[%s198 + $0x84] sm:$0xf]
      %v245 = vld [vmem:[%s198 + $0x88] sm:$0xf]
      %v246 = vld [vmem:[%s198 + $0x8c] sm:$0xf]
      %v247 = vld [vmem:[%s198 + $0x90] sm:$0xf]
      %v248 = vld [vmem:[%s198 + $0x94] sm:$0xf]
      %v249 = vld [vmem:[%s198 + $0x98] sm:$0xf]
      %v250 = vld [vmem:[%s198 + $0x9c] sm:$0xf]
      %v251 = vld [vmem:[%s198 + $0xa0] sm:$0xf]
      %v252 = vld [vmem:[%s198 + $0xa4] sm:$0xf]
      %v253 = vld [vmem:[%s198 + $0xa8] sm:$0xf]
      %v254 = vld [vmem:[%s198 + $0xac] sm:$0xf]
      %v255 = vld [vmem:[%s198 + $0xb0] sm:$0xf]
      %v256 = vld [vmem:[%s198 + $0xb4] sm:$0xf]
      %v257 = vld [vmem:[%s198 + $0xb8] sm:$0xf]
      %v258 = vld [vmem:[%s198 + $0xbc] sm:$0xf]
      %v259 = vld [vmem:[%s198 + $0xc0] sm:$0xf]
      %v260 = vld [vmem:[%s198 + $0xc4] sm:$0xf]
      %v261 = vld [vmem:[%s198 + $0xc8] sm:$0xf]
      %v262 = vld [vmem:[%s198 + $0xcc] sm:$0xf]
      %v263 = vld [vmem:[%s198 + $0xd0] sm:$0xf]
      %v264 = vld [vmem:[%s198 + $0xd4] sm:$0xf]
      %v265 = vld [vmem:[%s198 + $0xd8] sm:$0xf]
      %v266 = vld [vmem:[%s198 + $0xdc] sm:$0xf]
      %v267 = vld [vmem:[%s198 + $0xe0] sm:$0xf]
      %v268 = vld [vmem:[%s198 + $0xe4] sm:$0xf]
      %v269 = vld [vmem:[%s198 + $0xe8] sm:$0xf]
      %v270 = vld [vmem:[%s198 + $0xec] sm:$0xf]
      %v271 = vld [vmem:[%s198 + $0xf0] sm:$0xf]
      %v272 = vld [vmem:[%s198 + $0xf4] sm:$0xf]
      %v273 = vld [vmem:[%s198 + $0xf8] sm:$0xf]
      %v274 = vld [vmem:[%s198 + $0xfc] sm:$0xf]
      %v275 = vld [vmem:[%s1] sm:$0xf]
      %v276 = vld [vmem:[%s1 + $0x4] sm:$0xf]
      %v277 = vld [vmem:[%s1 + $0x8] sm:$0xf]
      %v278 = vld [vmem:[%s1 + $0xc] sm:$0x3]
      %v279 = vld [vmem:[%s2] sm:$0x1]
      %v281 = vlaneseq
      %v282 = vshrl.u32 %v281, 7
      %v283 = vsub.s32 0, %v282
      %v284 = vrot.slane %v279, %v283
      %v350 = vunpack.c.l.b16 %v211
      %v351 = vunpack.c.l.b16 %v212
      %v352 = vunpack.c.l.b16 %v213
      %v353 = vunpack.c.l.b16 %v214
      %v354 = vunpack.c.l.b16 %v215
      %v355 = vunpack.c.l.b16 %v216
      %v356 = vunpack.c.l.b16 %v217
      %v357 = vunpack.c.l.b16 %v218
      %v358 = vunpack.c.l.b16 %v219
      %v359 = vunpack.c.l.b16 %v220
      %v360 = vunpack.c.l.b16 %v221
      %v361 = vunpack.c.l.b16 %v222
      %v362 = vunpack.c.l.b16 %v223
      %v363 = vunpack.c.l.b16 %v224
      %v364 = vunpack.c.l.b16 %v225
      %v365 = vunpack.c.l.b16 %v226
      %v366 = vunpack.c.l.b16 %v227
      %v367 = vunpack.c.l.b16 %v228
      %v368 = vunpack.c.l.b16 %v229
      %v369 = vunpack.c.l.b16 %v230
      %v370 = vunpack.c.l.b16 %v231
      %v371 = vunpack.c.l.b16 %v232
      %v372 = vunpack.c.l.b16 %v233
      %v373 = vunpack.c.l.b16 %v234
      %v374 = vunpack.c.l.b16 %v235
      %v375 = vunpack.c.l.b16 %v236
      %v376 = vunpack.c.l.b16 %v237
      %v377 = vunpack.c.l.b16 %v238
      %v378 = vunpack.c.l.b16 %v239
      %v379 = vunpack.c.l.b16 %v240
      %v380 = vunpack.c.l.b16 %v241
      %v381 = vunpack.c.l.b16 %v242
      %v382 = vunpack.c.l.b16 %v243
      %v383 = vunpack.c.l.b16 %v244
      %v384 = vunpack.c.l.b16 %v245
      %v385 = vunpack.c.l.b16 %v246
      %v386 = vunpack.c.l.b16 %v247
      %v387 = vunpack.c.l.b16 %v248
      %v388 = vunpack.c.l.b16 %v249
      %v389 = vunpack.c.l.b16 %v250
      %v390 = vunpack.c.l.b16 %v251
      %v391 = vunpack.c.l.b16 %v252
      %v392 = vunpack.c.l.b16 %v253
      %v393 = vunpack.c.l.b16 %v254
      %v394 = vunpack.c.l.b16 %v255
      %v395 = vunpack.c.l.b16 %v256
      %v396 = vunpack.c.l.b16 %v257
      %v397 = vunpack.c.l.b16 %v258
      %v398 = vunpack.c.l.b16 %v259
      %v399 = vunpack.c.l.b16 %v260
      %v400 = vunpack.c.l.b16 %v261
      %v401 = vunpack.c.l.b16 %v262
      %v402 = vunpack.c.l.b16 %v263
      %v403 = vunpack.c.l.b16 %v264
      %v404 = vunpack.c.l.b16 %v265
      %v405 = vunpack.c.l.b16 %v266
      %v406 = vunpack.c.l.b16 %v267
      %v407 = vunpack.c.l.b16 %v268
      %v408 = vunpack.c.l.b16 %v269
      %v409 = vunpack.c.l.b16 %v270
      %v410 = vunpack.c.l.b16 %v271
      %v411 = vunpack.c.l.b16 %v272
      %v412 = vunpack.c.l.b16 %v273
      %v413 = vunpack.c.l.b16 %v274
      %v414 = vpack.c.b16 %v351, %v350
      %v415 = vpack.c.b16 %v353, %v352
      %v416 = vpack.c.b16 %v355, %v354
      %v417 = vpack.c.b16 %v357, %v356
      %v418 = vpack.c.b16 %v359, %v358
      %v419 = vpack.c.b16 %v361, %v360
      %v420 = vpack.c.b16 %v363, %v362
      %v421 = vpack.c.b16 %v365, %v364
      %v422 = vpack.c.b16 %v367, %v366
      %v423 = vpack.c.b16 %v369, %v368
      %v424 = vpack.c.b16 %v371, %v370
      %v425 = vpack.c.b16 %v373, %v372
      %v426 = vpack.c.b16 %v375, %v374
      %v427 = vpack.c.b16 %v377, %v376
      %v428 = vpack.c.b16 %v379, %v378
      %v429 = vpack.c.b16 %v381, %v380
      %v430 = vpack.c.b16 %v383, %v382
      %v431 = vpack.c.b16 %v385, %v384
      %v432 = vpack.c.b16 %v387, %v386
      %v433 = vpack.c.b16 %v389, %v388
      %v434 = vpack.c.b16 %v391, %v390
      %v435 = vpack.c.b16 %v393, %v392
      %v436 = vpack.c.b16 %v395, %v394
      %v437 = vpack.c.b16 %v397, %v396
      %v438 = vpack.c.b16 %v399, %v398
      %v439 = vpack.c.b16 %v401, %v400
      %v440 = vpack.c.b16 %v403, %v402
      %v441 = vpack.c.b16 %v405, %v404
      %v442 = vpack.c.b16 %v407, %v406
      %v443 = vpack.c.b16 %v409, %v408
      %v444 = vpack.c.b16 %v411, %v410
      %v445 = vpack.c.b16 %v413, %v412
      %v450 = vunpack.c.l.b16 %v275
      %v451 = vunpack.c.l.b16 %v276
      %v452 = vunpack.c.l.b16 %v277
      %v453 = vunpack.c.l.b16 %v278
      %v454 = vpack.c.b16 %v451, %v450
      %v455 = vpack.c.b16 %v453, %v452
      %vm457 = vcmask 220160
      %v459 = vsel %vm457, %v414, 0
      %v462 = vsel %vm457, %v415, 0
      %v465 = vsel %vm457, %v416, 0
      %v468 = vsel %vm457, %v417, 0
      %v471 = vsel %vm457, %v418, 0
      %v474 = vsel %vm457, %v419, 0
      %v477 = vsel %vm457, %v420, 0
      %v480 = vsel %vm457, %v421, 0
      %v483 = vsel %vm457, %v422, 0
      %v486 = vsel %vm457, %v423, 0
      %v489 = vsel %vm457, %v424, 0
      %v492 = vsel %vm457, %v425, 0
      %v495 = vsel %vm457, %v426, 0
      %v498 = vsel %vm457, %v427, 0
      %v501 = vsel %vm457, %v428, 0
      %v504 = vsel %vm457, %v429, 0
      %v507 = vsel %vm457, %v430, 0
      %v510 = vsel %vm457, %v431, 0
      %v513 = vsel %vm457, %v432, 0
      %v516 = vsel %vm457, %v433, 0
      %v519 = vsel %vm457, %v434, 0
      %v522 = vsel %vm457, %v435, 0
      %v525 = vsel %vm457, %v436, 0
      %v528 = vsel %vm457, %v437, 0
      %v531 = vsel %vm457, %v438, 0
      %v534 = vsel %vm457, %v439, 0
      %v537 = vsel %vm457, %v440, 0
      %v540 = vsel %vm457, %v441, 0
      %v543 = vsel %vm457, %v442, 0
      %v546 = vsel %vm457, %v443, 0
      %v549 = vsel %vm457, %v444, 0
      %v552 = vsel %vm457, %v445, 0
      %vm554 = vcmask 1044480
      %vm555 = vcmask 1045504
      %v556 = vsel %vm554, 4294967295, 65535
      %v557 = vsel %vm555, %v556, 0
      %v559 = vand.u32 %v455, %v557
      %561 = vmatprep.subr.bf16.mxu0 0
      %562 = vmatpush1.bf16.msra.mxu0 %v454
      %563 = vmatprep.subr.bf16.mxu0 0
      %564 = vmatpush1.bf16.msra.mxu0 %v559
      %565 = vmatprep.subr.bf16.mxu0 0
      %566 = vmatpush1.bf16.msra.mxu0 0
      %567 = vmatprep.subr.bf16.mxu0 0
      %568 = vmatpush1.bf16.msra.mxu0 0
      %569 = vmatprep.subr.bf16.mxu0 0
      %570 = vmatpush1.bf16.msra.mxu0 0
      %571 = vmatprep.subr.bf16.mxu0 0
      %572 = vmatpush1.bf16.msra.mxu0 0
      %573 = vmatprep.subr.bf16.mxu0 0
      %574 = vmatpush1.bf16.msra.mxu0 0
      %575 = vmatprep.subr.bf16.mxu0 0
      %576 = vmatpush1.bf16.msra.mxu0 0
      %577 = vmatprep.subr.bf16.mxu0 0
      %578 = vmatpush1.bf16.msra.mxu0 0
      %579 = vmatprep.subr.bf16.mxu0 0
      %580 = vmatpush1.bf16.msra.mxu0 0
      %581 = vmatprep.subr.bf16.mxu0 0
      %582 = vmatpush1.bf16.msra.mxu0 0
      %583 = vmatprep.subr.bf16.mxu0 0
      %584 = vmatpush1.bf16.msra.mxu0 0
      %585 = vmatprep.subr.bf16.mxu0 0
      %586 = vmatpush1.bf16.msra.mxu0 0
      %587 = vmatprep.subr.bf16.mxu0 0
      %588 = vmatpush1.bf16.msra.mxu0 0
      %589 = vmatprep.subr.bf16.mxu0 0
      %590 = vmatpush1.bf16.msra.mxu0 0
      %591 = vmatprep.subr.bf16.mxu0 0
      %592 = vmatpush1.bf16.msra.mxu0 0
      %593 = vmatprep.mubr.bf16.mxu0 0
      %594 = vmatmul.mubr.bf16.gmra.mrb[0].mxu0 %v459
      %v595 = vpop.f32.mrb[0].mxu0
      %v596 = vadd.f32 %v284, %v595
      %v597 = vpop.f32.mrb[0].mxu0
      %v598 = vpop.f32.mrb[0].mxu0
      %v599 = vadd.f32 %v284, %v598
      %v600 = vpop.f32.mrb[0].mxu0
      %601 = vmatprep.mubr.bf16.mxu0 0
      %602 = vmatmul.mubr.bf16.gmra.mrb[0].mxu0 %v462
      %v603 = vpop.f32.mrb[0].mxu0
      %v604 = vadd.f32 %v284, %v603
      %v605 = vpop.f32.mrb[0].mxu0
      %v606 = vpop.f32.mrb[0].mxu0
      %v607 = vadd.f32 %v284, %v606
      %v608 = vpop.f32.mrb[0].mxu0
      %609 = vmatprep.mubr.bf16.mxu0 0
      %610 = vmatmul.mubr.bf16.gmra.mrb[0].mxu0 %v465
      %v611 = vpop.f32.mrb[0].mxu0
      %v612 = vadd.f32 %v284, %v611
      %v613 = vpop.f32.mrb[0].mxu0
      %v614 = vpop.f32.mrb[0].mxu0
      %v615 = vadd.f32 %v284, %v614
      %v616 = vpop.f32.mrb[0].mxu0
      %617 = vmatprep.mubr.bf16.mxu0 0
      %618 = vmatmul.mubr.bf16.gmra.mrb[0].mxu0 %v468
      %v619 = vpop.f32.mrb[0].mxu0
      %v620 = vadd.f32 %v284, %v619
      %v621 = vpop.f32.mrb[0].mxu0
      %v622 = vpop.f32.mrb[0].mxu0
      %v623 = vadd.f32 %v284, %v622
      %v624 = vpop.f32.mrb[0].mxu0
      %625 = vmatprep.mubr.bf16.mxu0 0
      %626 = vmatmul.mubr.bf16.gmra.mrb[0].mxu0 %v471
      %v627 = vpop.f32.mrb[0].mxu0
      %v628 = vadd.f32 %v284, %v627
      %v629 = vpop.f32.mrb[0].mxu0
      %v630 = vpop.f32.mrb[0].mxu0
      %v631 = vadd.f32 %v284, %v630
      %v632 = vpop.f32.mrb[0].mxu0
      %633 = vmatprep.mubr.bf16.mxu0 0
      %634 = vmatmul.mubr.bf16.gmra.mrb[0].mxu0 %v474
      %v635 = vpop.f32.mrb[0].mxu0
      %v636 = vadd.f32 %v284, %v635
      %v637 = vpop.f32.mrb[0].mxu0
      %v638 = vpop.f32.mrb[0].mxu0
      %v639 = vadd.f32 %v284, %v638
      %v640 = vpop.f32.mrb[0].mxu0
      %641 = vmatprep.mubr.bf16.mxu0 0
      %642 = vmatmul.mubr.bf16.gmra.mrb[0].mxu0 %v477
      %v643 = vpop.f32.mrb[0].mxu0
      %v644 = vadd.f32 %v284, %v643
      %v645 = vpop.f32.mrb[0].mxu0
      %v646 = vpop.f32.mrb[0].mxu0
      %v647 = vadd.f32 %v284, %v646
      %v648 = vpop.f32.mrb[0].mxu0
      %649 = vmatprep.mubr.bf16.mxu0 0
      %650 = vmatmul.mubr.bf16.gmra.mrb[0].mxu0 %v480
      %v651 = vpop.f32.mrb[0].mxu0
      %v652 = vadd.f32 %v284, %v651
      %v653 = vpop.f32.mrb[0].mxu0
      %v654 = vpop.f32.mrb[0].mxu0
      %v655 = vadd.f32 %v284, %v654
      %v656 = vpop.f32.mrb[0].mxu0
      %657 = vmatprep.mubr.bf16.mxu0 0
      %658 = vmatmul.mubr.bf16.gmra.mrb[0].mxu0 %v483
      %v659 = vpop.f32.mrb[0].mxu0
      %v660 = vadd.f32 %v284, %v659
      %v661 = vpop.f32.mrb[0].mxu0
      %v662 = vpop.f32.mrb[0].mxu0
      %v663 = vadd.f32 %v284, %v662
      %v664 = vpop.f32.mrb[0].mxu0
      %665 = vmatprep.mubr.bf16.mxu0 0
      %666 = vmatmul.mubr.bf16.gmra.mrb[0].mxu0 %v486
      %v667 = vpop.f32.mrb[0].mxu0
      %v668 = vadd.f32 %v284, %v667
      %v669 = vpop.f32.mrb[0].mxu0
      %v670 = vpop.f32.mrb[0].mxu0
      %v671 = vadd.f32 %v284, %v670
      %v672 = vpop.f32.mrb[0].mxu0
      %673 = vmatprep.mubr.bf16.mxu0 0
      %674 = vmatmul.mubr.bf16.gmra.mrb[0].mxu0 %v489
      %v675 = vpop.f32.mrb[0].mxu0
      %v676 = vadd.f32 %v284, %v675
      %v677 = vpop.f32.mrb[0].mxu0
      %v678 = vpop.f32.mrb[0].mxu0
      %v679 = vadd.f32 %v284, %v678
      %v680 = vpop.f32.mrb[0].mxu0
      %681 = vmatprep.mubr.bf16.mxu0 0
      %682 = vmatmul.mubr.bf16.gmra.mrb[0].mxu0 %v492
      %v683 = vpop.f32.mrb[0].mxu0
      %v684 = vadd.f32 %v284, %v683
      %v685 = vpop.f32.mrb[0].mxu0
      %v686 = vpop.f32.mrb[0].mxu0
      %v687 = vadd.f32 %v284, %v686
      %v688 = vpop.f32.mrb[0].mxu0
      %689 = vmatprep.mubr.bf16.mxu0 0
      %690 = vmatmul.mubr.bf16.gmra.mrb[0].mxu0 %v495
      %v691 = vpop.f32.mrb[0].mxu0
      %v692 = vadd.f32 %v284, %v691
      %v693 = vpop.f32.mrb[0].mxu0
      %v694 = vpop.f32.mrb[0].mxu0
      %v695 = vadd.f32 %v284, %v694
      %v696 = vpop.f32.mrb[0].mxu0
      %697 = vmatprep.mubr.bf16.mxu0 0
      %698 = vmatmul.mubr.bf16.gmra.mrb[0].mxu0 %v498
      %v699 = vpop.f32.mrb[0].mxu0
      %v700 = vadd.f32 %v284, %v699
      %v701 = vpop.f32.mrb[0].mxu0
      %v702 = vpop.f32.mrb[0].mxu0
      %v703 = vadd.f32 %v284, %v702
      %v704 = vpop.f32.mrb[0].mxu0
      %705 = vmatprep.mubr.bf16.mxu0 0
      %706 = vmatmul.mubr.bf16.gmra.mrb[0].mxu0 %v501
      %v707 = vpop.f32.mrb[0].mxu0
      %v708 = vadd.f32 %v284, %v707
      %v709 = vpop.f32.mrb[0].mxu0
      %v710 = vpop.f32.mrb[0].mxu0
      %v711 = vadd.f32 %v284, %v710
      %v712 = vpop.f32.mrb[0].mxu0
      %713 = vmatprep.mubr.bf16.mxu0 0
      %714 = vmatmul.mubr.bf16.gmra.mrb[0].mxu0 %v504
      %v715 = vpop.f32.mrb[0].mxu0
      %v716 = vadd.f32 %v284, %v715
      %v717 = vpop.f32.mrb[0].mxu0
      %v718 = vpop.f32.mrb[0].mxu0
      %v719 = vadd.f32 %v284, %v718
      %v720 = vpop.f32.mrb[0].mxu0
      %721 = vmatprep.mubr.bf16.mxu0 0
      %722 = vmatmul.mubr.bf16.gmra.mrb[0].mxu0 %v507
      %v723 = vpop.f32.mrb[0].mxu0
      %v724 = vadd.f32 %v284, %v723
      %v725 = vpop.f32.mrb[0].mxu0
      %v726 = vpop.f32.mrb[0].mxu0
      %v727 = vadd.f32 %v284, %v726
      %v728 = vpop.f32.mrb[0].mxu0
      %729 = vmatprep.mubr.bf16.mxu0 0
      %730 = vmatmul.mubr.bf16.gmra.mrb[0].mxu0 %v510
      %v731 = vpop.f32.mrb[0].mxu0
      %v732 = vadd.f32 %v284, %v731
      %v733 = vpop.f32.mrb[0].mxu0
      %v734 = vpop.f32.mrb[0].mxu0
      %v735 = vadd.f32 %v284, %v734
      %v736 = vpop.f32.mrb[0].mxu0
      %737 = vmatprep.mubr.bf16.mxu0 0
      %738 = vmatmul.mubr.bf16.gmra.mrb[0].mxu0 %v513
      %v739 = vpop.f32.mrb[0].mxu0
      %v740 = vadd.f32 %v284, %v739
      %v741 = vpop.f32.mrb[0].mxu0
      %v742 = vpop.f32.mrb[0].mxu0
      %v743 = vadd.f32 %v284, %v742
      %v744 = vpop.f32.mrb[0].mxu0
      %745 = vmatprep.mubr.bf16.mxu0 0
      %746 = vmatmul.mubr.bf16.gmra.mrb[0].mxu0 %v516
      %v747 = vpop.f32.mrb[0].mxu0
      %v748 = vadd.f32 %v284, %v747
      %v749 = vpop.f32.mrb[0].mxu0
      %v750 = vpop.f32.mrb[0].mxu0
      %v751 = vadd.f32 %v284, %v750
      %v752 = vpop.f32.mrb[0].mxu0
      %753 = vmatprep.mubr.bf16.mxu0 0
      %754 = vmatmul.mubr.bf16.gmra.mrb[0].mxu0 %v519
      %v755 = vpop.f32.mrb[0].mxu0
      %v756 = vadd.f32 %v284, %v755
      %v757 = vpop.f32.mrb[0].mxu0
      %v758 = vpop.f32.mrb[0].mxu0
      %v759 = vadd.f32 %v284, %v758
      %v760 = vpop.f32.mrb[0].mxu0
      %761 = vmatprep.mubr.bf16.mxu0 0
      %762 = vmatmul.mubr.bf16.gmra.mrb[0].mxu0 %v522
      %v763 = vpop.f32.mrb[0].mxu0
      %v764 = vadd.f32 %v284, %v763
      %v765 = vpop.f32.mrb[0].mxu0
      %v766 = vpop.f32.mrb[0].mxu0
      %v767 = vadd.f32 %v284, %v766
      %v768 = vpop.f32.mrb[0].mxu0
      %769 = vmatprep.mubr.bf16.mxu0 0
      %770 = vmatmul.mubr.bf16.gmra.mrb[0].mxu0 %v525
      %v771 = vpop.f32.mrb[0].mxu0
      %v772 = vadd.f32 %v284, %v771
      %v773 = vpop.f32.mrb[0].mxu0
      %v774 = vpop.f32.mrb[0].mxu0
      %v775 = vadd.f32 %v284, %v774
      %v776 = vpop.f32.mrb[0].mxu0
      %777 = vmatprep.mubr.bf16.mxu0 0
      %778 = vmatmul.mubr.bf16.gmra.mrb[0].mxu0 %v528
      %v779 = vpop.f32.mrb[0].mxu0
      %v780 = vadd.f32 %v284, %v779
      %v781 = vpop.f32.mrb[0].mxu0
      %v782 = vpop.f32.mrb[0].mxu0
      %v783 = vadd.f32 %v284, %v782
      %v784 = vpop.f32.mrb[0].mxu0
      %785 = vmatprep.mubr.bf16.mxu0 0
      %786 = vmatmul.mubr.bf16.gmra.mrb[0].mxu0 %v531
      %v787 = vpop.f32.mrb[0].mxu0
      %v788 = vadd.f32 %v284, %v787
      %v789 = vpop.f32.mrb[0].mxu0
      %v790 = vpop.f32.mrb[0].mxu0
      %v791 = vadd.f32 %v284, %v790
      %v792 = vpop.f32.mrb[0].mxu0
      %793 = vmatprep.mubr.bf16.mxu0 0
      %794 = vmatmul.mubr.bf16.gmra.mrb[0].mxu0 %v534
      %v795 = vpop.f32.mrb[0].mxu0
      %v796 = vadd.f32 %v284, %v795
      %v797 = vpop.f32.mrb[0].mxu0
      %v798 = vpop.f32.mrb[0].mxu0
      %v799 = vadd.f32 %v284, %v798
      %v800 = vpop.f32.mrb[0].mxu0
      %801 = vmatprep.mubr.bf16.mxu0 0
      %802 = vmatmul.mubr.bf16.gmra.mrb[0].mxu0 %v537
      %v803 = vpop.f32.mrb[0].mxu0
      %v804 = vadd.f32 %v284, %v803
      %v805 = vpop.f32.mrb[0].mxu0
      %v806 = vpop.f32.mrb[0].mxu0
      %v807 = vadd.f32 %v284, %v806
      %v808 = vpop.f32.mrb[0].mxu0
      %809 = vmatprep.mubr.bf16.mxu0 0
      %810 = vmatmul.mubr.bf16.gmra.mrb[0].mxu0 %v540
      %v811 = vpop.f32.mrb[0].mxu0
      %v812 = vadd.f32 %v284, %v811
      %v813 = vpop.f32.mrb[0].mxu0
      %v814 = vpop.f32.mrb[0].mxu0
      %v815 = vadd.f32 %v284, %v814
      %v816 = vpop.f32.mrb[0].mxu0
      %817 = vmatprep.mubr.bf16.mxu0 0
      %818 = vmatmul.mubr.bf16.gmra.mrb[0].mxu0 %v543
      %v819 = vpop.f32.mrb[0].mxu0
      %v820 = vadd.f32 %v284, %v819
      %v821 = vpop.f32.mrb[0].mxu0
      %v822 = vpop.f32.mrb[0].mxu0
      %v823 = vadd.f32 %v284, %v822
      %v824 = vpop.f32.mrb[0].mxu0
      %825 = vmatprep.mubr.bf16.mxu0 0
      %826 = vmatmul.mubr.bf16.gmra.mrb[0].mxu0 %v546
      %v827 = vpop.f32.mrb[0].mxu0
      %v828 = vadd.f32 %v284, %v827
      %v829 = vpop.f32.mrb[0].mxu0
      %v830 = vpop.f32.mrb[0].mxu0
      %v831 = vadd.f32 %v284, %v830
      %v832 = vpop.f32.mrb[0].mxu0
      %833 = vmatprep.mubr.bf16.mxu0 0
      %834 = vmatmul.mubr.bf16.gmra.mrb[0].mxu0 %v549
      %v835 = vpop.f32.mrb[0].mxu0
      %v836 = vadd.f32 %v284, %v835
      %v837 = vpop.f32.mrb[0].mxu0
      %v838 = vpop.f32.mrb[0].mxu0
      %v839 = vadd.f32 %v284, %v838
      %v840 = vpop.f32.mrb[0].mxu0
      %841 = vmatprep.mubr.bf16.mxu0 0
      %842 = vmatmul.mubr.bf16.gmra.mrb[0].mxu0 %v552
      %v843 = vpop.f32.mrb[0].mxu0
      %v844 = vadd.f32 %v284, %v843
      %v845 = vpop.f32.mrb[0].mxu0
      %v846 = vpop.f32.mrb[0].mxu0
      %v847 = vadd.f32 %v284, %v846
      %v848 = vpop.f32.mrb[0].mxu0
      %849 = vdwg.mxu0
      %v850 = vmax.f32 %v596, 0.0
      %v851 = vmax.f32 %v599, 0.0
      %v852 = vmax.f32 %v604, 0.0
      %v853 = vmax.f32 %v607, 0.0
      %v854 = vmax.f32 %v612, 0.0
      %v855 = vmax.f32 %v615, 0.0
      %v856 = vmax.f32 %v620, 0.0
      %v857 = vmax.f32 %v623, 0.0
      %v858 = vmax.f32 %v628, 0.0
      %v859 = vmax.f32 %v631, 0.0
      %v860 = vmax.f32 %v636, 0.0
      %v861 = vmax.f32 %v639, 0.0
      %v862 = vmax.f32 %v644, 0.0
      %v863 = vmax.f32 %v647, 0.0
      %v864 = vmax.f32 %v652, 0.0
      %v865 = vmax.f32 %v655, 0.0
      %v866 = vmax.f32 %v660, 0.0
      %v867 = vmax.f32 %v663, 0.0
      %v868 = vmax.f32 %v668, 0.0
      %v869 = vmax.f32 %v671, 0.0
      %v870 = vmax.f32 %v676, 0.0
      %v871 = vmax.f32 %v679, 0.0
      %v872 = vmax.f32 %v684, 0.0
      %v873 = vmax.f32 %v687, 0.0
      %v874 = vmax.f32 %v692, 0.0
      %v875 = vmax.f32 %v695, 0.0
      %v876 = vmax.f32 %v700, 0.0
      %v877 = vmax.f32 %v703, 0.0
      %v878 = vmax.f32 %v708, 0.0
      %v879 = vmax.f32 %v711, 0.0
      %v880 = vmax.f32 %v716, 0.0
      %v881 = vmax.f32 %v719, 0.0
      %v882 = vmax.f32 %v724, 0.0
      %v883 = vmax.f32 %v727, 0.0
      %v884 = vmax.f32 %v732, 0.0
      %v885 = vmax.f32 %v735, 0.0
      %v886 = vmax.f32 %v740, 0.0
      %v887 = vmax.f32 %v743, 0.0
      %v888 = vmax.f32 %v748, 0.0
      %v889 = vmax.f32 %v751, 0.0
      %v890 = vmax.f32 %v756, 0.0
      %v891 = vmax.f32 %v759, 0.0
      %v892 = vmax.f32 %v764, 0.0
      %v893 = vmax.f32 %v767, 0.0
      %v894 = vmax.f32 %v772, 0.0
      %v895 = vmax.f32 %v775, 0.0
      %v896 = vmax.f32 %v780, 0.0
      %v897 = vmax.f32 %v783, 0.0
      %v898 = vmax.f32 %v788, 0.0
      %v899 = vmax.f32 %v791, 0.0
      %v900 = vmax.f32 %v796, 0.0
      %v901 = vmax.f32 %v799, 0.0
      %v902 = vmax.f32 %v804, 0.0
      %v903 = vmax.f32 %v807, 0.0
      %v904 = vmax.f32 %v812, 0.0
      %v905 = vmax.f32 %v815, 0.0
      %v906 = vmax.f32 %v820, 0.0
      %v907 = vmax.f32 %v823, 0.0
      %v908 = vmax.f32 %v828, 0.0
      %v909 = vmax.f32 %v831, 0.0
      %v910 = vmax.f32 %v836, 0.0
      %v911 = vmax.f32 %v839, 0.0
      %v912 = vmax.f32 %v844, 0.0
      %v913 = vmax.f32 %v847, 0.0
      %v914 = vmax.f32 %v850, %v854
      %v915 = vmax.f32 %v851, %v855
      %v916 = vmax.f32 %v852, %v856
      %v917 = vmax.f32 %v853, %v857
      %v918 = vmax.f32 %v858, %v862
      %v919 = vmax.f32 %v859, %v863
      %v920 = vmax.f32 %v860, %v864
      %v921 = vmax.f32 %v861, %v865
      %v922 = vmax.f32 %v866, %v870
      %v923 = vmax.f32 %v867, %v871
      %v924 = vmax.f32 %v868, %v872
      %v925 = vmax.f32 %v869, %v873
      %v926 = vmax.f32 %v874, %v878
      %v927 = vmax.f32 %v875, %v879
      %v928 = vmax.f32 %v876, %v880
      %v929 = vmax.f32 %v877, %v881
      %v930 = vmax.f32 %v882, %v886
      %v931 = vmax.f32 %v883, %v887
      %v932 = vmax.f32 %v884, %v888
      %v933 = vmax.f32 %v885, %v889
      %v934 = vmax.f32 %v890, %v894
      %v935 = vmax.f32 %v891, %v895
      %v936 = vmax.f32 %v892, %v896
      %v937 = vmax.f32 %v893, %v897
      %v938 = vmax.f32 %v898, %v902
      %v939 = vmax.f32 %v899, %v903
      %v940 = vmax.f32 %v900, %v904
      %v941 = vmax.f32 %v901, %v905
      %v942 = vmax.f32 %v906, %v910
      %v943 = vmax.f32 %v907, %v911
      %v944 = vmax.f32 %v908, %v912
      %v945 = vmax.f32 %v909, %v913
      %vm946 = vcmask 261120
      %947 = vst.msk [vmem:[#allocation2] sm:$0xff] %vm946, %v914
      %948 = vst.msk [vmem:[#allocation2 + $0x8] sm:$0xff] %vm946, %v915
      %949 = vst.msk [vmem:[#allocation2 + $0x10] sm:$0xff] %vm946, %v916
      %950 = vst.msk [vmem:[#allocation2 + $0x18] sm:$0xff] %vm946, %v917
      %951 = vst.msk [vmem:[#allocation2 + $0x20] sm:$0xff] %vm946, %v918
      %952 = vst.msk [vmem:[#allocation2 + $0x28] sm:$0xff] %vm946, %v919
      %953 = vst.msk [vmem:[#allocation2 + $0x30] sm:$0xff] %vm946, %v920
      %954 = vst.msk [vmem:[#allocation2 + $0x38] sm:$0xff] %vm946, %v921
      %955 = vst.msk [vmem:[#allocation2 + $0x40] sm:$0xff] %vm946, %v922
      %956 = vst.msk [vmem:[#allocation2 + $0x48] sm:$0xff] %vm946, %v923
      %957 = vst.msk [vmem:[#allocation2 + $0x50] sm:$0xff] %vm946, %v924
      %958 = vst.msk [vmem:[#allocation2 + $0x58] sm:$0xff] %vm946, %v925
      %959 = vst.msk [vmem:[#allocation2 + $0x60] sm:$0xff] %vm946, %v926
      %960 = vst.msk [vmem:[#allocation2 + $0x68] sm:$0xff] %vm946, %v927
      %961 = vst.msk [vmem:[#allocation2 + $0x70] sm:$0xff] %vm946, %v928
      %962 = vst.msk [vmem:[#allocation2 + $0x78] sm:$0xff] %vm946, %v929
      %963 = vst.msk [vmem:[#allocation2 + $0x80] sm:$0xff] %vm946, %v930
      %964 = vst.msk [vmem:[#allocation2 + $0x88] sm:$0xff] %vm946, %v931
      %965 = vst.msk [vmem:[#allocation2 + $0x90] sm:$0xff] %vm946, %v932
      %966 = vst.msk [vmem:[#allocation2 + $0x98] sm:$0xff] %vm946, %v933
      %967 = vst.msk [vmem:[#allocation2 + $0xa0] sm:$0xff] %vm946, %v934
      %968 = vst.msk [vmem:[#allocation2 + $0xa8] sm:$0xff] %vm946, %v935
      %969 = vst.msk [vmem:[#allocation2 + $0xb0] sm:$0xff] %vm946, %v936
      %970 = vst.msk [vmem:[#allocation2 + $0xb8] sm:$0xff] %vm946, %v937
      %971 = vst.msk [vmem:[#allocation2 + $0xc0] sm:$0xff] %vm946, %v938
      %972 = vst.msk [vmem:[#allocation2 + $0xc8] sm:$0xff] %vm946, %v939
      %973 = vst.msk [vmem:[#allocation2 + $0xd0] sm:$0xff] %vm946, %v940
      %974 = vst.msk [vmem:[#allocation2 + $0xd8] sm:$0xff] %vm946, %v941
      %975 = vst.msk [vmem:[#allocation2 + $0xe0] sm:$0xff] %vm946, %v942
      %976 = vst.msk [vmem:[#allocation2 + $0xe8] sm:$0xff] %vm946, %v943
      %977 = vst.msk [vmem:[#allocation2 + $0xf0] sm:$0xff] %vm946, %v944
      %978 = vst.msk [vmem:[#allocation2 + $0xf8] sm:$0xff] %vm946, %v945
      %v979 = vld [vmem:[#allocation2] ss:$2 sm:$0xff]
      %s980 = scalar_lea.vmem [#allocation2], 16
      %v981 = vld [vmem:[%s980] ss:$2 sm:$0xff]
      %s982 = scalar_lea.vmem [#allocation2], 32
      %v983 = vld [vmem:[%s982] ss:$2 sm:$0xff]
      %s984 = scalar_lea.vmem [#allocation2], 48
      %v985 = vld [vmem:[%s984] ss:$2 sm:$0xff]
      %s986 = scalar_lea.vmem [#allocation2], 64
      %v987 = vld [vmem:[%s986] ss:$2 sm:$0xff]
      %s988 = scalar_lea.vmem [#allocation2], 80
      %v989 = vld [vmem:[%s988] ss:$2 sm:$0xff]
      %s990 = scalar_lea.vmem [#allocation2], 96
      %v991 = vld [vmem:[%s990] ss:$2 sm:$0xff]
      %s992 = scalar_lea.vmem [#allocation2], 112
      %v993 = vld [vmem:[%s992] ss:$2 sm:$0xff]
      %s994 = scalar_lea.vmem [#allocation2], 128
      %v995 = vld [vmem:[%s994] ss:$2 sm:$0xff]
      %s996 = scalar_lea.vmem [#allocation2], 144
      %v997 = vld [vmem:[%s996] ss:$2 sm:$0xff]
      %s998 = scalar_lea.vmem [#allocation2], 160
      %v999 = vld [vmem:[%s998] ss:$2 sm:$0xff]
      %s1000 = scalar_lea.vmem [#allocation2], 176
      %v1001 = vld [vmem:[%s1000] ss:$2 sm:$0xff]
      %s1002 = scalar_lea.vmem [#allocation2], 192
      %v1003 = vld [vmem:[%s1002] ss:$2 sm:$0xff]
      %s1004 = scalar_lea.vmem [#allocation2], 208
      %v1005 = vld [vmem:[%s1004] ss:$2 sm:$0xff]
      %s1006 = scalar_lea.vmem [#allocation2], 224
      %v1007 = vld [vmem:[%s1006] ss:$2 sm:$0xff]
      %s1008 = scalar_lea.vmem [#allocation2], 240
      %v1009 = vld [vmem:[%s1008] ss:$2 sm:$0xff]
      %s1010 = scalar_lea.vmem [#allocation2], 1
      %v1011 = vld [vmem:[%s1010] ss:$2 sm:$0xff]
      %s1012 = scalar_lea.vmem [#allocation2], 17
      %v1013 = vld [vmem:[%s1012] ss:$2 sm:$0xff]
      %s1014 = scalar_lea.vmem [#allocation2], 33
      %v1015 = vld [vmem:[%s1014] ss:$2 sm:$0xff]
      %s1016 = scalar_lea.vmem [#allocation2], 49
      %v1017 = vld [vmem:[%s1016] ss:$2 sm:$0xff]
      %s1018 = scalar_lea.vmem [#allocation2], 65
      %v1019 = vld [vmem:[%s1018] ss:$2 sm:$0xff]
      %s1020 = scalar_lea.vmem [#allocation2], 81
      %v1021 = vld [vmem:[%s1020] ss:$2 sm:$0xff]
      %s1022 = scalar_lea.vmem [#allocation2], 97
      %v1023 = vld [vmem:[%s1022] ss:$2 sm:$0xff]
      %s1024 = scalar_lea.vmem [#allocation2], 113
      %v1025 = vld [vmem:[%s1024] ss:$2 sm:$0xff]
      %s1026 = scalar_lea.vmem [#allocation2], 129
      %v1027 = vld [vmem:[%s1026] ss:$2 sm:$0xff]
      %s1028 = scalar_lea.vmem [#allocation2], 145
      %v1029 = vld [vmem:[%s1028] ss:$2 sm:$0xff]
      %s1030 = scalar_lea.vmem [#allocation2], 161
      %v1031 = vld [vmem:[%s1030] ss:$2 sm:$0xff]
      %s1032 = scalar_lea.vmem [#allocation2], 177
      %v1033 = vld [vmem:[%s1032] ss:$2 sm:$0xff]
      %s1034 = scalar_lea.vmem [#allocation2], 193
      %v1035 = vld [vmem:[%s1034] ss:$2 sm:$0xff]
      %s1036 = scalar_lea.vmem [#allocation2], 209
      %v1037 = vld [vmem:[%s1036] ss:$2 sm:$0xff]
      %s1038 = scalar_lea.vmem [#allocation2], 225
      %v1039 = vld [vmem:[%s1038] ss:$2 sm:$0xff]
      %s1040 = scalar_lea.vmem [#allocation2], 241
      %v1041 = vld [vmem:[%s1040] ss:$2 sm:$0xff]
      %v1042 = vmax.f32 %v979, %v1011
      %v1043 = vmax.f32 %v981, %v1013
      %v1044 = vmax.f32 %v983, %v1015
      %v1045 = vmax.f32 %v985, %v1017
      %v1046 = vmax.f32 %v987, %v1019
      %v1047 = vmax.f32 %v989, %v1021
      %v1048 = vmax.f32 %v991, %v1023
      %v1049 = vmax.f32 %v993, %v1025
      %v1050 = vmax.f32 %v995, %v1027
      %v1051 = vmax.f32 %v997, %v1029
      %v1052 = vmax.f32 %v999, %v1031
      %v1053 = vmax.f32 %v1001, %v1033
      %v1054 = vmax.f32 %v1003, %v1035
      %v1055 = vmax.f32 %v1005, %v1037
      %v1056 = vmax.f32 %v1007, %v1039
      %v1057 = vmax.f32 %v1009, %v1041
      %v1058 = vpack.c.bf16 %v1043, %v1042
      %v1059 = vpack.c.bf16 %v1045, %v1044
      %v1060 = vpack.c.bf16 %v1047, %v1046
      %v1061 = vpack.c.bf16 %v1049, %v1048
      %v1062 = vpack.c.bf16 %v1051, %v1050
      %v1063 = vpack.c.bf16 %v1053, %v1052
      %v1064 = vpack.c.bf16 %v1055, %v1054
      %v1065 = vpack.c.bf16 %v1057, %v1056
      %v1074 = vunpack.c.l.b16 %v1058
      %v1075 = vunpack.c.h.b16 %v1058
      %v1076 = vunpack.c.l.b16 %v1059
      %v1077 = vunpack.c.h.b16 %v1059
      %v1078 = vunpack.c.l.b16 %v1060
      %v1079 = vunpack.c.h.b16 %v1060
      %v1080 = vunpack.c.l.b16 %v1061
      %v1081 = vunpack.c.h.b16 %v1061
      %v1082 = vunpack.c.l.b16 %v1062
      %v1083 = vunpack.c.h.b16 %v1062
      %v1084 = vunpack.c.l.b16 %v1063
      %v1085 = vunpack.c.h.b16 %v1063
      %v1086 = vunpack.c.l.b16 %v1064
      %v1087 = vunpack.c.h.b16 %v1064
      %v1088 = vunpack.c.l.b16 %v1065
      %v1089 = vunpack.c.h.b16 %v1065
      %v1090 = vpack.c.b16 %v1074, %v1074
      %v1091 = vpack.c.b16 %v1075, %v1075
      %v1092 = vpack.c.b16 %v1076, %v1076
      %v1093 = vpack.c.b16 %v1077, %v1077
      %v1094 = vpack.c.b16 %v1078, %v1078
      %v1095 = vpack.c.b16 %v1079, %v1079
      %v1096 = vpack.c.b16 %v1080, %v1080
      %v1097 = vpack.c.b16 %v1081, %v1081
      %v1098 = vpack.c.b16 %v1082, %v1082
      %v1099 = vpack.c.b16 %v1083, %v1083
      %v1100 = vpack.c.b16 %v1084, %v1084
      %v1101 = vpack.c.b16 %v1085, %v1085
      %v1102 = vpack.c.b16 %v1086, %v1086
      %v1103 = vpack.c.b16 %v1087, %v1087
      %v1104 = vpack.c.b16 %v1088, %v1088
      %v1105 = vpack.c.b16 %v1089, %v1089
      %vm1122 = vcmask 257024
      %1123 = vst.msk [vmem:[%s208] sm:$0xf] %vm1122, %v1090
      %1124 = vst.msk [vmem:[%s208 + $0x4] sm:$0xf] %vm1122, %v1091
      %1125 = vst.msk [vmem:[%s208 + $0x8] sm:$0xf] %vm1122, %v1092
      %1126 = vst.msk [vmem:[%s208 + $0xc] sm:$0xf] %vm1122, %v1093
      %1127 = vst.msk [vmem:[%s208 + $0x10] sm:$0xf] %vm1122, %v1094
      %1128 = vst.msk [vmem:[%s208 + $0x14] sm:$0xf] %vm1122, %v1095
      %1129 = vst.msk [vmem:[%s208 + $0x18] sm:$0xf] %vm1122, %v1096
      %1130 = vst.msk [vmem:[%s208 + $0x1c] sm:$0xf] %vm1122, %v1097
      %1131 = vst.msk [vmem:[%s208 + $0x20] sm:$0xf] %vm1122, %v1098
      %1132 = vst.msk [vmem:[%s208 + $0x24] sm:$0xf] %vm1122, %v1099
      %1133 = vst.msk [vmem:[%s208 + $0x28] sm:$0xf] %vm1122, %v1100
      %1134 = vst.msk [vmem:[%s208 + $0x2c] sm:$0xf] %vm1122, %v1101
      %1135 = vst.msk [vmem:[%s208 + $0x30] sm:$0xf] %vm1122, %v1102
      %1136 = vst.msk [vmem:[%s208 + $0x34] sm:$0xf] %vm1122, %v1103
      %1137 = vst.msk [vmem:[%s208 + $0x38] sm:$0xf] %vm1122, %v1104
      %1138 = vst.msk [vmem:[%s208 + $0x3c] sm:$0xf] %vm1122, %v1105
      %s1139 = smul.u32 8, %s19
      %p1140 = scmp.lt.s32.totalorder %s18, 1
      %s1141 = scalar_select %p1140, %s18, 1
      %p1142 = scmp.lt.s32.totalorder %s1139, 15
      %s1143 = scalar_select %p1142, %s1139, 15
      %s1144 = smul.addr %s1143, 2
      %s1145 = smul.addr %s1141, 32
      %s1146 = sadd.s32 %s1144, %s1145
      %s1147 = smul.addr %s1146, 4
      %s1148 = scalar_lea.vmem %s3, %s1147
      // Predicated region
      $region33: #{simple_cnn_forward.3} parent=31 // pred_check
        %p1149 = pneg %p116
      $region34: #{simple_cnn_forward.3} parent=31 // pred_check_branch
        %1151 = sbr.rel (%p1149) target = $region36
      $region35: #{simple_cnn_forward.3} parent=31 // pred_region
        %s1152 = smul.u32 8, %s19
      $region36: #{simple_cnn_forward.3} parent=31 // pred_fallthru
        _
    $region32: #{simple_cnn_forward.3} parent=5 // pred_fallthru
      _
    %p1153 = scmp.le.s32.totalorder 2, %s9
    // Predicated region
    $region37: #{simple_cnn_forward.3} parent=5 // pred_check
      %p1154 = pneg %p1153
    $region38: #{simple_cnn_forward.3} parent=5 // pred_check_branch
      %1156 = sbr.rel (%p1154) target = $region40
    $region39: #{simple_cnn_forward.3} parent=5 // pred_region
      %s1157 = ssub.s32 %s9, 2
      // Predicated region
      $region41: #{simple_cnn_forward.3} parent=39 // pred_check
        %p1158 = pneg %p122
      $region42: #{simple_cnn_forward.3} parent=39 // pred_check_branch
        %1160 = sbr.rel (%p1158) target = $region44
      $region43: #{simple_cnn_forward.3} parent=39 // pred_region
        %s1161 = smul.u32 8, %s21
        %p1162 = scmp.lt.s32.totalorder %s20, 1
        %s1163 = scalar_select %p1162, %s20, 1
        %p1164 = scmp.lt.s32.totalorder %s1161, 15
        %s1165 = scalar_select %p1164, %s1161, 15
        %s1166 = smul.addr %s1165, 2
        %s1167 = smul.addr %s1163, 32
        %s1168 = sadd.s32 %s1166, %s1167
        %s1169 = smul.addr %s1168, 4
        %s1170 = scalar_lea.vmem %s3, %s1169
      $region44: #{simple_cnn_forward.3} parent=39 // pred_fallthru
        _
    $region40: #{simple_cnn_forward.3} parent=5 // pred_fallthru
      _
  $region6: #{simple_cnn_forward.3} parent=0 // loop_footer
    %s13 = sadd.s32 1, %s9
  $region7: #{simple_cnn_forward.3} parent=0 // loop_footer_branch
    %8 = sbr.rel target = $region3
  $region8: #{simple_cnn_forward.3} parent=0 // loop_exit
    _

// kernel: simple_cnn_forward.4
$region0: #{simple_cnn_forward.4}
  #allocation0 [shape = 'u32[]', space=smem, size = 0x4, offset = 0x4, fixed_abs, tag = 'smem constant byte address 0x4 - core index']
  #allocation1 [shape = 'u32[144,128]{1,0:T(1,128)}', space=vmem, size = 0x12000, scoped, tag = 'internal scratch']
  #allocation2 [shape = 'f32[4,16,64]{2,1,0:T(8,128)}', space=vmem, size = 0x8000, scoped, tag = 'scratch operand']
  %s0 = inlined_call_operand.vmem [shape: bf16[2,2,10,18,32], index: 0, kind: input, shape index: {}]
  %s1 = inlined_call_operand.vmem [shape: bf16[3,3,32,64], index: 1, kind: input, shape index: {}]
  %s2 = inlined_call_operand.vmem [shape: f32[1,64], index: 2, kind: input, shape index: {}]
  %s3 = inlined_call_operand.vmem [shape: bf16[2,8,8,64], index: 3, kind: output, shape index: {}]
  %s4 = sld [smem:[#allocation0]]
  $region45: #{simple_cnn_forward.4} parent=0
    _
  %s6 = ssub.s32 1, %s4
  %s7 = scalar_select 0, %s6, %s4
  loop: start=0, step=1, limit=6
  $region2: #{simple_cnn_forward.4} parent=0 // loop_pre_header
    _
  $region3: #{simple_cnn_forward.4} parent=0 // loop_header
    %s9 = sphi 0, %s13
    %p10 = scmp.ge.s32.totalorder %s9, 6
    %s16 = sphi 0, %s28
    %s17 = sphi 0, %s24
    %s18 = sphi 0, %s16
    %s19 = sphi 0, %s17
    %s20 = sphi 0, %s18
    %s21 = sphi 0, %s19
    %s33 = sphi 0, %s35
    %s36 = sphi 0, %s33
    %s37 = sphi 0, %s36
    %s53 = sphi 0, %s37
    %s57 = sphi 0, %s57
    %s59 = sphi 0, %s57
    %s60 = sphi 0, %s59
    %s74 = sphi 0, %s60
    %s78 = sphi 0, %s78
    %s80 = sphi 0, %s78
    %s81 = sphi 0, %s80
    %s95 = sphi 0, %s81
    %s103 = sphi 0, %s105
    %s106 = sphi 0, %s103
    %s107 = sphi 0, %s106
    %s123 = sphi 0, %s107
  $region4: #{simple_cnn_forward.4} parent=0 // loop_header_branch
    %12 = sbr.rel (%p10) target = $region8
  $region5: #{simple_cnn_forward.4} parent=0 // loop_body
    %s14 = ssub.s32 %s9, 1
    %s15 = ssub.s32 %s9, 2
    %s22 = sadd.s32 1, %s17
    %p23 = scmp.ge.s32.totalorder %s22, 2
    %s24 = scalar_select %p23, 0, %s22
    %s25 = sadd.s32 1, %s16
    %s26 = scalar_select %p23, %s25, %s16
    %p27 = scmp.ge.s32.totalorder %s26, 2
    %s28 = scalar_select %p27, 0, %s26
    %s29 = ssub.s32 %s16, %s28
    %s30 = ssub.s32 %s17, %s24
    %s31 = sor.u32 %s29, %s30
    %p32 = scmp.eq.s32.totalorder %s31, 0
    %s34 = sadd.s32 %s33, 1
    %s35 = scalar_select %p32, %s33, %s34
    %p38 = pneg %p32
    %p39 = scmp.eq.s32.totalorder %s9, 3
    %p40 = por %p38, %p39
    %p41 = scmp.ne.s32.totalorder %s33, %s36
    %p42 = scmp.eq.s32.totalorder %s9, 0
    %p43 = por %p41, %p42
    %p44 = scmp.ne.s32.totalorder %s33, %s36
    %p45 = scmp.eq.s32.totalorder %s14, 3
    %p46 = por %p44, %p45
    %p47 = scmp.ne.s32.totalorder %s36, %s37
    %p48 = scmp.eq.s32.totalorder %s14, 0
    %p49 = por %p47, %p48
    %p50 = scmp.ne.s32.totalorder %s36, %s37
    %p51 = scmp.eq.s32.totalorder %s15, 3
    %p52 = por %p50, %p51
    %p54 = scmp.ne.s32.totalorder %s37, %s53
    %p55 = scmp.eq.s32.totalorder %s15, 0
    %p56 = por %p54, %p55
    %s58 = sadd.s32 %s57, 1
    %p61 = scmp.eq.s32.totalorder %s9, 3
    %p62 = scmp.ne.s32.totalorder %s57, %s59
    %p63 = scmp.eq.s32.totalorder %s9, 0
    %p64 = por %p62, %p63
    %p65 = scmp.ne.s32.totalorder %s57, %s59
    %p66 = scmp.eq.s32.totalorder %s14, 3
    %p67 = por %p65, %p66
    %p68 = scmp.ne.s32.totalorder %s59, %s60
    %p69 = scmp.eq.s32.totalorder %s14, 0
    %p70 = por %p68, %p69
    %p71 = scmp.ne.s32.totalorder %s59, %s60
    %p72 = scmp.eq.s32.totalorder %s15, 3
    %p73 = por %p71, %p72
    %p75 = scmp.ne.s32.totalorder %s60, %s74
    %p76 = scmp.eq.s32.totalorder %s15, 0
    %p77 = por %p75, %p76
    %s79 = sadd.s32 %s78, 1
    %p82 = scmp.eq.s32.totalorder %s9, 3
    %p83 = scmp.ne.s32.totalorder %s78, %s80
    %p84 = scmp.eq.s32.totalorder %s9, 0
    %p85 = por %p83, %p84
    %p86 = scmp.ne.s32.totalorder %s78, %s80
    %p87 = scmp.eq.s32.totalorder %s14, 3
    %p88 = por %p86, %p87
    %p89 = scmp.ne.s32.totalorder %s80, %s81
    %p90 = scmp.eq.s32.totalorder %s14, 0
    %p91 = por %p89, %p90
    %p92 = scmp.ne.s32.totalorder %s80, %s81
    %p93 = scmp.eq.s32.totalorder %s15, 3
    %p94 = por %p92, %p93
    %p96 = scmp.ne.s32.totalorder %s81, %s95
    %p97 = scmp.eq.s32.totalorder %s15, 0
    %p98 = por %p96, %p97
    %s99 = ssub.s32 %s16, %s28
    %s100 = ssub.s32 %s17, %s24
    %s101 = sor.u32 %s99, %s100
    %p102 = scmp.eq.s32.totalorder %s101, 0
    %s104 = sadd.s32 %s103, 1
    %s105 = scalar_select %p102, %s103, %s104
    %p108 = pneg %p102
    %p109 = scmp.eq.s32.totalorder %s9, 3
    %p110 = por %p108, %p109
    %p111 = scmp.ne.s32.totalorder %s103, %s106
    %p112 = scmp.eq.s32.totalorder %s9, 0
    %p113 = por %p111, %p112
    %p114 = scmp.ne.s32.totalorder %s103, %s106
    %p115 = scmp.eq.s32.totalorder %s14, 3
    %p116 = por %p114, %p115
    %p117 = scmp.ne.s32.totalorder %s106, %s107
    %p118 = scmp.eq.s32.totalorder %s14, 0
    %p119 = por %p117, %p118
    %p120 = scmp.ne.s32.totalorder %s106, %s107
    %p121 = scmp.eq.s32.totalorder %s15, 3
    %p122 = por %p120, %p121
    %p124 = scmp.ne.s32.totalorder %s107, %s123
    %p125 = scmp.eq.s32.totalorder %s15, 0
    %p126 = por %p124, %p125
    %p127 = scmp.le.s32.totalorder 1, %s9
    %p128 = scmp.lt.s32.totalorder %s9, 5
    %p129 = pnand %p127, %p128
    %p130 = pneg %p129
    // Predicated region
    $region9: #{simple_cnn_forward.4} parent=5 // pred_check
      _
    $region10: #{simple_cnn_forward.4} parent=5 // pred_check_branch
      %132 = sbr.rel (%p129) target = $region12
    $region11: #{simple_cnn_forward.4} parent=5 // pred_region
      %s133 = ssub.s32 %s9, 1
      // Predicated region
      $region13: #{simple_cnn_forward.4} parent=11 // pred_check
        %p134 = pneg %p70
      $region14: #{simple_cnn_forward.4} parent=11 // pred_check_branch
        %136 = sbr.rel (%p134) target = $region16
      $region15: #{simple_cnn_forward.4} parent=11 // pred_region
        _
      $region16: #{simple_cnn_forward.4} parent=11 // pred_fallthru
        _
      // Predicated region
      $region17: #{simple_cnn_forward.4} parent=11 // pred_check
        %p137 = pneg %p91
      $region18: #{simple_cnn_forward.4} parent=11 // pred_check_branch
        %139 = sbr.rel (%p137) target = $region20
      $region19: #{simple_cnn_forward.4} parent=11 // pred_region
        _
      $region20: #{simple_cnn_forward.4} parent=11 // pred_fallthru
        _
    $region12: #{simple_cnn_forward.4} parent=5 // pred_fallthru
      _
    %p140 = scmp.lt.s32.totalorder %s9, 4
    // Predicated region
    $region21: #{simple_cnn_forward.4} parent=5 // pred_check
      %p141 = pneg %p140
    $region22: #{simple_cnn_forward.4} parent=5 // pred_check_branch
      %143 = sbr.rel (%p141) target = $region24
    $region23: #{simple_cnn_forward.4} parent=5 // pred_region
      // Predicated region
      $region25: #{simple_cnn_forward.4} parent=23 // pred_check
        %p144 = pneg %p43
      $region26: #{simple_cnn_forward.4} parent=23 // pred_check_branch
        %146 = sbr.rel (%p144) target = $region28
      $region27: #{simple_cnn_forward.4} parent=23 // pred_region
        %p147 = scmp.lt.s32.totalorder %s16, 1
        %s148 = scalar_select %p147, %s16, 1
        %p149 = scmp.lt.s32.totalorder %s17, 1
        %s150 = scalar_select %p149, %s17, 1
        %s151 = smul.addr %s150, 30
        %s152 = smul.addr %s148, 60
        %s153 = sadd.s32 %s151, %s152
        %s154 = smul.addr %s153, 4
        %s155 = scalar_lea.vmem %s0, %s154
      $region28: #{simple_cnn_forward.4} parent=23 // pred_fallthru
        _
    $region24: #{simple_cnn_forward.4} parent=5 // pred_fallthru
      _
    %p156 = scmp.le.s32.totalorder 1, %s9
    %p157 = scmp.lt.s32.totalorder %s9, 5
    %p158 = pnand %p156, %p157
    %p159 = pneg %p158
    // Predicated region
    $region29: #{simple_cnn_forward.4} parent=5 // pred_check
      _
    $region30: #{simple_cnn_forward.4} parent=5 // pred_check_branch
      %161 = sbr.rel (%p158) target = $region32
    $region31: #{simple_cnn_forward.4} parent=5 // pred_region
      %s162 = ssub.s32 %s9, 1
      %p163 = scmp.lt.s32.totalorder %s18, 1
      %s164 = scalar_select %p163, %s18, 1
      %p165 = scmp.lt.s32.totalorder %s19, 1
      %s166 = scalar_select %p165, %s19, 1
      %s167 = smul.addr %s166, 30
      %s168 = smul.addr %s164, 60
      %s169 = sadd.s32 %s167, %s168
      %s170 = smul.addr %s169, 4
      %s171 = scalar_lea.vmem %s0, %s170
      %p172 = pneg %p49
      %p173 = pneg %p46
      %p174 = pneg %p70
      %p175 = pneg %p67
      %p176 = pneg %p91
      %p177 = pneg %p88
      %p178 = pneg %p119
      %p179 = pneg %p116
      %s180 = smul.u32 4, %s19
      %p181 = scmp.lt.s32.totalorder %s18, 1
      %s182 = scalar_select %p181, %s18, 1
      %p183 = scmp.lt.s32.totalorder %s180, 7
      %s184 = scalar_select %p183, %s180, 7
      %s185 = smul.addr %s182, 8
      %s186 = sadd.s32 %s184, %s185
      %s187 = smul.addr %s186, 4
      %s188 = scalar_lea.vmem %s3, %s187
      %p189 = scmp.lt.s32.totalorder %s18, 1
      %s190 = scalar_select %p189, %s18, 1
      %p191 = scmp.lt.s32.totalorder %s19, 1
      %s192 = scalar_select %p191, %s19, 1
      %s193 = smul.addr %s192, 30
      %s194 = smul.addr %s190, 60
      %s195 = sadd.s32 %s193, %s194
      %s196 = smul.addr %s195, 4
      %s197 = scalar_lea.vmem %s0, %s196
      %s198 = smul.u32 4, %s19
      %p199 = scmp.lt.s32.totalorder %s18, 1
      %s200 = scalar_select %p199, %s18, 1
      %p201 = scmp.lt.s32.totalorder %s198, 7
      %s202 = scalar_select %p201, %s198, 7
      %s203 = smul.addr %s200, 8
      %s204 = sadd.s32 %s202, %s203
      %s205 = smul.addr %s204, 4
      %s206 = scalar_lea.vmem %s3, %s205
      %s207 = smul.u32 4, %s19
      %v209 = vld [vmem:[%s197] sm:$0xf]
      %v210 = vld [vmem:[%s197 + $0x4] sm:$0xf]
      %v211 = vld [vmem:[%s197 + $0x8] sm:$0x1]
      %v212 = vld [vmem:[%s197 + $0xc] sm:$0xf]
      %v213 = vld [vmem:[%s197 + $0x10] sm:$0xf]
      %v214 = vld [vmem:[%s197 + $0x14] sm:$0x1]
      %v215 = vld [vmem:[%s197 + $0x18] sm:$0xf]
      %v216 = vld [vmem:[%s197 + $0x1c] sm:$0xf]
      %v217 = vld [vmem:[%s197 + $0x20] sm:$0x1]
      %v218 = vld [vmem:[%s197 + $0x24] sm:$0xf]
      %v219 = vld [vmem:[%s197 + $0x28] sm:$0xf]
      %v220 = vld [vmem:[%s197 + $0x2c] sm:$0x1]
      %v221 = vld [vmem:[%s197 + $0x30] sm:$0xf]
      %v222 = vld [vmem:[%s197 + $0x34] sm:$0xf]
      %v223 = vld [vmem:[%s197 + $0x38] sm:$0x1]
      %v224 = vld [vmem:[%s197 + $0x3c] sm:$0xf]
      %v225 = vld [vmem:[%s197 + $0x40] sm:$0xf]
      %v226 = vld [vmem:[%s197 + $0x44] sm:$0x1]
      %v227 = vld [vmem:[%s197 + $0x48] sm:$0xf]
      %v228 = vld [vmem:[%s197 + $0x4c] sm:$0xf]
      %v229 = vld [vmem:[%s197 + $0x50] sm:$0x1]
      %v230 = vld [vmem:[%s197 + $0x54] sm:$0xf]
      %v231 = vld [vmem:[%s197 + $0x58] sm:$0xf]
      %v232 = vld [vmem:[%s197 + $0x5c] sm:$0x1]
      %v233 = vld [vmem:[%s197 + $0x60] sm:$0xf]
      %v234 = vld [vmem:[%s197 + $0x64] sm:$0xf]
      %v235 = vld [vmem:[%s197 + $0x68] sm:$0x1]
      %v236 = vld [vmem:[%s197 + $0x6c] sm:$0xf]
      %v237 = vld [vmem:[%s197 + $0x70] sm:$0xf]
      %v238 = vld [vmem:[%s197 + $0x74] sm:$0x1]
      %v239 = vld [vmem:[%s1] sm:$0xf]
      %v240 = vld [vmem:[%s1 + $0x4] sm:$0xf]
      %v241 = vld [vmem:[%s1 + $0x8] sm:$0xf]
      %v242 = vld [vmem:[%s1 + $0xc] sm:$0xf]
      %s243 = scalar_lea.vmem %s1, 48
      %v244 = vld [vmem:[%s243] sm:$0xf]
      %v245 = vld [vmem:[%s243 + $0x4] sm:$0xf]
      %v246 = vld [vmem:[%s243 + $0x8] sm:$0xf]
      %v247 = vld [vmem:[%s243 + $0xc] sm:$0xf]
      %v264 = vunpack.c.l.b16 %v212
      %v265 = vunpack.c.l.b16 %v213
      %v266 = vunpack.c.l.b16 %v215
      %v267 = vunpack.c.l.b16 %v216
      %v268 = vunpack.c.l.b16 %v218
      %v269 = vunpack.c.l.b16 %v219
      %v270 = vunpack.c.l.b16 %v221
      %v271 = vunpack.c.l.b16 %v222
      %v272 = vunpack.c.l.b16 %v224
      %v273 = vunpack.c.l.b16 %v225
      %v274 = vunpack.c.l.b16 %v227
      %v275 = vunpack.c.l.b16 %v228
      %v276 = vunpack.c.l.b16 %v230
      %v277 = vunpack.c.l.b16 %v231
      %v278 = vunpack.c.l.b16 %v233
      %v279 = vunpack.c.l.b16 %v234
      %v280 = vpack.c.b16 %v265, %v264
      %v281 = vpack.c.b16 %v267, %v266
      %v282 = vpack.c.b16 %v269, %v268
      %v283 = vpack.c.b16 %v271, %v270
      %v284 = vpack.c.b16 %v273, %v272
      %v285 = vpack.c.b16 %v275, %v274
      %v286 = vpack.c.b16 %v277, %v276
      %v287 = vpack.c.b16 %v279, %v278
      %v292 = vunpack.c.l.b16 %v244
      %v293 = vunpack.c.l.b16 %v245
      %v294 = vunpack.c.l.b16 %v246
      %v295 = vunpack.c.l.b16 %v247
      %v296 = vpack.c.b16 %v293, %v292
      %v297 = vpack.c.b16 %v295, %v294
      %vm300 = vcmask 261120
      %v302 = vsel %vm300, %v280, 0
      %v305 = vsel %vm300, %v281, 0
      %v308 = vsel %vm300, %v282, 0
      %v311 = vsel %vm300, %v283, 0
      %v314 = vsel %vm300, %v284, 0
      %v317 = vsel %vm300, %v285, 0
      %v320 = vsel %vm300, %v286, 0
      %v323 = vsel %vm300, %v287, 0
      %325 = vmatprep.subr.bf16.mxu0 0
      %326 = vmatpush1.bf16.msra.mxu0 %v296
      %327 = vmatprep.subr.bf16.mxu0 0
      %328 = vmatpush1.bf16.msra.mxu0 %v297
      %329 = vmatprep.subr.bf16.mxu0 0
      %330 = vmatpush1.bf16.msra.mxu0 0
      %331 = vmatprep.subr.bf16.mxu0 0
      %332 = vmatpush1.bf16.msra.mxu0 0
      %333 = vmatprep.subr.bf16.mxu0 0
      %334 = vmatpush1.bf16.msra.mxu0 0
      %335 = vmatprep.subr.bf16.mxu0 0
      %336 = vmatpush1.bf16.msra.mxu0 0
      %337 = vmatprep.subr.bf16.mxu0 0
      %338 = vmatpush1.bf16.msra.mxu0 0
      %339 = vmatprep.subr.bf16.mxu0 0
      %340 = vmatpush1.bf16.msra.mxu0 0
      %341 = vmatprep.subr.bf16.mxu0 0
      %342 = vmatpush1.bf16.msra.mxu0 0
      %343 = vmatprep.subr.bf16.mxu0 0
      %344 = vmatpush1.bf16.msra.mxu0 0
      %345 = vmatprep.subr.bf16.mxu0 0
      %346 = vmatpush1.bf16.msra.mxu0 0
      %347 = vmatprep.subr.bf16.mxu0 0
      %348 = vmatpush1.bf16.msra.mxu0 0
      %349 = vmatprep.subr.bf16.mxu0 0
      %350 = vmatpush1.bf16.msra.mxu0 0
      %351 = vmatprep.subr.bf16.mxu0 0
      %352 = vmatpush1.bf16.msra.mxu0 0
      %353 = vmatprep.subr.bf16.mxu0 0
      %354 = vmatpush1.bf16.msra.mxu0 0
      %355 = vmatprep.subr.bf16.mxu0 0
      %356 = vmatpush1.bf16.msra.mxu0 0
      %357 = vmatprep.mubr.bf16.mxu0 0
      %358 = vmatmul.mubr.bf16.gmra.mrb[0].mxu0 %v302
      %v359 = vpop.f32.mrb[0].mxu0
      %v360 = vadd.f32 0.0, %v359
      %v361 = vpop.f32.mrb[0].mxu0
      %v362 = vpop.f32.mrb[0].mxu0
      %v363 = vadd.f32 0.0, %v362
      %v364 = vpop.f32.mrb[0].mxu0
      %365 = vmatprep.mubr.bf16.mxu0 0
      %366 = vmatmul.mubr.bf16.gmra.mrb[0].mxu0 %v305
      %v367 = vpop.f32.mrb[0].mxu0
      %v368 = vadd.f32 0.0, %v367
      %v369 = vpop.f32.mrb[0].mxu0
      %v370 = vpop.f32.mrb[0].mxu0
      %v371 = vadd.f32 0.0, %v370
      %v372 = vpop.f32.mrb[0].mxu0
      %373 = vmatprep.mubr.bf16.mxu0 0
      %374 = vmatmul.mubr.bf16.gmra.mrb[0].mxu0 %v308
      %v375 = vpop.f32.mrb[0].mxu0
      %v376 = vadd.f32 0.0, %v375
      %v377 = vpop.f32.mrb[0].mxu0
      %v378 = vpop.f32.mrb[0].mxu0
      %v379 = vadd.f32 0.0, %v378
      %v380 = vpop.f32.mrb[0].mxu0
      %381 = vmatprep.mubr.bf16.mxu0 0
      %382 = vmatmul.mubr.bf16.gmra.mrb[0].mxu0 %v311
      %v383 = vpop.f32.mrb[0].mxu0
      %v384 = vadd.f32 0.0, %v383
      %v385 = vpop.f32.mrb[0].mxu0
      %v386 = vpop.f32.mrb[0].mxu0
      %v387 = vadd.f32 0.0, %v386
      %v388 = vpop.f32.mrb[0].mxu0
      %389 = vmatprep.mubr.bf16.mxu0 0
      %390 = vmatmul.mubr.bf16.gmra.mrb[0].mxu0 %v314
      %v391 = vpop.f32.mrb[0].mxu0
      %v392 = vadd.f32 0.0, %v391
      %v393 = vpop.f32.mrb[0].mxu0
      %v394 = vpop.f32.mrb[0].mxu0
      %v395 = vadd.f32 0.0, %v394
      %v396 = vpop.f32.mrb[0].mxu0
      %397 = vmatprep.mubr.bf16.mxu0 0
      %398 = vmatmul.mubr.bf16.gmra.mrb[0].mxu0 %v317
      %v399 = vpop.f32.mrb[0].mxu0
      %v400 = vadd.f32 0.0, %v399
      %v401 = vpop.f32.mrb[0].mxu0
      %v402 = vpop.f32.mrb[0].mxu0
      %v403 = vadd.f32 0.0, %v402
      %v404 = vpop.f32.mrb[0].mxu0
      %405 = vmatprep.mubr.bf16.mxu0 0
      %406 = vmatmul.mubr.bf16.gmra.mrb[0].mxu0 %v320
      %v407 = vpop.f32.mrb[0].mxu0
      %v408 = vadd.f32 0.0, %v407
      %v409 = vpop.f32.mrb[0].mxu0
      %v410 = vpop.f32.mrb[0].mxu0
      %v411 = vadd.f32 0.0, %v410
      %v412 = vpop.f32.mrb[0].mxu0
      %413 = vmatprep.mubr.bf16.mxu0 0
      %414 = vmatmul.mubr.bf16.gmra.mrb[0].mxu0 %v323
      %v415 = vpop.f32.mrb[0].mxu0
      %v416 = vadd.f32 0.0, %v415
      %v417 = vpop.f32.mrb[0].mxu0
      %v418 = vpop.f32.mrb[0].mxu0
      %v419 = vadd.f32 0.0, %v418
      %v420 = vpop.f32.mrb[0].mxu0
      %421 = vdwg.mxu0
      %v424 = vunpack.c.l.b16 %v209
      %v425 = vunpack.c.l.b16 %v210
      %v426 = vpack.c.b16 %v425, %v424
      %v431 = vunpack.c.l.b16 %v239
      %v432 = vunpack.c.l.b16 %v240
      %v433 = vunpack.c.l.b16 %v241
      %v434 = vunpack.c.l.b16 %v242
      %v435 = vpack.c.b16 %v432, %v431
      %v436 = vpack.c.b16 %v434, %v433
      %v440 = vsel %vm300, %v426, 0
      %442 = vmatprep.subr.bf16.mxu0 0
      %443 = vmatpush1.bf16.msra.mxu0 %v435
      %444 = vmatprep.subr.bf16.mxu0 0
      %445 = vmatpush1.bf16.msra.mxu0 %v436
      %446 = vmatprep.subr.bf16.mxu0 0
      %447 = vmatpush1.bf16.msra.mxu0 0
      %448 = vmatprep.subr.bf16.mxu0 0
      %449 = vmatpush1.bf16.msra.mxu0 0
      %450 = vmatprep.subr.bf16.mxu0 0
      %451 = vmatpush1.bf16.msra.mxu0 0
      %452 = vmatprep.subr.bf16.mxu0 0
      %453 = vmatpush1.bf16.msra.mxu0 0
      %454 = vmatprep.subr.bf16.mxu0 0
      %455 = vmatpush1.bf16.msra.mxu0 0
      %456 = vmatprep.subr.bf16.mxu0 0
      %457 = vmatpush1.bf16.msra.mxu0 0
      %458 = vmatprep.subr.bf16.mxu0 0
      %459 = vmatpush1.bf16.msra.mxu0 0
      %460 = vmatprep.subr.bf16.mxu0 0
      %461 = vmatpush1.bf16.msra.mxu0 0
      %462 = vmatprep.subr.bf16.mxu0 0
      %463 = vmatpush1.bf16.msra.mxu0 0
      %464 = vmatprep.subr.bf16.mxu0 0
      %465 = vmatpush1.bf16.msra.mxu0 0
      %466 = vmatprep.subr.bf16.mxu0 0
      %467 = vmatpush1.bf16.msra.mxu0 0
      %468 = vmatprep.subr.bf16.mxu0 0
      %469 = vmatpush1.bf16.msra.mxu0 0
      %470 = vmatprep.subr.bf16.mxu0 0
      %471 = vmatpush1.bf16.msra.mxu0 0
      %472 = vmatprep.subr.bf16.mxu0 0
      %473 = vmatpush1.bf16.msra.mxu0 0
      %474 = vmatprep.mubr.bf16.mxu0 0
      %475 = vmatmul.mubr.bf16.gmra.mrb[0].mxu0 %v440
      %v476 = vpop.f32.mrb[0].mxu0
      %v477 = vadd.f32 %v360, %v476
      %v478 = vpop.f32.mrb[0].mxu0
      %v479 = vpop.f32.mrb[0].mxu0
      %v480 = vadd.f32 %v363, %v479
      %v481 = vpop.f32.mrb[0].mxu0
      %482 = vmatprep.mubr.bf16.mxu0 0
      %483 = vmatmul.mubr.bf16.gmra.mrb[0].mxu0 %v302
      %v484 = vpop.f32.mrb[0].mxu0
      %v485 = vadd.f32 %v368, %v484
      %v486 = vpop.f32.mrb[0].mxu0
      %v487 = vpop.f32.mrb[0].mxu0
      %v488 = vadd.f32 %v371, %v487
      %v489 = vpop.f32.mrb[0].mxu0
      %490 = vmatprep.mubr.bf16.mxu0 0
      %491 = vmatmul.mubr.bf16.gmra.mrb[0].mxu0 %v305
      %v492 = vpop.f32.mrb[0].mxu0
      %v493 = vadd.f32 %v376, %v492
      %v494 = vpop.f32.mrb[0].mxu0
      %v495 = vpop.f32.mrb[0].mxu0
      %v496 = vadd.f32 %v379, %v495
      %v497 = vpop.f32.mrb[0].mxu0
      %498 = vmatprep.mubr.bf16.mxu0 0
      %499 = vmatmul.mubr.bf16.gmra.mrb[0].mxu0 %v308
      %v500 = vpop.f32.mrb[0].mxu0
      %v501 = vadd.f32 %v384, %v500
      %v502 = vpop.f32.mrb[0].mxu0
      %v503 = vpop.f32.mrb[0].mxu0
      %v504 = vadd.f32 %v387, %v503
      %v505 = vpop.f32.mrb[0].mxu0
      %506 = vmatprep.mubr.bf16.mxu0 0
      %507 = vmatmul.mubr.bf16.gmra.mrb[0].mxu0 %v311
      %v508 = vpop.f32.mrb[0].mxu0
      %v509 = vadd.f32 %v392, %v508
      %v510 = vpop.f32.mrb[0].mxu0
      %v511 = vpop.f32.mrb[0].mxu0
      %v512 = vadd.f32 %v395, %v511
      %v513 = vpop.f32.mrb[0].mxu0
      %514 = vmatprep.mubr.bf16.mxu0 0
      %515 = vmatmul.mubr.bf16.gmra.mrb[0].mxu0 %v314
      %v516 = vpop.f32.mrb[0].mxu0
      %v517 = vadd.f32 %v400, %v516
      %v518 = vpop.f32.mrb[0].mxu0
      %v519 = vpop.f32.mrb[0].mxu0
      %v520 = vadd.f32 %v403, %v519
      %v521 = vpop.f32.mrb[0].mxu0
      %522 = vmatprep.mubr.bf16.mxu0 0
      %523 = vmatmul.mubr.bf16.gmra.mrb[0].mxu0 %v317
      %v524 = vpop.f32.mrb[0].mxu0
      %v525 = vadd.f32 %v408, %v524
      %v526 = vpop.f32.mrb[0].mxu0
      %v527 = vpop.f32.mrb[0].mxu0
      %v528 = vadd.f32 %v411, %v527
      %v529 = vpop.f32.mrb[0].mxu0
      %530 = vmatprep.mubr.bf16.mxu0 0
      %531 = vmatmul.mubr.bf16.gmra.mrb[0].mxu0 %v320
      %v532 = vpop.f32.mrb[0].mxu0
      %v533 = vadd.f32 %v416, %v532
      %v534 = vpop.f32.mrb[0].mxu0
      %v535 = vpop.f32.mrb[0].mxu0
      %v536 = vadd.f32 %v419, %v535
      %v537 = vpop.f32.mrb[0].mxu0
      %538 = vdwg.mxu0
      %s539 = scalar_lea.vmem %s1, 96
      %v540 = vld [vmem:[%s539] sm:$0xf]
      %v541 = vld [vmem:[%s539 + $0x4] sm:$0xf]
      %v542 = vld [vmem:[%s539 + $0x8] sm:$0xf]
      %v543 = vld [vmem:[%s539 + $0xc] sm:$0xf]
      %v546 = vunpack.c.l.b16 %v236
      %v547 = vunpack.c.l.b16 %v237
      %v548 = vpack.c.b16 %v547, %v546
      %v553 = vunpack.c.l.b16 %v540
      %v554 = vunpack.c.l.b16 %v541
      %v555 = vunpack.c.l.b16 %v542
      %v556 = vunpack.c.l.b16 %v543
      %v557 = vpack.c.b16 %v554, %v553
      %v558 = vpack.c.b16 %v556, %v555
      %v562 = vsel %vm300, %v548, 0
      %564 = vmatprep.subr.bf16.mxu0 0
      %565 = vmatpush1.bf16.msra.mxu0 %v557
      %566 = vmatprep.subr.bf16.mxu0 0
      %567 = vmatpush1.bf16.msra.mxu0 %v558
      %568 = vmatprep.subr.bf16.mxu0 0
      %569 = vmatpush1.bf16.msra.mxu0 0
      %570 = vmatprep.subr.bf16.mxu0 0
      %571 = vmatpush1.bf16.msra.mxu0 0
      %572 = vmatprep.subr.bf16.mxu0 0
      %573 = vmatpush1.bf16.msra.mxu0 0
      %574 = vmatprep.subr.bf16.mxu0 0
      %575 = vmatpush1.bf16.msra.mxu0 0
      %576 = vmatprep.subr.bf16.mxu0 0
      %577 = vmatpush1.bf16.msra.mxu0 0
      %578 = vmatprep.subr.bf16.mxu0 0
      %579 = vmatpush1.bf16.msra.mxu0 0
      %580 = vmatprep.subr.bf16.mxu0 0
      %581 = vmatpush1.bf16.msra.mxu0 0
      %582 = vmatprep.subr.bf16.mxu0 0
      %583 = vmatpush1.bf16.msra.mxu0 0
      %584 = vmatprep.subr.bf16.mxu0 0
      %585 = vmatpush1.bf16.msra.mxu0 0
      %586 = vmatprep.subr.bf16.mxu0 0
      %587 = vmatpush1.bf16.msra.mxu0 0
      %588 = vmatprep.subr.bf16.mxu0 0
      %589 = vmatpush1.bf16.msra.mxu0 0
      %590 = vmatprep.subr.bf16.mxu0 0
      %591 = vmatpush1.bf16.msra.mxu0 0
      %592 = vmatprep.subr.bf16.mxu0 0
      %593 = vmatpush1.bf16.msra.mxu0 0
      %594 = vmatprep.subr.bf16.mxu0 0
      %595 = vmatpush1.bf16.msra.mxu0 0
      %596 = vmatprep.mubr.bf16.mxu0 0
      %597 = vmatmul.mubr.bf16.gmra.mrb[0].mxu0 %v305
      %v598 = vpop.f32.mrb[0].mxu0
      %v599 = vadd.f32 0.0, %v598
      %v600 = vpop.f32.mrb[0].mxu0
      %v601 = vpop.f32.mrb[0].mxu0
      %v602 = vadd.f32 0.0, %v601
      %v603 = vpop.f32.mrb[0].mxu0
      %604 = vmatprep.mubr.bf16.mxu0 0
      %605 = vmatmul.mubr.bf16.gmra.mrb[0].mxu0 %v308
      %v606 = vpop.f32.mrb[0].mxu0
      %v607 = vadd.f32 0.0, %v606
      %v608 = vpop.f32.mrb[0].mxu0
      %v609 = vpop.f32.mrb[0].mxu0
      %v610 = vadd.f32 0.0, %v609
      %v611 = vpop.f32.mrb[0].mxu0
      %612 = vmatprep.mubr.bf16.mxu0 0
      %613 = vmatmul.mubr.bf16.gmra.mrb[0].mxu0 %v311
      %v614 = vpop.f32.mrb[0].mxu0
      %v615 = vadd.f32 0.0, %v614
      %v616 = vpop.f32.mrb[0].mxu0
      %v617 = vpop.f32.mrb[0].mxu0
      %v618 = vadd.f32 0.0, %v617
      %v619 = vpop.f32.mrb[0].mxu0
      %620 = vmatprep.mubr.bf16.mxu0 0
      %621 = vmatmul.mubr.bf16.gmra.mrb[0].mxu0 %v314
      %v622 = vpop.f32.mrb[0].mxu0
      %v623 = vadd.f32 0.0, %v622
      %v624 = vpop.f32.mrb[0].mxu0
      %v625 = vpop.f32.mrb[0].mxu0
      %v626 = vadd.f32 0.0, %v625
      %v627 = vpop.f32.mrb[0].mxu0
      %628 = vmatprep.mubr.bf16.mxu0 0
      %629 = vmatmul.mubr.bf16.gmra.mrb[0].mxu0 %v317
      %v630 = vpop.f32.mrb[0].mxu0
      %v631 = vadd.f32 0.0, %v630
      %v632 = vpop.f32.mrb[0].mxu0
      %v633 = vpop.f32.mrb[0].mxu0
      %v634 = vadd.f32 0.0, %v633
      %v635 = vpop.f32.mrb[0].mxu0
      %636 = vmatprep.mubr.bf16.mxu0 0
      %637 = vmatmul.mubr.bf16.gmra.mrb[0].mxu0 %v320
      %v638 = vpop.f32.mrb[0].mxu0
      %v639 = vadd.f32 0.0, %v638
      %v640 = vpop.f32.mrb[0].mxu0
      %v641 = vpop.f32.mrb[0].mxu0
      %v642 = vadd.f32 0.0, %v641
      %v643 = vpop.f32.mrb[0].mxu0
      %644 = vmatprep.mubr.bf16.mxu0 0
      %645 = vmatmul.mubr.bf16.gmra.mrb[0].mxu0 %v323
      %v646 = vpop.f32.mrb[0].mxu0
      %v647 = vadd.f32 0.0, %v646
      %v648 = vpop.f32.mrb[0].mxu0
      %v649 = vpop.f32.mrb[0].mxu0
      %v650 = vadd.f32 0.0, %v649
      %v651 = vpop.f32.mrb[0].mxu0
      %652 = vmatprep.mubr.bf16.mxu0 0
      %653 = vmatmul.mubr.bf16.gmra.mrb[0].mxu0 %v562
      %v654 = vpop.f32.mrb[0].mxu0
      %v655 = vadd.f32 0.0, %v654
      %v656 = vpop.f32.mrb[0].mxu0
      %v657 = vpop.f32.mrb[0].mxu0
      %v658 = vadd.f32 0.0, %v657
      %v659 = vpop.f32.mrb[0].mxu0
      %660 = vdwg.mxu0
      %v661 = vadd.f32 %v477, %v599
      %v662 = vadd.f32 %v480, %v602
      %v663 = vadd.f32 %v485, %v607
      %v664 = vadd.f32 %v488, %v610
      %v665 = vadd.f32 %v493, %v615
      %v666 = vadd.f32 %v496, %v618
      %v667 = vadd.f32 %v501, %v623
      %v668 = vadd.f32 %v504, %v626
      %v669 = vadd.f32 %v509, %v631
      %v670 = vadd.f32 %v512, %v634
      %v671 = vadd.f32 %v517, %v639
      %v672 = vadd.f32 %v520, %v642
      %v673 = vadd.f32 %v525, %v647
      %v674 = vadd.f32 %v528, %v650
      %v675 = vadd.f32 %v533, %v655
      %v676 = vadd.f32 %v536, %v658
      %vm677 = vsmask.f32 3328
      %vm678 = vsmask.f32 7440
      %vm679 = vmor %vm677, %vm678
      %v681 = vshrl.u32 %v209, 16
      %v683 = vrot.slane %v681, 4
      %v684 = vshll.u32 %v209, 16
      %v686 = vrot.slane %v684, 5
      %v687 = vor.u32 %v683, %v686
      %v688 = vrot.slane %v687, 4
      %v690 = vshll.u32 %v210, 16
      %v692 = vrot.slane %v690, 5
      %v693 = vsel %vm679, %v688, %v692
      %v694 = vshrl.u32 %v210, 16
      %v696 = vrot.slane %v694, 4
      %v697 = vor.u32 %v696, %v692
      %v698 = vrot.slane %v697, 4
      %v700 = vshll.u32 %v211, 16
      %v702 = vrot.slane %v700, 5
      %v703 = vsel %vm679, %v698, %v702
      %v705 = vshrl.u32 %v212, 16
      %v707 = vrot.slane %v705, 4
      %v708 = vshll.u32 %v212, 16
      %v710 = vrot.slane %v708, 5
      %v711 = vor.u32 %v707, %v710
      %v712 = vrot.slane %v711, 4
      %v714 = vshll.u32 %v213, 16
      %v716 = vrot.slane %v714, 5
      %v717 = vsel %vm679, %v712, %v716
      %v718 = vshrl.u32 %v213, 16
      %v720 = vrot.slane %v718, 4
      %v721 = vor.u32 %v720, %v716
      %v722 = vrot.slane %v721, 4
      %v724 = vshll.u32 %v214, 16
      %v726 = vrot.slane %v724, 5
      %v727 = vsel %vm679, %v722, %v726
      %v729 = vshrl.u32 %v215, 16
      %v731 = vrot.slane %v729, 4
      %v732 = vshll.u32 %v215, 16
      %v734 = vrot.slane %v732, 5
      %v735 = vor.u32 %v731, %v734
      %v736 = vrot.slane %v735, 4
      %v738 = vshll.u32 %v216, 16
      %v740 = vrot.slane %v738, 5
      %v741 = vsel %vm679, %v736, %v740
      %v742 = vshrl.u32 %v216, 16
      %v744 = vrot.slane %v742, 4
      %v745 = vor.u32 %v744, %v740
      %v746 = vrot.slane %v745, 4
      %v748 = vshll.u32 %v217, 16
      %v750 = vrot.slane %v748, 5
      %v751 = vsel %vm679, %v746, %v750
      %v753 = vshrl.u32 %v218, 16
      %v755 = vrot.slane %v753, 4
      %v756 = vshll.u32 %v218, 16
      %v758 = vrot.slane %v756, 5
      %v759 = vor.u32 %v755, %v758
      %v760 = vrot.slane %v759, 4
      %v762 = vshll.u32 %v219, 16
      %v764 = vrot.slane %v762, 5
      %v765 = vsel %vm679, %v760, %v764
      %v766 = vshrl.u32 %v219, 16
      %v768 = vrot.slane %v766, 4
      %v769 = vor.u32 %v768, %v764
      %v770 = vrot.slane %v769, 4
      %v772 = vshll.u32 %v220, 16
      %v774 = vrot.slane %v772, 5
      %v775 = vsel %vm679, %v770, %v774
      %v777 = vshrl.u32 %v221, 16
      %v779 = vrot.slane %v777, 4
      %v780 = vshll.u32 %v221, 16
      %v782 = vrot.slane %v780, 5
      %v783 = vor.u32 %v779, %v782
      %v784 = vrot.slane %v783, 4
      %v786 = vshll.u32 %v222, 16
      %v788 = vrot.slane %v786, 5
      %v789 = vsel %vm679, %v784, %v788
      %v790 = vshrl.u32 %v222, 16
      %v792 = vrot.slane %v790, 4
      %v793 = vor.u32 %v792, %v788
      %v794 = vrot.slane %v793, 4
      %v796 = vshll.u32 %v223, 16
      %v798 = vrot.slane %v796, 5
      %v799 = vsel %vm679, %v794, %v798
      %v801 = vshrl.u32 %v224, 16
      %v803 = vrot.slane %v801, 4
      %v804 = vshll.u32 %v224, 16
      %v806 = vrot.slane %v804, 5
      %v807 = vor.u32 %v803, %v806
      %v808 = vrot.slane %v807, 4
      %v810 = vshll.u32 %v225, 16
      %v812 = vrot.slane %v810, 5
      %v813 = vsel %vm679, %v808, %v812
      %v814 = vshrl.u32 %v225, 16
      %v816 = vrot.slane %v814, 4
      %v817 = vor.u32 %v816, %v812
      %v818 = vrot.slane %v817, 4
      %v820 = vshll.u32 %v226, 16
      %v822 = vrot.slane %v820, 5
      %v823 = vsel %vm679, %v818, %v822
      %v825 = vshrl.u32 %v227, 16
      %v827 = vrot.slane %v825, 4
      %v828 = vshll.u32 %v227, 16
      %v830 = vrot.slane %v828, 5
      %v831 = vor.u32 %v827, %v830
      %v832 = vrot.slane %v831, 4
      %v834 = vshll.u32 %v228, 16
      %v836 = vrot.slane %v834, 5
      %v837 = vsel %vm679, %v832, %v836
      %v838 = vshrl.u32 %v228, 16
      %v840 = vrot.slane %v838, 4
      %v841 = vor.u32 %v840, %v836
      %v842 = vrot.slane %v841, 4
      %v844 = vshll.u32 %v229, 16
      %v846 = vrot.slane %v844, 5
      %v847 = vsel %vm679, %v842, %v846
      %v849 = vshrl.u32 %v230, 16
      %v851 = vrot.slane %v849, 4
      %v852 = vshll.u32 %v230, 16
      %v854 = vrot.slane %v852, 5
      %v855 = vor.u32 %v851, %v854
      %v856 = vrot.slane %v855, 4
      %v858 = vshll.u32 %v231, 16
      %v860 = vrot.slane %v858, 5
      %v861 = vsel %vm679, %v856, %v860
      %v862 = vshrl.u32 %v231, 16
      %v864 = vrot.slane %v862, 4
      %v865 = vor.u32 %v864, %v860
      %v866 = vrot.slane %v865, 4
      %v868 = vshll.u32 %v232, 16
      %v870 = vrot.slane %v868, 5
      %v871 = vsel %vm679, %v866, %v870
      %s872 = scalar_lea.vmem %s1, 16
      %v873 = vld [vmem:[%s872] sm:$0xf]
      %v874 = vld [vmem:[%s872 + $0x4] sm:$0xf]
      %v875 = vld [vmem:[%s872 + $0x8] sm:$0xf]
      %v876 = vld [vmem:[%s872 + $0xc] sm:$0xf]
      %v877 = vunpack.c.l.b16 %v693
      %v878 = vunpack.c.l.b16 %v703
      %v879 = vunpack.c.l.b16 %v717
      %v880 = vunpack.c.l.b16 %v727
      %v881 = vunpack.c.l.b16 %v741
      %v882 = vunpack.c.l.b16 %v751
      %v883 = vunpack.c.l.b16 %v765
      %v884 = vunpack.c.l.b16 %v775
      %v885 = vunpack.c.l.b16 %v789
      %v886 = vunpack.c.l.b16 %v799
      %v887 = vunpack.c.l.b16 %v813
      %v888 = vunpack.c.l.b16 %v823
      %v889 = vunpack.c.l.b16 %v837
      %v890 = vunpack.c.l.b16 %v847
      %v891 = vunpack.c.l.b16 %v861
      %v892 = vunpack.c.l.b16 %v871
      %v893 = vpack.c.b16 %v878, %v877
      %v894 = vpack.c.b16 %v880, %v879
      %v895 = vpack.c.b16 %v882, %v881
      %v896 = vpack.c.b16 %v884, %v883
      %v897 = vpack.c.b16 %v886, %v885
      %v898 = vpack.c.b16 %v888, %v887
      %v899 = vpack.c.b16 %v890, %v889
      %v900 = vpack.c.b16 %v892, %v891
      %v905 = vunpack.c.l.b16 %v873
      %v906 = vunpack.c.l.b16 %v874
      %v907 = vunpack.c.l.b16 %v875
      %v908 = vunpack.c.l.b16 %v876
      %v909 = vpack.c.b16 %v906, %v905
      %v910 = vpack.c.b16 %v908, %v907
      %v914 = vsel %vm300, %v893, 0
      %v917 = vsel %vm300, %v894, 0
      %v920 = vsel %vm300, %v895, 0
      %v923 = vsel %vm300, %v896, 0
      %v926 = vsel %vm300, %v897, 0
      %v929 = vsel %vm300, %v898, 0
      %v932 = vsel %vm300, %v899, 0
      %v935 = vsel %vm300, %v900, 0
      %937 = vmatprep.subr.bf16.mxu0 0
      %938 = vmatpush1.bf16.msra.mxu0 %v909
      %939 = vmatprep.subr.bf16.mxu0 0
      %940 = vmatpush1.bf16.msra.mxu0 %v910
      %941 = vmatprep.subr.bf16.mxu0 0
      %942 = vmatpush1.bf16.msra.mxu0 0
      %943 = vmatprep.subr.bf16.mxu0 0
      %944 = vmatpush1.bf16.msra.mxu0 0
      %945 = vmatprep.subr.bf16.mxu0 0
      %946 = vmatpush1.bf16.msra.mxu0 0
      %947 = vmatprep.subr.bf16.mxu0 0
      %948 = vmatpush1.bf16.msra.mxu0 0
      %949 = vmatprep.subr.bf16.mxu0 0
      %950 = vmatpush1.bf16.msra.mxu0 0
      %951 = vmatprep.subr.bf16.mxu0 0
      %952 = vmatpush1.bf16.msra.mxu0 0
      %953 = vmatprep.subr.bf16.mxu0 0
      %954 = vmatpush1.bf16.msra.mxu0 0
      %955 = vmatprep.subr.bf16.mxu0 0
      %956 = vmatpush1.bf16.msra.mxu0 0
      %957 = vmatprep.subr.bf16.mxu0 0
      %958 = vmatpush1.bf16.msra.mxu0 0
      %959 = vmatprep.subr.bf16.mxu0 0
      %960 = vmatpush1.bf16.msra.mxu0 0
      %961 = vmatprep.subr.bf16.mxu0 0
      %962 = vmatpush1.bf16.msra.mxu0 0
      %963 = vmatprep.subr.bf16.mxu0 0
      %964 = vmatpush1.bf16.msra.mxu0 0
      %965 = vmatprep.subr.bf16.mxu0 0
      %966 = vmatpush1.bf16.msra.mxu0 0
      %967 = vmatprep.subr.bf16.mxu0 0
      %968 = vmatpush1.bf16.msra.mxu0 0
      %969 = vmatprep.mubr.bf16.mxu0 0
      %970 = vmatmul.mubr.bf16.gmra.mrb[0].mxu0 %v914
      %v971 = vpop.f32.mrb[0].mxu0
      %v972 = vadd.f32 0.0, %v971
      %v973 = vpop.f32.mrb[0].mxu0
      %v974 = vpop.f32.mrb[0].mxu0
      %v975 = vadd.f32 0.0, %v974
      %v976 = vpop.f32.mrb[0].mxu0
      %977 = vmatprep.mubr.bf16.mxu0 0
      %978 = vmatmul.mubr.bf16.gmra.mrb[0].mxu0 %v917
      %v979 = vpop.f32.mrb[0].mxu0
      %v980 = vadd.f32 0.0, %v979
      %v981 = vpop.f32.mrb[0].mxu0
      %v982 = vpop.f32.mrb[0].mxu0
      %v983 = vadd.f32 0.0, %v982
      %v984 = vpop.f32.mrb[0].mxu0
      %985 = vmatprep.mubr.bf16.mxu0 0
      %986 = vmatmul.mubr.bf16.gmra.mrb[0].mxu0 %v920
      %v987 = vpop.f32.mrb[0].mxu0
      %v988 = vadd.f32 0.0, %v987
      %v989 = vpop.f32.mrb[0].mxu0
      %v990 = vpop.f32.mrb[0].mxu0
      %v991 = vadd.f32 0.0, %v990
      %v992 = vpop.f32.mrb[0].mxu0
      %993 = vmatprep.mubr.bf16.mxu0 0
      %994 = vmatmul.mubr.bf16.gmra.mrb[0].mxu0 %v923
      %v995 = vpop.f32.mrb[0].mxu0
      %v996 = vadd.f32 0.0, %v995
      %v997 = vpop.f32.mrb[0].mxu0
      %v998 = vpop.f32.mrb[0].mxu0
      %v999 = vadd.f32 0.0, %v998
      %v1000 = vpop.f32.mrb[0].mxu0
      %1001 = vmatprep.mubr.bf16.mxu0 0
      %1002 = vmatmul.mubr.bf16.gmra.mrb[0].mxu0 %v926
      %v1003 = vpop.f32.mrb[0].mxu0
      %v1004 = vadd.f32 0.0, %v1003
      %v1005 = vpop.f32.mrb[0].mxu0
      %v1006 = vpop.f32.mrb[0].mxu0
      %v1007 = vadd.f32 0.0, %v1006
      %v1008 = vpop.f32.mrb[0].mxu0
      %1009 = vmatprep.mubr.bf16.mxu0 0
      %1010 = vmatmul.mubr.bf16.gmra.mrb[0].mxu0 %v929
      %v1011 = vpop.f32.mrb[0].mxu0
      %v1012 = vadd.f32 0.0, %v1011
      %v1013 = vpop.f32.mrb[0].mxu0
      %v1014 = vpop.f32.mrb[0].mxu0
      %v1015 = vadd.f32 0.0, %v1014
      %v1016 = vpop.f32.mrb[0].mxu0
      %1017 = vmatprep.mubr.bf16.mxu0 0
      %1018 = vmatmul.mubr.bf16.gmra.mrb[0].mxu0 %v932
      %v1019 = vpop.f32.mrb[0].mxu0
      %v1020 = vadd.f32 0.0, %v1019
      %v1021 = vpop.f32.mrb[0].mxu0
      %v1022 = vpop.f32.mrb[0].mxu0
      %v1023 = vadd.f32 0.0, %v1022
      %v1024 = vpop.f32.mrb[0].mxu0
      %1025 = vmatprep.mubr.bf16.mxu0 0
      %1026 = vmatmul.mubr.bf16.gmra.mrb[0].mxu0 %v935
      %v1027 = vpop.f32.mrb[0].mxu0
      %v1028 = vadd.f32 0.0, %v1027
      %v1029 = vpop.f32.mrb[0].mxu0
      %v1030 = vpop.f32.mrb[0].mxu0
      %v1031 = vadd.f32 0.0, %v1030
      %v1032 = vpop.f32.mrb[0].mxu0
      %1033 = vdwg.mxu0
      %v1034 = vadd.f32 %v661, %v972
      %v1035 = vadd.f32 %v662, %v975
      %v1036 = vadd.f32 %v663, %v980
      %v1037 = vadd.f32 %v664, %v983
      %v1038 = vadd.f32 %v665, %v988
      %v1039 = vadd.f32 %v666, %v991
      %v1040 = vadd.f32 %v667, %v996
      %v1041 = vadd.f32 %v668, %v999
      %v1042 = vadd.f32 %v669, %v1004
      %v1043 = vadd.f32 %v670, %v1007
      %v1044 = vadd.f32 %v671, %v1012
      %v1045 = vadd.f32 %v672, %v1015
      %v1046 = vadd.f32 %v673, %v1020
      %v1047 = vadd.f32 %v674, %v1023
      %v1048 = vadd.f32 %v675, %v1028
      %v1049 = vadd.f32 %v676, %v1031
      %v1051 = vshrl.u32 %v233, 16
      %v1053 = vrot.slane %v1051, 4
      %v1054 = vshll.u32 %v233, 16
      %v1056 = vrot.slane %v1054, 5
      %v1057 = vor.u32 %v1053, %v1056
      %v1058 = vrot.slane %v1057, 4
      %v1060 = vshll.u32 %v234, 16
      %v1062 = vrot.slane %v1060, 5
      %v1063 = vsel %vm679, %v1058, %v1062
      %v1064 = vshrl.u32 %v234, 16
      %v1066 = vrot.slane %v1064, 4
      %v1067 = vor.u32 %v1066, %v1062
      %v1068 = vrot.slane %v1067, 4
      %v1070 = vshll.u32 %v235, 16
      %v1072 = vrot.slane %v1070, 5
      %v1073 = vsel %vm679, %v1068, %v1072
      %s1074 = scalar_lea.vmem %s1, 64
      %v1075 = vld [vmem:[%s1074] sm:$0xf]
      %v1076 = vld [vmem:[%s1074 + $0x4] sm:$0xf]
      %v1077 = vld [vmem:[%s1074 + $0x8] sm:$0xf]
      %v1078 = vld [vmem:[%s1074 + $0xc] sm:$0xf]
      %v1079 = vunpack.c.l.b16 %v1063
      %v1080 = vunpack.c.l.b16 %v1073
      %v1081 = vpack.c.b16 %v1080, %v1079
      %v1086 = vunpack.c.l.b16 %v1075
      %v1087 = vunpack.c.l.b16 %v1076
      %v1088 = vunpack.c.l.b16 %v1077
      %v1089 = vunpack.c.l.b16 %v1078
      %v1090 = vpack.c.b16 %v1087, %v1086
      %v1091 = vpack.c.b16 %v1089, %v1088
      %v1095 = vsel %vm300, %v1081, 0
      %1097 = vmatprep.subr.bf16.mxu0 0
      %1098 = vmatpush1.bf16.msra.mxu0 %v1090
      %1099 = vmatprep.subr.bf16.mxu0 0
      %1100 = vmatpush1.bf16.msra.mxu0 %v1091
      %1101 = vmatprep.subr.bf16.mxu0 0
      %1102 = vmatpush1.bf16.msra.mxu0 0
      %1103 = vmatprep.subr.bf16.mxu0 0
      %1104 = vmatpush1.bf16.msra.mxu0 0
      %1105 = vmatprep.subr.bf16.mxu0 0
      %1106 = vmatpush1.bf16.msra.mxu0 0
      %1107 = vmatprep.subr.bf16.mxu0 0
      %1108 = vmatpush1.bf16.msra.mxu0 0
      %1109 = vmatprep.subr.bf16.mxu0 0
      %1110 = vmatpush1.bf16.msra.mxu0 0
      %1111 = vmatprep.subr.bf16.mxu0 0
      %1112 = vmatpush1.bf16.msra.mxu0 0
      %1113 = vmatprep.subr.bf16.mxu0 0
      %1114 = vmatpush1.bf16.msra.mxu0 0
      %1115 = vmatprep.subr.bf16.mxu0 0
      %1116 = vmatpush1.bf16.msra.mxu0 0
      %1117 = vmatprep.subr.bf16.mxu0 0
      %1118 = vmatpush1.bf16.msra.mxu0 0
      %1119 = vmatprep.subr.bf16.mxu0 0
      %1120 = vmatpush1.bf16.msra.mxu0 0
      %1121 = vmatprep.subr.bf16.mxu0 0
      %1122 = vmatpush1.bf16.msra.mxu0 0
      %1123 = vmatprep.subr.bf16.mxu0 0
      %1124 = vmatpush1.bf16.msra.mxu0 0
      %1125 = vmatprep.subr.bf16.mxu0 0
      %1126 = vmatpush1.bf16.msra.mxu0 0
      %1127 = vmatprep.subr.bf16.mxu0 0
      %1128 = vmatpush1.bf16.msra.mxu0 0
      %1129 = vmatprep.mubr.bf16.mxu0 0
      %1130 = vmatmul.mubr.bf16.gmra.mrb[0].mxu0 %v917
      %v1131 = vpop.f32.mrb[0].mxu0
      %v1132 = vadd.f32 0.0, %v1131
      %v1133 = vpop.f32.mrb[0].mxu0
      %v1134 = vpop.f32.mrb[0].mxu0
      %v1135 = vadd.f32 0.0, %v1134
      %v1136 = vpop.f32.mrb[0].mxu0
      %1137 = vmatprep.mubr.bf16.mxu0 0
      %1138 = vmatmul.mubr.bf16.gmra.mrb[0].mxu0 %v920
      %v1139 = vpop.f32.mrb[0].mxu0
      %v1140 = vadd.f32 0.0, %v1139
      %v1141 = vpop.f32.mrb[0].mxu0
      %v1142 = vpop.f32.mrb[0].mxu0
      %v1143 = vadd.f32 0.0, %v1142
      %v1144 = vpop.f32.mrb[0].mxu0
      %1145 = vmatprep.mubr.bf16.mxu0 0
      %1146 = vmatmul.mubr.bf16.gmra.mrb[0].mxu0 %v923
      %v1147 = vpop.f32.mrb[0].mxu0
      %v1148 = vadd.f32 0.0, %v1147
      %v1149 = vpop.f32.mrb[0].mxu0
      %v1150 = vpop.f32.mrb[0].mxu0
      %v1151 = vadd.f32 0.0, %v1150
      %v1152 = vpop.f32.mrb[0].mxu0
      %1153 = vmatprep.mubr.bf16.mxu0 0
      %1154 = vmatmul.mubr.bf16.gmra.mrb[0].mxu0 %v926
      %v1155 = vpop.f32.mrb[0].mxu0
      %v1156 = vadd.f32 0.0, %v1155
      %v1157 = vpop.f32.mrb[0].mxu0
      %v1158 = vpop.f32.mrb[0].mxu0
      %v1159 = vadd.f32 0.0, %v1158
      %v1160 = vpop.f32.mrb[0].mxu0
      %1161 = vmatprep.mubr.bf16.mxu0 0
      %1162 = vmatmul.mubr.bf16.gmra.mrb[0].mxu0 %v929
      %v1163 = vpop.f32.mrb[0].mxu0
      %v1164 = vadd.f32 0.0, %v1163
      %v1165 = vpop.f32.mrb[0].mxu0
      %v1166 = vpop.f32.mrb[0].mxu0
      %v1167 = vadd.f32 0.0, %v1166
      %v1168 = vpop.f32.mrb[0].mxu0
      %1169 = vmatprep.mubr.bf16.mxu0 0
      %1170 = vmatmul.mubr.bf16.gmra.mrb[0].mxu0 %v932
      %v1171 = vpop.f32.mrb[0].mxu0
      %v1172 = vadd.f32 0.0, %v1171
      %v1173 = vpop.f32.mrb[0].mxu0
      %v1174 = vpop.f32.mrb[0].mxu0
      %v1175 = vadd.f32 0.0, %v1174
      %v1176 = vpop.f32.mrb[0].mxu0
      %1177 = vmatprep.mubr.bf16.mxu0 0
      %1178 = vmatmul.mubr.bf16.gmra.mrb[0].mxu0 %v935
      %v1179 = vpop.f32.mrb[0].mxu0
      %v1180 = vadd.f32 0.0, %v1179
      %v1181 = vpop.f32.mrb[0].mxu0
      %v1182 = vpop.f32.mrb[0].mxu0
      %v1183 = vadd.f32 0.0, %v1182
      %v1184 = vpop.f32.mrb[0].mxu0
      %1185 = vmatprep.mubr.bf16.mxu0 0
      %1186 = vmatmul.mubr.bf16.gmra.mrb[0].mxu0 %v1095
      %v1187 = vpop.f32.mrb[0].mxu0
      %v1188 = vadd.f32 0.0, %v1187
      %v1189 = vpop.f32.mrb[0].mxu0
      %v1190 = vpop.f32.mrb[0].mxu0
      %v1191 = vadd.f32 0.0, %v1190
      %v1192 = vpop.f32.mrb[0].mxu0
      %1193 = vdwg.mxu0
      %v1194 = vadd.f32 %v1034, %v1132
      %v1195 = vadd.f32 %v1035, %v1135
      %v1196 = vadd.f32 %v1036, %v1140
      %v1197 = vadd.f32 %v1037, %v1143
      %v1198 = vadd.f32 %v1038, %v1148
      %v1199 = vadd.f32 %v1039, %v1151
      %v1200 = vadd.f32 %v1040, %v1156
      %v1201 = vadd.f32 %v1041, %v1159
      %v1202 = vadd.f32 %v1042, %v1164
      %v1203 = vadd.f32 %v1043, %v1167
      %v1204 = vadd.f32 %v1044, %v1172
      %v1205 = vadd.f32 %v1045, %v1175
      %v1206 = vadd.f32 %v1046, %v1180
      %v1207 = vadd.f32 %v1047, %v1183
      %v1208 = vadd.f32 %v1048, %v1188
      %v1209 = vadd.f32 %v1049, %v1191
      %v1211 = vshrl.u32 %v236, 16
      %v1213 = vrot.slane %v1211, 4
      %v1214 = vshll.u32 %v236, 16
      %v1216 = vrot.slane %v1214, 5
      %v1217 = vor.u32 %v1213, %v1216
      %v1218 = vrot.slane %v1217, 4
      %v1220 = vshll.u32 %v237, 16
      %v1222 = vrot.slane %v1220, 5
      %v1223 = vsel %vm679, %v1218, %v1222
      %v1224 = vshrl.u32 %v237, 16
      %v1226 = vrot.slane %v1224, 4
      %v1227 = vor.u32 %v1226, %v1222
      %v1228 = vrot.slane %v1227, 4
      %v1230 = vshll.u32 %v238, 16
      %v1232 = vrot.slane %v1230, 5
      %v1233 = vsel %vm679, %v1228, %v1232
      %s1234 = scalar_lea.vmem %s1, 112
      %v1235 = vld [vmem:[%s1234] sm:$0xf]
      %v1236 = vld [vmem:[%s1234 + $0x4] sm:$0xf]
      %v1237 = vld [vmem:[%s1234 + $0x8] sm:$0xf]
      %v1238 = vld [vmem:[%s1234 + $0xc] sm:$0xf]
      %v1239 = vunpack.c.l.b16 %v1223
      %v1240 = vunpack.c.l.b16 %v1233
      %v1241 = vpack.c.b16 %v1240, %v1239
      %v1246 = vunpack.c.l.b16 %v1235
      %v1247 = vunpack.c.l.b16 %v1236
      %v1248 = vunpack.c.l.b16 %v1237
      %v1249 = vunpack.c.l.b16 %v1238
      %v1250 = vpack.c.b16 %v1247, %v1246
      %v1251 = vpack.c.b16 %v1249, %v1248
      %v1255 = vsel %vm300, %v1241, 0
      %1257 = vmatprep.subr.bf16.mxu0 0
      %1258 = vmatpush1.bf16.msra.mxu0 %v1250
      %1259 = vmatprep.subr.bf16.mxu0 0
      %1260 = vmatpush1.bf16.msra.mxu0 %v1251
      %1261 = vmatprep.subr.bf16.mxu0 0
      %1262 = vmatpush1.bf16.msra.mxu0 0
      %1263 = vmatprep.subr.bf16.mxu0 0
      %1264 = vmatpush1.bf16.msra.mxu0 0
      %1265 = vmatprep.subr.bf16.mxu0 0
      %1266 = vmatpush1.bf16.msra.mxu0 0
      %1267 = vmatprep.subr.bf16.mxu0 0
      %1268 = vmatpush1.bf16.msra.mxu0 0
      %1269 = vmatprep.subr.bf16.mxu0 0
      %1270 = vmatpush1.bf16.msra.mxu0 0
      %1271 = vmatprep.subr.bf16.mxu0 0
      %1272 = vmatpush1.bf16.msra.mxu0 0
      %1273 = vmatprep.subr.bf16.mxu0 0
      %1274 = vmatpush1.bf16.msra.mxu0 0
      %1275 = vmatprep.subr.bf16.mxu0 0
      %1276 = vmatpush1.bf16.msra.mxu0 0
      %1277 = vmatprep.subr.bf16.mxu0 0
      %1278 = vmatpush1.bf16.msra.mxu0 0
      %1279 = vmatprep.subr.bf16.mxu0 0
      %1280 = vmatpush1.bf16.msra.mxu0 0
      %1281 = vmatprep.subr.bf16.mxu0 0
      %1282 = vmatpush1.bf16.msra.mxu0 0
      %1283 = vmatprep.subr.bf16.mxu0 0
      %1284 = vmatpush1.bf16.msra.mxu0 0
      %1285 = vmatprep.subr.bf16.mxu0 0
      %1286 = vmatpush1.bf16.msra.mxu0 0
      %1287 = vmatprep.subr.bf16.mxu0 0
      %1288 = vmatpush1.bf16.msra.mxu0 0
      %1289 = vmatprep.mubr.bf16.mxu0 0
      %1290 = vmatmul.mubr.bf16.gmra.mrb[0].mxu0 %v920
      %v1291 = vpop.f32.mrb[0].mxu0
      %v1292 = vadd.f32 0.0, %v1291
      %v1293 = vpop.f32.mrb[0].mxu0
      %v1294 = vpop.f32.mrb[0].mxu0
      %v1295 = vadd.f32 0.0, %v1294
      %v1296 = vpop.f32.mrb[0].mxu0
      %1297 = vmatprep.mubr.bf16.mxu0 0
      %1298 = vmatmul.mubr.bf16.gmra.mrb[0].mxu0 %v923
      %v1299 = vpop.f32.mrb[0].mxu0
      %v1300 = vadd.f32 0.0, %v1299
      %v1301 = vpop.f32.mrb[0].mxu0
      %v1302 = vpop.f32.mrb[0].mxu0
      %v1303 = vadd.f32 0.0, %v1302
      %v1304 = vpop.f32.mrb[0].mxu0
      %1305 = vmatprep.mubr.bf16.mxu0 0
      %1306 = vmatmul.mubr.bf16.gmra.mrb[0].mxu0 %v926
      %v1307 = vpop.f32.mrb[0].mxu0
      %v1308 = vadd.f32 0.0, %v1307
      %v1309 = vpop.f32.mrb[0].mxu0
      %v1310 = vpop.f32.mrb[0].mxu0
      %v1311 = vadd.f32 0.0, %v1310
      %v1312 = vpop.f32.mrb[0].mxu0
      %1313 = vmatprep.mubr.bf16.mxu0 0
      %1314 = vmatmul.mubr.bf16.gmra.mrb[0].mxu0 %v929
      %v1315 = vpop.f32.mrb[0].mxu0
      %v1316 = vadd.f32 0.0, %v1315
      %v1317 = vpop.f32.mrb[0].mxu0
      %v1318 = vpop.f32.mrb[0].mxu0
      %v1319 = vadd.f32 0.0, %v1318
      %v1320 = vpop.f32.mrb[0].mxu0
      %1321 = vmatprep.mubr.bf16.mxu0 0
      %1322 = vmatmul.mubr.bf16.gmra.mrb[0].mxu0 %v932
      %v1323 = vpop.f32.mrb[0].mxu0
      %v1324 = vadd.f32 0.0, %v1323
      %v1325 = vpop.f32.mrb[0].mxu0
      %v1326 = vpop.f32.mrb[0].mxu0
      %v1327 = vadd.f32 0.0, %v1326
      %v1328 = vpop.f32.mrb[0].mxu0
      %1329 = vmatprep.mubr.bf16.mxu0 0
      %1330 = vmatmul.mubr.bf16.gmra.mrb[0].mxu0 %v935
      %v1331 = vpop.f32.mrb[0].mxu0
      %v1332 = vadd.f32 0.0, %v1331
      %v1333 = vpop.f32.mrb[0].mxu0
      %v1334 = vpop.f32.mrb[0].mxu0
      %v1335 = vadd.f32 0.0, %v1334
      %v1336 = vpop.f32.mrb[0].mxu0
      %1337 = vmatprep.mubr.bf16.mxu0 0
      %1338 = vmatmul.mubr.bf16.gmra.mrb[0].mxu0 %v1095
      %v1339 = vpop.f32.mrb[0].mxu0
      %v1340 = vadd.f32 0.0, %v1339
      %v1341 = vpop.f32.mrb[0].mxu0
      %v1342 = vpop.f32.mrb[0].mxu0
      %v1343 = vadd.f32 0.0, %v1342
      %v1344 = vpop.f32.mrb[0].mxu0
      %1345 = vmatprep.mubr.bf16.mxu0 0
      %1346 = vmatmul.mubr.bf16.gmra.mrb[0].mxu0 %v1255
      %v1347 = vpop.f32.mrb[0].mxu0
      %v1348 = vadd.f32 0.0, %v1347
      %v1349 = vpop.f32.mrb[0].mxu0
      %v1350 = vpop.f32.mrb[0].mxu0
      %v1351 = vadd.f32 0.0, %v1350
      %v1352 = vpop.f32.mrb[0].mxu0
      %1353 = vdwg.mxu0
      %v1354 = vadd.f32 %v1194, %v1292
      %v1355 = vadd.f32 %v1195, %v1295
      %v1356 = vadd.f32 %v1196, %v1300
      %v1357 = vadd.f32 %v1197, %v1303
      %v1358 = vadd.f32 %v1198, %v1308
      %v1359 = vadd.f32 %v1199, %v1311
      %v1360 = vadd.f32 %v1200, %v1316
      %v1361 = vadd.f32 %v1201, %v1319
      %v1362 = vadd.f32 %v1202, %v1324
      %v1363 = vadd.f32 %v1203, %v1327
      %v1364 = vadd.f32 %v1204, %v1332
      %v1365 = vadd.f32 %v1205, %v1335
      %v1366 = vadd.f32 %v1206, %v1340
      %v1367 = vadd.f32 %v1207, %v1343
      %v1368 = vadd.f32 %v1208, %v1348
      %v1369 = vadd.f32 %v1209, %v1351
      %vm1378 = vcmask 1042432
      %vm1379 = vcmask 1046532
      %vm1380 = vmor %vm1378, %vm1379
      %v1381 = vrot.slane %v209, 5
      %v1382 = vrot.slane %v1381, 4
      %v1383 = vrot.slane %v210, 5
      %v1384 = vsel %vm1380, %v1382, %v1383
      %v1385 = vrot.slane %v1383, 4
      %v1386 = vrot.slane %v211, 5
      %v1387 = vsel %vm1380, %v1385, %v1386
      %v1388 = vrot.slane %v212, 5
      %v1389 = vrot.slane %v1388, 4
      %v1390 = vrot.slane %v213, 5
      %v1391 = vsel %vm1380, %v1389, %v1390
      %v1392 = vrot.slane %v1390, 4
      %v1393 = vrot.slane %v214, 5
      %v1394 = vsel %vm1380, %v1392, %v1393
      %v1395 = vrot.slane %v215, 5
      %v1396 = vrot.slane %v1395, 4
      %v1397 = vrot.slane %v216, 5
      %v1398 = vsel %vm1380, %v1396, %v1397
      %v1399 = vrot.slane %v1397, 4
      %v1400 = vrot.slane %v217, 5
      %v1401 = vsel %vm1380, %v1399, %v1400
      %v1402 = vrot.slane %v218, 5
      %v1403 = vrot.slane %v1402, 4
      %v1404 = vrot.slane %v219, 5
      %v1405 = vsel %vm1380, %v1403, %v1404
      %v1406 = vrot.slane %v1404, 4
      %v1407 = vrot.slane %v220, 5
      %v1408 = vsel %vm1380, %v1406, %v1407
      %v1409 = vrot.slane %v221, 5
      %v1410 = vrot.slane %v1409, 4
      %v1411 = vrot.slane %v222, 5
      %v1412 = vsel %vm1380, %v1410, %v1411
      %v1413 = vrot.slane %v1411, 4
      %v1414 = vrot.slane %v223, 5
      %v1415 = vsel %vm1380, %v1413, %v1414
      %v1416 = vrot.slane %v224, 5
      %v1417 = vrot.slane %v1416, 4
      %v1418 = vrot.slane %v225, 5
      %v1419 = vsel %vm1380, %v1417, %v1418
      %v1420 = vrot.slane %v1418, 4
      %v1421 = vrot.slane %v226, 5
      %v1422 = vsel %vm1380, %v1420, %v1421
      %v1423 = vrot.slane %v227, 5
      %v1424 = vrot.slane %v1423, 4
      %v1425 = vrot.slane %v228, 5
      %v1426 = vsel %vm1380, %v1424, %v1425
      %v1427 = vrot.slane %v1425, 4
      %v1428 = vrot.slane %v229, 5
      %v1429 = vsel %vm1380, %v1427, %v1428
      %v1430 = vrot.slane %v230, 5
      %v1431 = vrot.slane %v1430, 4
      %v1432 = vrot.slane %v231, 5
      %v1433 = vsel %vm1380, %v1431, %v1432
      %v1434 = vrot.slane %v1432, 4
      %v1435 = vrot.slane %v232, 5
      %v1436 = vsel %vm1380, %v1434, %v1435
      %s1437 = scalar_lea.vmem %s1, 32
      %v1438 = vld [vmem:[%s1437] sm:$0xf]
      %v1439 = vld [vmem:[%s1437 + $0x4] sm:$0xf]
      %v1440 = vld [vmem:[%s1437 + $0x8] sm:$0xf]
      %v1441 = vld [vmem:[%s1437 + $0xc] sm:$0xf]
      %v1442 = vunpack.c.l.b16 %v1384
      %v1443 = vunpack.c.l.b16 %v1387
      %v1444 = vunpack.c.l.b16 %v1391
      %v1445 = vunpack.c.l.b16 %v1394
      %v1446 = vunpack.c.l.b16 %v1398
      %v1447 = vunpack.c.l.b16 %v1401
      %v1448 = vunpack.c.l.b16 %v1405
      %v1449 = vunpack.c.l.b16 %v1408
      %v1450 = vunpack.c.l.b16 %v1412
      %v1451 = vunpack.c.l.b16 %v1415
      %v1452 = vunpack.c.l.b16 %v1419
      %v1453 = vunpack.c.l.b16 %v1422
      %v1454 = vunpack.c.l.b16 %v1426
      %v1455 = vunpack.c.l.b16 %v1429
      %v1456 = vunpack.c.l.b16 %v1433
      %v1457 = vunpack.c.l.b16 %v1436
      %v1458 = vpack.c.b16 %v1443, %v1442
      %v1459 = vpack.c.b16 %v1445, %v1444
      %v1460 = vpack.c.b16 %v1447, %v1446
      %v1461 = vpack.c.b16 %v1449, %v1448
      %v1462 = vpack.c.b16 %v1451, %v1450
      %v1463 = vpack.c.b16 %v1453, %v1452
      %v1464 = vpack.c.b16 %v1455, %v1454
      %v1465 = vpack.c.b16 %v1457, %v1456
      %v1470 = vunpack.c.l.b16 %v1438
      %v1471 = vunpack.c.l.b16 %v1439
      %v1472 = vunpack.c.l.b16 %v1440
      %v1473 = vunpack.c.l.b16 %v1441
      %v1474 = vpack.c.b16 %v1471, %v1470
      %v1475 = vpack.c.b16 %v1473, %v1472
      %v1479 = vsel %vm300, %v1458, 0
      %v1482 = vsel %vm300, %v1459, 0
      %v1485 = vsel %vm300, %v1460, 0
      %v1488 = vsel %vm300, %v1461, 0
      %v1491 = vsel %vm300, %v1462, 0
      %v1494 = vsel %vm300, %v1463, 0
      %v1497 = vsel %vm300, %v1464, 0
      %v1500 = vsel %vm300, %v1465, 0
      %1502 = vmatprep.subr.bf16.mxu0 0
      %1503 = vmatpush1.bf16.msra.mxu0 %v1474
      %1504 = vmatprep.subr.bf16.mxu0 0
      %1505 = vmatpush1.bf16.msra.mxu0 %v1475
      %1506 = vmatprep.subr.bf16.mxu0 0
      %1507 = vmatpush1.bf16.msra.mxu0 0
      %1508 = vmatprep.subr.bf16.mxu0 0
      %1509 = vmatpush1.bf16.msra.mxu0 0
      %1510 = vmatprep.subr.bf16.mxu0 0
      %1511 = vmatpush1.bf16.msra.mxu0 0
      %1512 = vmatprep.subr.bf16.mxu0 0
      %1513 = vmatpush1.bf16.msra.mxu0 0
      %1514 = vmatprep.subr.bf16.mxu0 0
      %1515 = vmatpush1.bf16.msra.mxu0 0
      %1516 = vmatprep.subr.bf16.mxu0 0
      %1517 = vmatpush1.bf16.msra.mxu0 0
      %1518 = vmatprep.subr.bf16.mxu0 0
      %1519 = vmatpush1.bf16.msra.mxu0 0
      %1520 = vmatprep.subr.bf16.mxu0 0
      %1521 = vmatpush1.bf16.msra.mxu0 0
      %1522 = vmatprep.subr.bf16.mxu0 0
      %1523 = vmatpush1.bf16.msra.mxu0 0
      %1524 = vmatprep.subr.bf16.mxu0 0
      %1525 = vmatpush1.bf16.msra.mxu0 0
      %1526 = vmatprep.subr.bf16.mxu0 0
      %1527 = vmatpush1.bf16.msra.mxu0 0
      %1528 = vmatprep.subr.bf16.mxu0 0
      %1529 = vmatpush1.bf16.msra.mxu0 0
      %1530 = vmatprep.subr.bf16.mxu0 0
      %1531 = vmatpush1.bf16.msra.mxu0 0
      %1532 = vmatprep.subr.bf16.mxu0 0
      %1533 = vmatpush1.bf16.msra.mxu0 0
      %1534 = vmatprep.mubr.bf16.mxu0 0
      %1535 = vmatmul.mubr.bf16.gmra.mrb[0].mxu0 %v1479
      %v1536 = vpop.f32.mrb[0].mxu0
      %v1537 = vadd.f32 0.0, %v1536
      %v1538 = vpop.f32.mrb[0].mxu0
      %v1539 = vpop.f32.mrb[0].mxu0
      %v1540 = vadd.f32 0.0, %v1539
      %v1541 = vpop.f32.mrb[0].mxu0
      %1542 = vmatprep.mubr.bf16.mxu0 0
      %1543 = vmatmul.mubr.bf16.gmra.mrb[0].mxu0 %v1482
      %v1544 = vpop.f32.mrb[0].mxu0
      %v1545 = vadd.f32 0.0, %v1544
      %v1546 = vpop.f32.mrb[0].mxu0
      %v1547 = vpop.f32.mrb[0].mxu0
      %v1548 = vadd.f32 0.0, %v1547
      %v1549 = vpop.f32.mrb[0].mxu0
      %1550 = vmatprep.mubr.bf16.mxu0 0
      %1551 = vmatmul.mubr.bf16.gmra.mrb[0].mxu0 %v1485
      %v1552 = vpop.f32.mrb[0].mxu0
      %v1553 = vadd.f32 0.0, %v1552
      %v1554 = vpop.f32.mrb[0].mxu0
      %v1555 = vpop.f32.mrb[0].mxu0
      %v1556 = vadd.f32 0.0, %v1555
      %v1557 = vpop.f32.mrb[0].mxu0
      %1558 = vmatprep.mubr.bf16.mxu0 0
      %1559 = vmatmul.mubr.bf16.gmra.mrb[0].mxu0 %v1488
      %v1560 = vpop.f32.mrb[0].mxu0
      %v1561 = vadd.f32 0.0, %v1560
      %v1562 = vpop.f32.mrb[0].mxu0
      %v1563 = vpop.f32.mrb[0].mxu0
      %v1564 = vadd.f32 0.0, %v1563
      %v1565 = vpop.f32.mrb[0].mxu0
      %1566 = vmatprep.mubr.bf16.mxu0 0
      %1567 = vmatmul.mubr.bf16.gmra.mrb[0].mxu0 %v1491
      %v1568 = vpop.f32.mrb[0].mxu0
      %v1569 = vadd.f32 0.0, %v1568
      %v1570 = vpop.f32.mrb[0].mxu0
      %v1571 = vpop.f32.mrb[0].mxu0
      %v1572 = vadd.f32 0.0, %v1571
      %v1573 = vpop.f32.mrb[0].mxu0
      %1574 = vmatprep.mubr.bf16.mxu0 0
      %1575 = vmatmul.mubr.bf16.gmra.mrb[0].mxu0 %v1494
      %v1576 = vpop.f32.mrb[0].mxu0
      %v1577 = vadd.f32 0.0, %v1576
      %v1578 = vpop.f32.mrb[0].mxu0
      %v1579 = vpop.f32.mrb[0].mxu0
      %v1580 = vadd.f32 0.0, %v1579
      %v1581 = vpop.f32.mrb[0].mxu0
      %1582 = vmatprep.mubr.bf16.mxu0 0
      %1583 = vmatmul.mubr.bf16.gmra.mrb[0].mxu0 %v1497
      %v1584 = vpop.f32.mrb[0].mxu0
      %v1585 = vadd.f32 0.0, %v1584
      %v1586 = vpop.f32.mrb[0].mxu0
      %v1587 = vpop.f32.mrb[0].mxu0
      %v1588 = vadd.f32 0.0, %v1587
      %v1589 = vpop.f32.mrb[0].mxu0
      %1590 = vmatprep.mubr.bf16.mxu0 0
      %1591 = vmatmul.mubr.bf16.gmra.mrb[0].mxu0 %v1500
      %v1592 = vpop.f32.mrb[0].mxu0
      %v1593 = vadd.f32 0.0, %v1592
      %v1594 = vpop.f32.mrb[0].mxu0
      %v1595 = vpop.f32.mrb[0].mxu0
      %v1596 = vadd.f32 0.0, %v1595
      %v1597 = vpop.f32.mrb[0].mxu0
      %1598 = vdwg.mxu0
      %v1599 = vadd.f32 %v1354, %v1537
      %v1600 = vadd.f32 %v1355, %v1540
      %v1601 = vadd.f32 %v1356, %v1545
      %v1602 = vadd.f32 %v1357, %v1548
      %v1603 = vadd.f32 %v1358, %v1553
      %v1604 = vadd.f32 %v1359, %v1556
      %v1605 = vadd.f32 %v1360, %v1561
      %v1606 = vadd.f32 %v1361, %v1564
      %v1607 = vadd.f32 %v1362, %v1569
      %v1608 = vadd.f32 %v1363, %v1572
      %v1609 = vadd.f32 %v1364, %v1577
      %v1610 = vadd.f32 %v1365, %v1580
      %v1611 = vadd.f32 %v1366, %v1585
      %v1612 = vadd.f32 %v1367, %v1588
      %v1613 = vadd.f32 %v1368, %v1593
      %v1614 = vadd.f32 %v1369, %v1596
      %v1616 = vrot.slane %v233, 5
      %v1617 = vrot.slane %v1616, 4
      %v1618 = vrot.slane %v234, 5
      %v1619 = vsel %vm1380, %v1617, %v1618
      %v1620 = vrot.slane %v1618, 4
      %v1621 = vrot.slane %v235, 5
      %v1622 = vsel %vm1380, %v1620, %v1621
      %s1623 = scalar_lea.vmem %s1, 80
      %v1624 = vld [vmem:[%s1623] sm:$0xf]
      %v1625 = vld [vmem:[%s1623 + $0x4] sm:$0xf]
      %v1626 = vld [vmem:[%s1623 + $0x8] sm:$0xf]
      %v1627 = vld [vmem:[%s1623 + $0xc] sm:$0xf]
      %v1628 = vunpack.c.l.b16 %v1619
      %v1629 = vunpack.c.l.b16 %v1622
      %v1630 = vpack.c.b16 %v1629, %v1628
      %v1635 = vunpack.c.l.b16 %v1624
      %v1636 = vunpack.c.l.b16 %v1625
      %v1637 = vunpack.c.l.b16 %v1626
      %v1638 = vunpack.c.l.b16 %v1627
      %v1639 = vpack.c.b16 %v1636, %v1635
      %v1640 = vpack.c.b16 %v1638, %v1637
      %v1644 = vsel %vm300, %v1630, 0
      %1646 = vmatprep.subr.bf16.mxu0 0
      %1647 = vmatpush1.bf16.msra.mxu0 %v1639
      %1648 = vmatprep.subr.bf16.mxu0 0
      %1649 = vmatpush1.bf16.msra.mxu0 %v1640
      %1650 = vmatprep.subr.bf16.mxu0 0
      %1651 = vmatpush1.bf16.msra.mxu0 0
      %1652 = vmatprep.subr.bf16.mxu0 0
      %1653 = vmatpush1.bf16.msra.mxu0 0
      %1654 = vmatprep.subr.bf16.mxu0 0
      %1655 = vmatpush1.bf16.msra.mxu0 0
      %1656 = vmatprep.subr.bf16.mxu0 0
      %1657 = vmatpush1.bf16.msra.mxu0 0
      %1658 = vmatprep.subr.bf16.mxu0 0
      %1659 = vmatpush1.bf16.msra.mxu0 0
      %1660 = vmatprep.subr.bf16.mxu0 0
      %1661 = vmatpush1.bf16.msra.mxu0 0
      %1662 = vmatprep.subr.bf16.mxu0 0
      %1663 = vmatpush1.bf16.msra.mxu0 0
      %1664 = vmatprep.subr.bf16.mxu0 0
      %1665 = vmatpush1.bf16.msra.mxu0 0
      %1666 = vmatprep.subr.bf16.mxu0 0
      %1667 = vmatpush1.bf16.msra.mxu0 0
      %1668 = vmatprep.subr.bf16.mxu0 0
      %1669 = vmatpush1.bf16.msra.mxu0 0
      %1670 = vmatprep.subr.bf16.mxu0 0
      %1671 = vmatpush1.bf16.msra.mxu0 0
      %1672 = vmatprep.subr.bf16.mxu0 0
      %1673 = vmatpush1.bf16.msra.mxu0 0
      %1674 = vmatprep.subr.bf16.mxu0 0
      %1675 = vmatpush1.bf16.msra.mxu0 0
      %1676 = vmatprep.subr.bf16.mxu0 0
      %1677 = vmatpush1.bf16.msra.mxu0 0
      %1678 = vmatprep.mubr.bf16.mxu0 0
      %1679 = vmatmul.mubr.bf16.gmra.mrb[0].mxu0 %v1482
      %v1680 = vpop.f32.mrb[0].mxu0
      %v1681 = vadd.f32 0.0, %v1680
      %v1682 = vpop.f32.mrb[0].mxu0
      %v1683 = vpop.f32.mrb[0].mxu0
      %v1684 = vadd.f32 0.0, %v1683
      %v1685 = vpop.f32.mrb[0].mxu0
      %1686 = vmatprep.mubr.bf16.mxu0 0
      %1687 = vmatmul.mubr.bf16.gmra.mrb[0].mxu0 %v1485
      %v1688 = vpop.f32.mrb[0].mxu0
      %v1689 = vadd.f32 0.0, %v1688
      %v1690 = vpop.f32.mrb[0].mxu0
      %v1691 = vpop.f32.mrb[0].mxu0
      %v1692 = vadd.f32 0.0, %v1691
      %v1693 = vpop.f32.mrb[0].mxu0
      %1694 = vmatprep.mubr.bf16.mxu0 0
      %1695 = vmatmul.mubr.bf16.gmra.mrb[0].mxu0 %v1488
      %v1696 = vpop.f32.mrb[0].mxu0
      %v1697 = vadd.f32 0.0, %v1696
      %v1698 = vpop.f32.mrb[0].mxu0
      %v1699 = vpop.f32.mrb[0].mxu0
      %v1700 = vadd.f32 0.0, %v1699
      %v1701 = vpop.f32.mrb[0].mxu0
      %1702 = vmatprep.mubr.bf16.mxu0 0
      %1703 = vmatmul.mubr.bf16.gmra.mrb[0].mxu0 %v1491
      %v1704 = vpop.f32.mrb[0].mxu0
      %v1705 = vadd.f32 0.0, %v1704
      %v1706 = vpop.f32.mrb[0].mxu0
      %v1707 = vpop.f32.mrb[0].mxu0
      %v1708 = vadd.f32 0.0, %v1707
      %v1709 = vpop.f32.mrb[0].mxu0
      %1710 = vmatprep.mubr.bf16.mxu0 0
      %1711 = vmatmul.mubr.bf16.gmra.mrb[0].mxu0 %v1494
      %v1712 = vpop.f32.mrb[0].mxu0
      %v1713 = vadd.f32 0.0, %v1712
      %v1714 = vpop.f32.mrb[0].mxu0
      %v1715 = vpop.f32.mrb[0].mxu0
      %v1716 = vadd.f32 0.0, %v1715
      %v1717 = vpop.f32.mrb[0].mxu0
      %1718 = vmatprep.mubr.bf16.mxu0 0
      %1719 = vmatmul.mubr.bf16.gmra.mrb[0].mxu0 %v1497
      %v1720 = vpop.f32.mrb[0].mxu0
      %v1721 = vadd.f32 0.0, %v1720
      %v1722 = vpop.f32.mrb[0].mxu0
      %v1723 = vpop.f32.mrb[0].mxu0
      %v1724 = vadd.f32 0.0, %v1723
      %v1725 = vpop.f32.mrb[0].mxu0
      %1726 = vmatprep.mubr.bf16.mxu0 0
      %1727 = vmatmul.mubr.bf16.gmra.mrb[0].mxu0 %v1500
      %v1728 = vpop.f32.mrb[0].mxu0
      %v1729 = vadd.f32 0.0, %v1728
      %v1730 = vpop.f32.mrb[0].mxu0
      %v1731 = vpop.f32.mrb[0].mxu0
      %v1732 = vadd.f32 0.0, %v1731
      %v1733 = vpop.f32.mrb[0].mxu0
      %1734 = vmatprep.mubr.bf16.mxu0 0
      %1735 = vmatmul.mubr.bf16.gmra.mrb[0].mxu0 %v1644
      %v1736 = vpop.f32.mrb[0].mxu0
      %v1737 = vadd.f32 0.0, %v1736
      %v1738 = vpop.f32.mrb[0].mxu0
      %v1739 = vpop.f32.mrb[0].mxu0
      %v1740 = vadd.f32 0.0, %v1739
      %v1741 = vpop.f32.mrb[0].mxu0
      %1742 = vdwg.mxu0
      %v1743 = vadd.f32 %v1599, %v1681
      %v1744 = vadd.f32 %v1600, %v1684
      %v1745 = vadd.f32 %v1601, %v1689
      %v1746 = vadd.f32 %v1602, %v1692
      %v1747 = vadd.f32 %v1603, %v1697
      %v1748 = vadd.f32 %v1604, %v1700
      %v1749 = vadd.f32 %v1605, %v1705
      %v1750 = vadd.f32 %v1606, %v1708
      %v1751 = vadd.f32 %v1607, %v1713
      %v1752 = vadd.f32 %v1608, %v1716
      %v1753 = vadd.f32 %v1609, %v1721
      %v1754 = vadd.f32 %v1610, %v1724
      %v1755 = vadd.f32 %v1611, %v1729
      %v1756 = vadd.f32 %v1612, %v1732
      %v1757 = vadd.f32 %v1613, %v1737
      %v1758 = vadd.f32 %v1614, %v1740
      %v1760 = vrot.slane %v236, 5
      %v1761 = vrot.slane %v1760, 4
      %v1762 = vrot.slane %v237, 5
      %v1763 = vsel %vm1380, %v1761, %v1762
      %v1764 = vrot.slane %v1762, 4
      %v1765 = vrot.slane %v238, 5
      %v1766 = vsel %vm1380, %v1764, %v1765
      %s1767 = scalar_lea.vmem %s1, 128
      %v1768 = vld [vmem:[%s1767] sm:$0xf]
      %v1769 = vld [vmem:[%s1767 + $0x4] sm:$0xf]
      %v1770 = vld [vmem:[%s1767 + $0x8] sm:$0xf]
      %v1771 = vld [vmem:[%s1767 + $0xc] sm:$0xf]
      %v1772 = vunpack.c.l.b16 %v1763
      %v1773 = vunpack.c.l.b16 %v1766
      %v1774 = vpack.c.b16 %v1773, %v1772
      %v1779 = vunpack.c.l.b16 %v1768
      %v1780 = vunpack.c.l.b16 %v1769
      %v1781 = vunpack.c.l.b16 %v1770
      %v1782 = vunpack.c.l.b16 %v1771
      %v1783 = vpack.c.b16 %v1780, %v1779
      %v1784 = vpack.c.b16 %v1782, %v1781
      %v1788 = vsel %vm300, %v1774, 0
      %1790 = vmatprep.subr.bf16.mxu0 0
      %1791 = vmatpush1.bf16.msra.mxu0 %v1783
      %1792 = vmatprep.subr.bf16.mxu0 0
      %1793 = vmatpush1.bf16.msra.mxu0 %v1784
      %1794 = vmatprep.subr.bf16.mxu0 0
      %1795 = vmatpush1.bf16.msra.mxu0 0
      %1796 = vmatprep.subr.bf16.mxu0 0
      %1797 = vmatpush1.bf16.msra.mxu0 0
      %1798 = vmatprep.subr.bf16.mxu0 0
      %1799 = vmatpush1.bf16.msra.mxu0 0
      %1800 = vmatprep.subr.bf16.mxu0 0
      %1801 = vmatpush1.bf16.msra.mxu0 0
      %1802 = vmatprep.subr.bf16.mxu0 0
      %1803 = vmatpush1.bf16.msra.mxu0 0
      %1804 = vmatprep.subr.bf16.mxu0 0
      %1805 = vmatpush1.bf16.msra.mxu0 0
      %1806 = vmatprep.subr.bf16.mxu0 0
      %1807 = vmatpush1.bf16.msra.mxu0 0
      %1808 = vmatprep.subr.bf16.mxu0 0
      %1809 = vmatpush1.bf16.msra.mxu0 0
      %1810 = vmatprep.subr.bf16.mxu0 0
      %1811 = vmatpush1.bf16.msra.mxu0 0
      %1812 = vmatprep.subr.bf16.mxu0 0
      %1813 = vmatpush1.bf16.msra.mxu0 0
      %1814 = vmatprep.subr.bf16.mxu0 0
      %1815 = vmatpush1.bf16.msra.mxu0 0
      %1816 = vmatprep.subr.bf16.mxu0 0
      %1817 = vmatpush1.bf16.msra.mxu0 0
      %1818 = vmatprep.subr.bf16.mxu0 0
      %1819 = vmatpush1.bf16.msra.mxu0 0
      %1820 = vmatprep.subr.bf16.mxu0 0
      %1821 = vmatpush1.bf16.msra.mxu0 0
      %1822 = vmatprep.mubr.bf16.mxu0 0
      %1823 = vmatmul.mubr.bf16.gmra.mrb[0].mxu0 %v1485
      %v1824 = vpop.f32.mrb[0].mxu0
      %v1825 = vadd.f32 0.0, %v1824
      %v1826 = vpop.f32.mrb[0].mxu0
      %v1827 = vpop.f32.mrb[0].mxu0
      %v1828 = vadd.f32 0.0, %v1827
      %v1829 = vpop.f32.mrb[0].mxu0
      %1830 = vmatprep.mubr.bf16.mxu0 0
      %1831 = vmatmul.mubr.bf16.gmra.mrb[0].mxu0 %v1488
      %v1832 = vpop.f32.mrb[0].mxu0
      %v1833 = vadd.f32 0.0, %v1832
      %v1834 = vpop.f32.mrb[0].mxu0
      %v1835 = vpop.f32.mrb[0].mxu0
      %v1836 = vadd.f32 0.0, %v1835
      %v1837 = vpop.f32.mrb[0].mxu0
      %1838 = vmatprep.mubr.bf16.mxu0 0
      %1839 = vmatmul.mubr.bf16.gmra.mrb[0].mxu0 %v1491
      %v1840 = vpop.f32.mrb[0].mxu0
      %v1841 = vadd.f32 0.0, %v1840
      %v1842 = vpop.f32.mrb[0].mxu0
      %v1843 = vpop.f32.mrb[0].mxu0
      %v1844 = vadd.f32 0.0, %v1843
      %v1845 = vpop.f32.mrb[0].mxu0
      %1846 = vmatprep.mubr.bf16.mxu0 0
      %1847 = vmatmul.mubr.bf16.gmra.mrb[0].mxu0 %v1494
      %v1848 = vpop.f32.mrb[0].mxu0
      %v1849 = vadd.f32 0.0, %v1848
      %v1850 = vpop.f32.mrb[0].mxu0
      %v1851 = vpop.f32.mrb[0].mxu0
      %v1852 = vadd.f32 0.0, %v1851
      %v1853 = vpop.f32.mrb[0].mxu0
      %1854 = vmatprep.mubr.bf16.mxu0 0
      %1855 = vmatmul.mubr.bf16.gmra.mrb[0].mxu0 %v1497
      %v1856 = vpop.f32.mrb[0].mxu0
      %v1857 = vadd.f32 0.0, %v1856
      %v1858 = vpop.f32.mrb[0].mxu0
      %v1859 = vpop.f32.mrb[0].mxu0
      %v1860 = vadd.f32 0.0, %v1859
      %v1861 = vpop.f32.mrb[0].mxu0
      %1862 = vmatprep.mubr.bf16.mxu0 0
      %1863 = vmatmul.mubr.bf16.gmra.mrb[0].mxu0 %v1500
      %v1864 = vpop.f32.mrb[0].mxu0
      %v1865 = vadd.f32 0.0, %v1864
      %v1866 = vpop.f32.mrb[0].mxu0
      %v1867 = vpop.f32.mrb[0].mxu0
      %v1868 = vadd.f32 0.0, %v1867
      %v1869 = vpop.f32.mrb[0].mxu0
      %1870 = vmatprep.mubr.bf16.mxu0 0
      %1871 = vmatmul.mubr.bf16.gmra.mrb[0].mxu0 %v1644
      %v1872 = vpop.f32.mrb[0].mxu0
      %v1873 = vadd.f32 0.0, %v1872
      %v1874 = vpop.f32.mrb[0].mxu0
      %v1875 = vpop.f32.mrb[0].mxu0
      %v1876 = vadd.f32 0.0, %v1875
      %v1877 = vpop.f32.mrb[0].mxu0
      %1878 = vmatprep.mubr.bf16.mxu0 0
      %1879 = vmatmul.mubr.bf16.gmra.mrb[0].mxu0 %v1788
      %v1880 = vpop.f32.mrb[0].mxu0
      %v1881 = vadd.f32 0.0, %v1880
      %v1882 = vpop.f32.mrb[0].mxu0
      %v1883 = vpop.f32.mrb[0].mxu0
      %v1884 = vadd.f32 0.0, %v1883
      %v1885 = vpop.f32.mrb[0].mxu0
      %1886 = vdwg.mxu0
      %v1887 = vadd.f32 %v1743, %v1825
      %v1888 = vadd.f32 %v1744, %v1828
      %v1889 = vadd.f32 %v1745, %v1833
      %v1890 = vadd.f32 %v1746, %v1836
      %v1891 = vadd.f32 %v1747, %v1841
      %v1892 = vadd.f32 %v1748, %v1844
      %v1893 = vadd.f32 %v1749, %v1849
      %v1894 = vadd.f32 %v1750, %v1852
      %v1895 = vadd.f32 %v1751, %v1857
      %v1896 = vadd.f32 %v1752, %v1860
      %v1897 = vadd.f32 %v1753, %v1865
      %v1898 = vadd.f32 %v1754, %v1868
      %v1899 = vadd.f32 %v1755, %v1873
      %v1900 = vadd.f32 %v1756, %v1876
      %v1901 = vadd.f32 %v1757, %v1881
      %v1902 = vadd.f32 %v1758, %v1884
      %v1903 = vld [vmem:[%s2] sm:$0x1]
      %v1905 = vlaneseq
      %v1906 = vshrl.u32 %v1905, 7
      %v1907 = vsub.s32 0, %v1906
      %v1908 = vrot.slane %v1903, %v1907
      %v1910 = vadd.f32 %v1887, %v1908
      %v1911 = vadd.f32 %v1888, %v1908
      %v1912 = vadd.f32 %v1889, %v1908
      %v1913 = vadd.f32 %v1890, %v1908
      %v1914 = vadd.f32 %v1891, %v1908
      %v1915 = vadd.f32 %v1892, %v1908
      %v1916 = vadd.f32 %v1893, %v1908
      %v1917 = vadd.f32 %v1894, %v1908
      %v1918 = vadd.f32 %v1895, %v1908
      %v1919 = vadd.f32 %v1896, %v1908
      %v1920 = vadd.f32 %v1897, %v1908
      %v1921 = vadd.f32 %v1898, %v1908
      %v1922 = vadd.f32 %v1899, %v1908
      %v1923 = vadd.f32 %v1900, %v1908
      %v1924 = vadd.f32 %v1901, %v1908
      %v1925 = vadd.f32 %v1902, %v1908
      %v1926 = vmax.f32 %v1910, 0.0
      %v1927 = vmax.f32 %v1911, 0.0
      %v1928 = vmax.f32 %v1912, 0.0
      %v1929 = vmax.f32 %v1913, 0.0
      %v1930 = vmax.f32 %v1914, 0.0
      %v1931 = vmax.f32 %v1915, 0.0
      %v1932 = vmax.f32 %v1916, 0.0
      %v1933 = vmax.f32 %v1917, 0.0
      %v1934 = vmax.f32 %v1918, 0.0
      %v1935 = vmax.f32 %v1919, 0.0
      %v1936 = vmax.f32 %v1920, 0.0
      %v1937 = vmax.f32 %v1921, 0.0
      %v1938 = vmax.f32 %v1922, 0.0
      %v1939 = vmax.f32 %v1923, 0.0
      %v1940 = vmax.f32 %v1924, 0.0
      %v1941 = vmax.f32 %v1925, 0.0
      %v1942 = vmax.f32 %v1926, %v1928
      %v1943 = vmax.f32 %v1927, %v1929
      %v1944 = vmax.f32 %v1930, %v1932
      %v1945 = vmax.f32 %v1931, %v1933
      %v1946 = vmax.f32 %v1934, %v1936
      %v1947 = vmax.f32 %v1935, %v1937
      %v1948 = vmax.f32 %v1938, %v1940
      %v1949 = vmax.f32 %v1939, %v1941
      %vm1950 = vcmask 523264
      %1951 = vst.msk [vmem:[#allocation2] sm:$0xff] %vm1950, %v1942
      %1952 = vst.msk [vmem:[#allocation2 + $0x8] sm:$0xff] %vm1950, %v1943
      %1953 = vst.msk [vmem:[#allocation2 + $0x10] sm:$0xff] %vm1950, %v1944
      %1954 = vst.msk [vmem:[#allocation2 + $0x18] sm:$0xff] %vm1950, %v1945
      %1955 = vst.msk [vmem:[#allocation2 + $0x20] sm:$0xff] %vm1950, %v1946
      %1956 = vst.msk [vmem:[#allocation2 + $0x28] sm:$0xff] %vm1950, %v1947
      %1957 = vst.msk [vmem:[#allocation2 + $0x30] sm:$0xff] %vm1950, %v1948
      %1958 = vst.msk [vmem:[#allocation2 + $0x38] sm:$0xff] %vm1950, %v1949
      %v1959 = vld [vmem:[#allocation2] ss:$2 sm:$0xff]
      %s1960 = scalar_lea.vmem [#allocation2], 16
      %v1961 = vld [vmem:[%s1960] ss:$2 sm:$0xff]
      %s1962 = scalar_lea.vmem [#allocation2], 32
      %v1963 = vld [vmem:[%s1962] ss:$2 sm:$0xff]
      %s1964 = scalar_lea.vmem [#allocation2], 48
      %v1965 = vld [vmem:[%s1964] ss:$2 sm:$0xff]
      %s1966 = scalar_lea.vmem [#allocation2], 1
      %v1967 = vld [vmem:[%s1966] ss:$2 sm:$0xff]
      %s1968 = scalar_lea.vmem [#allocation2], 17
      %v1969 = vld [vmem:[%s1968] ss:$2 sm:$0xff]
      %s1970 = scalar_lea.vmem [#allocation2], 33
      %v1971 = vld [vmem:[%s1970] ss:$2 sm:$0xff]
      %s1972 = scalar_lea.vmem [#allocation2], 49
      %v1973 = vld [vmem:[%s1972] ss:$2 sm:$0xff]
      %v1974 = vmax.f32 %v1959, %v1967
      %v1975 = vmax.f32 %v1961, %v1969
      %v1976 = vmax.f32 %v1963, %v1971
      %v1977 = vmax.f32 %v1965, %v1973
      %v1978 = vpack.c.bf16 %v1974, %v1974
      %v1979 = vpack.c.bf16 %v1975, %v1975
      %v1980 = vpack.c.bf16 %v1976, %v1976
      %v1981 = vpack.c.bf16 %v1977, %v1977
      %vm1982 = vcmask 519168
      %1983 = vst.msk [vmem:[%s206] sm:$0xf] %vm1982, %v1978
      %1984 = vst.msk [vmem:[%s206 + $0x4] sm:$0xf] %vm1982, %v1979
      %1985 = vst.msk [vmem:[%s206 + $0x8] sm:$0xf] %vm1982, %v1980
      %1986 = vst.msk [vmem:[%s206 + $0xc] sm:$0xf] %vm1982, %v1981
      %s1987 = smul.u32 4, %s19
      %p1988 = scmp.lt.s32.totalorder %s18, 1
      %s1989 = scalar_select %p1988, %s18, 1
      %p1990 = scmp.lt.s32.totalorder %s1987, 7
      %s1991 = scalar_select %p1990, %s1987, 7
      %s1992 = smul.addr %s1989, 8
      %s1993 = sadd.s32 %s1991, %s1992
      %s1994 = smul.addr %s1993, 4
      %s1995 = scalar_lea.vmem %s3, %s1994
      // Predicated region
      $region33: #{simple_cnn_forward.4} parent=31 // pred_check
        %p1996 = pneg %p116
      $region34: #{simple_cnn_forward.4} parent=31 // pred_check_branch
        %1998 = sbr.rel (%p1996) target = $region36
      $region35: #{simple_cnn_forward.4} parent=31 // pred_region
        %s1999 = smul.u32 4, %s19
      $region36: #{simple_cnn_forward.4} parent=31 // pred_fallthru
        _
    $region32: #{simple_cnn_forward.4} parent=5 // pred_fallthru
      _
    %p2000 = scmp.le.s32.totalorder 2, %s9
    // Predicated region
    $region37: #{simple_cnn_forward.4} parent=5 // pred_check
      %p2001 = pneg %p2000
    $region38: #{simple_cnn_forward.4} parent=5 // pred_check_branch
      %2003 = sbr.rel (%p2001) target = $region40
    $region39: #{simple_cnn_forward.4} parent=5 // pred_region
      %s2004 = ssub.s32 %s9, 2
      // Predicated region
      $region41: #{simple_cnn_forward.4} parent=39 // pred_check
        %p2005 = pneg %p122
      $region42: #{simple_cnn_forward.4} parent=39 // pred_check_branch
        %2007 = sbr.rel (%p2005) target = $region44
      $region43: #{simple_cnn_forward.4} parent=39 // pred_region
        %s2008 = smul.u32 4, %s21
        %p2009 = scmp.lt.s32.totalorder %s20, 1
        %s2010 = scalar_select %p2009, %s20, 1
        %p2011 = scmp.lt.s32.totalorder %s2008, 7
        %s2012 = scalar_select %p2011, %s2008, 7
        %s2013 = smul.addr %s2010, 8
        %s2014 = sadd.s32 %s2012, %s2013
        %s2015 = smul.addr %s2014, 4
        %s2016 = scalar_lea.vmem %s3, %s2015
      $region44: #{simple_cnn_forward.4} parent=39 // pred_fallthru
        _
    $region40: #{simple_cnn_forward.4} parent=5 // pred_fallthru
      _
  $region6: #{simple_cnn_forward.4} parent=0 // loop_footer
    %s13 = sadd.s32 1, %s9
  $region7: #{simple_cnn_forward.4} parent=0 // loop_footer_branch
    %8 = sbr.rel target = $region3
  $region8: #{simple_cnn_forward.4} parent=0 // loop_exit
    _

</llo_original>
